<compile_context>
chip_gen: v7x
topology: tpu7x:2x2x1
jax: 0.10.0
libtpu: 0.0.40
codegen_flags: <defaults>
</compile_context>

<pallas_src>
import numpy as np
import jax
import jax.numpy as jnp
from jax import lax
from jax.experimental import pallas as pl
from jax.experimental.pallas import tpu as pltpu

GES = 16   # graph_embedding_size
NT = 4     # Nt

# Plain Python float (NOT a jnp array) so the kernel does not capture a traced
# f32[] constant.  |NEG| stays below bf16/f32 max so mask adds cannot overflow.
NEG = -3.0e38


def _round_up(x, m):
    return (x + m - 1) // m * m


def gnn_kernel(x_emb0T_ref, x_tailT_ref, s_ref, madd_ref, eattrT_ref, has_inT_ref,
               w1a_embT_ref, w1a_tailT_ref, w1a_eT_ref, b1aT_ref, w1bT_ref, b1bT_ref,
               w2a_embT_ref, w2a_tailT_ref, w2a_aggT_ref, b2aT_ref, w2bT_ref, b2bT_ref,
               wh1T_ref, bh1T_ref, wh2T_ref, bh2T_ref,
               outT_ref):
    n_blk = s_ref.shape[0]          # static
    n_pad = s_ref.shape[1]          # static (padded node count)

    x_tailT = x_tailT_ref[...]                          # [8, Np]
    has_in = has_inT_ref[...] > 0.5                     # [1, Np] bool

    # ---- conv-invariant node terms (x[:, GES:] never changes across conv calls) ----
    cn1T = jnp.dot(w1a_tailT_ref[...], x_tailT,
                   preferred_element_type=jnp.float32)                      # [32, Np]
    cn2T = (jnp.dot(w2a_tailT_ref[...], x_tailT,
                    preferred_element_type=jnp.float32) + b2aT_ref[...])    # [32, Np]

    w1a_eT = w1a_eT_ref[...]
    b1aT = b1aT_ref[...]
    w1bT = w1bT_ref[...]
    b1bT = b1bT_ref[...]

    def conv(x_embT):
        # Fused gather + mlp1 layer-1 (emb part), feature-major: [32, Np].
        xwT = (jnp.dot(w1a_embT_ref[...], x_embT,
                       preferred_element_type=jnp.float32) + cn1T)
        xwT_bf = xwT.astype(jnp.bfloat16)                # bf16 MXU operand (one rounding)

        def agg_step(b, accT):
            # One-hot gather: column e holds (x[src[e]] @ W_emb).  [32, Eb]
            g = jnp.dot(xwT_bf, s_ref[b], preferred_element_type=jnp.float32)
            # Edge-attr part of mlp1 layer 1, recomputed (cheap) instead of cached.
            ceT = (jnp.dot(w1a_eT, eattrT_ref[b],
                           preferred_element_type=jnp.float32) + b1aT)       # [32, Eb]
            h1T = jnp.maximum(g + ceT, 0.0)
            msgT = jnp.maximum(
                jnp.dot(w1bT, h1T, preferred_element_type=jnp.float32) + b1bT,
                0.0)                                                         # [32, Eb]
            # Additive dst mask + lane-axis max-reduce = scatter-max over this E block.
            cand = msgT[:, None, :] + madd_ref[b][None, :, :]                # [32, Np, Eb]
            return jnp.maximum(accT, jnp.max(cand, axis=-1))                 # [32, Np]

        acc0 = jnp.full((32, n_pad), NEG, dtype=jnp.float32)
        if n_blk <= 8:
            # Full unroll: keeps the body visible to the LLO scheduler.
            accT = acc0
            for b in range(n_blk):
                accT = agg_step(b, accT)
        else:
            accT = lax.fori_loop(0, n_blk, agg_step, acc0, unroll=2)

        # Isolated nodes -> 0 (PyG 'max' aggregation behavior).
        aggrT = jnp.where(has_in, accT, 0.0)                                 # [32, Np]

        pre2T = (jnp.dot(w2a_embT_ref[...], x_embT,
                         preferred_element_type=jnp.float32)
                 + jnp.dot(w2a_aggT_ref[...], aggrT,
                           preferred_element_type=jnp.float32)
                 + cn2T)                                                     # [32, Np]
        h2T = jnp.maximum(pre2T, 0.0)
        return jnp.maximum(
            jnp.dot(w2bT_ref[...], h2T, preferred_element_type=jnp.float32)
            + b2bT_ref[...], 0.0)                                            # [16, Np]

    x1T = conv(x_emb0T_ref[...])
    x2T = conv(x1T)

    # h2o: Lin(16,32)+ReLU, Lin(32,8)+Tanh  (tanh/sqrt go to the EUP slot)
    hT = jnp.maximum(
        jnp.dot(wh1T_ref[...], x2T, preferred_element_type=jnp.float32)
        + bh1T_ref[...], 0.0)                                                # [32, Np]
    outT = jnp.tanh(
        jnp.dot(wh2T_ref[...], hT, preferred_element_type=jnp.float32)
        + bh2T_ref[...])                                                     # [8, Np]

    # per-node norm clamp: out / max(1, ||out||)
    nor = jnp.sqrt(jnp.sum(outT * outT, axis=0, keepdims=True))              # [1, Np]
    outT_ref[...] = outT / jnp.maximum(1.0, nor)


def init_params(key):
    """Deterministic PyTorch-Linear-style init (weights stored as [in, out])."""
    def lin(k, fan_in, fan_out):
        k1, k2 = jax.random.split(k)
        bound = 1.0 / np.sqrt(fan_in)
        w = jax.random.uniform(k1, (fan_in, fan_out), jnp.float32, -bound, bound)
        b = jax.random.uniform(k2, (1, fan_out), jnp.float32, -bound, bound)
        return w, b

    keys = jax.random.split(key, 6)
    p = {}
    p['w1a'], p['b1a'] = lin(keys[0], 4 * NT + GES, 32)          # mlp1: 32 -> 32
    p['w1b'], p['b1b'] = lin(keys[1], 32, 32)                    # mlp1: 32 -> 32
    p['w2a'], p['b2a'] = lin(keys[2], 32 + 2 * NT + GES, 32)     # mlp2: 56 -> 32
    p['w2b'], p['b2b'] = lin(keys[3], 32, GES)                   # mlp2: 32 -> 16
    p['wh1'], p['bh1'] = lin(keys[4], GES, 32)                   # h2o: 16 -> 32
    p['wh2'], p['bh2'] = lin(keys[5], 32, 2 * NT)                # h2o: 32 -> 8
    return p


def gnn_forward(x0, edge_attr, edge_index, params):
    N = x0.shape[0]
    E = edge_attr.shape[0]

    N_pad = _round_up(max(N, 8), 8)

    # ---- chip-aware tiling / VMEM budget ----
    try:
        vmem_cap = int(pltpu.get_tpu_info().vmem_capacity_bytes)
    except Exception:
        vmem_cap = 64 * 1024 * 1024   # conservative (v7x-sized) fallback

    # Bigger E blocks on 128-MiB parts (v5e/v6e), smaller on 64-MiB v7x; also cap
    # the [32, Np, Eb] masked-max intermediate at ~1/8 of physical VMEM.
    eblk_cap = 2048 if vmem_cap >= (96 << 20) else 512
    while eblk_cap > 128 and 32 * N_pad * eblk_cap * 4 > vmem_cap // 8:
        eblk_cap //= 2
    EBLK = min(_round_up(max(E, 128), 128), eblk_cap)   # lane-dense (multiple of 128)
    E_pad = _round_up(E, EBLK)
    n_blk = E_pad // EBLK

    src = edge_index[0]
    dst = edge_index[1]

    x0 = x0.astype(jnp.float32)
    x_emb0T = jnp.zeros((GES, N_pad), jnp.float32).at[:, :N].set(x0[:, :GES].T)
    x_tailT = jnp.zeros((2 * NT, N_pad), jnp.float32).at[:, :N].set(x0[:, GES:].T)

    node_ids = jnp.arange(N_pad, dtype=jnp.int32)[:, None]

    # One-hot src gather operator, feature-major: S[n, e] = 1 iff src[e] == n.
    # bf16 is exact for 0/1 and halves the footprint of the largest operand.
    S = (src[None, :] == node_ids).astype(jnp.bfloat16)                     # [Np, E]
    S = jnp.pad(S, ((0, 0), (0, E_pad - E)))
    S = S.reshape(N_pad, n_blk, EBLK).transpose(1, 0, 2)                    # [nb, Np, Eb]

    # Additive dst mask: 0 where dst == n, NEG elsewhere (padded edges -> NEG).
    # Kept f32 so the hot add is VPU-native on v5e as well.
    Madd = jnp.where(dst[None, :] == node_ids, 0.0, NEG)                    # [Np, E] f32
    Madd = jnp.pad(Madd, ((0, 0), (0, E_pad - E)), constant_values=NEG)
    Madd = Madd.reshape(N_pad, n_blk, EBLK).transpose(1, 0, 2)              # [nb, Np, Eb]

    eattrT = jnp.pad(edge_attr.astype(jnp.float32), ((0, E_pad - E), (0, 0))).T
    eattrT = eattrT.reshape(2 * NT, n_blk, EBLK).transpose(1, 0, 2)         # [nb, 8, Eb]

    has_inT = jnp.zeros((N_pad,), jnp.float32).at[dst].set(1.0).reshape(1, N_pad)

    # Split + pre-transposed weights (feature-major kernel: no lane-axis concats,
    # no in-kernel transposes).
    w1a, w2a = params['w1a'], params['w2a']
    w1a_embT = w1a[:GES].T
    w1a_tailT = w1a[GES:GES + 2 * NT].T
    w1a_eT = w1a[GES + 2 * NT:].T
    w2a_embT = w2a[:GES].T
    w2a_tailT = w2a[GES:GES + 2 * NT].T
    w2a_aggT = w2a[GES + 2 * NT:].T

    args = [x_emb0T, x_tailT, S, Madd, eattrT, has_inT,
            w1a_embT, w1a_tailT, w1a_eT, params['b1a'].T, params['w1b'].T,
            params['b1b'].T,
            w2a_embT, w2a_tailT, w2a_aggT, params['b2a'].T, params['w2b'].T,
            params['b2b'].T,
            params['wh1'].T, params['bh1'].T, params['wh2'].T, params['bh2'].T]

    vmem = pl.BlockSpec(memory_space=pltpu.MemorySpace.VMEM)

    # VMEM estimate (bytes): dense operators + per-block masked-max intermediate.
    est = (2 * E_pad * N_pad              # S (bf16)
           + 4 * E_pad * N_pad            # additive dst mask (f32)
           + 4 * E_pad * 2 * NT           # eattrT
           + 4 * 32 * N_pad * EBLK        # [32, Np, Eb] masked-max intermediate
           + 4 * N_pad * 256              # node-feature slabs / activations
           + 256 * 1024)                  # weights + headroom
    vmem_limit = int(min(vmem_cap * 3 // 4, max(32 * 2 ** 20, 2 * est)))

    outT = pl.pallas_call(
        gnn_kernel,
        out_shape=jax.ShapeDtypeStruct((2 * NT, N_pad), jnp.float32),
        in_specs=[vmem] * len(args),
        out_specs=vmem,
        compiler_params=pltpu.CompilerParams(vmem_limit_bytes=vmem_limit),
    )(*args)
    return outT[:, :N].T


def gnn_reference(x0, edge_attr, edge_index, params):
    """Pure-JAX reference (mirrors the PyTorch module semantics, full f32)."""
    src, dst = edge_index[0], edge_index[1]
    N = x0.shape[0]

    def mlp(t, wa, ba, wb, bb):
        h = jnp.maximum(t @ wa + ba, 0.0)
        return jnp.maximum(h @ wb + bb, 0.0)

    def conv(x):
        xj = x[src]
        msg = mlp(jnp.concatenate([xj, edge_attr], 1),
                  params['w1a'], params['b1a'], params['w1b'], params['b1b'])
        aggr = jnp.full((N, 32), -3.0e38, jnp.float32).at[dst].max(msg)
        has = jnp.zeros((N,), bool).at[dst].set(True)
        aggr = jnp.where(has[:, None], aggr, 0.0)
        comb = mlp(jnp.concatenate([x, aggr], 1),
                   params['w2a'], params['b2a'], params['w2b'], params['b2b'])
        return jnp.concatenate([comb, x[:, GES:]], 1)

    x2 = conv(conv(x0))
    h = jnp.maximum(x2[:, :GES] @ params['wh1'] + params['bh1'], 0.0)
    out = jnp.tanh(h @ params['wh2'] + params['bh2'])
    nor = jnp.sqrt(jnp.sum(out * out, axis=1, keepdims=True))
    return out / jnp.maximum(1.0, nor)


if __name__ == "__main__":
    key = jax.random.PRNGKey(0)
    kx, ke, kp = jax.random.split(key, 3)

    # small fully-connected directed graph (no self loops): every node has in-edges
    N = 6
    src_l, dst_l = [], []
    for i in range(N):
        for j in range(N):
            if i != j:
                src_l.append(i)
                dst_l.append(j)
    edge_index = jnp.array([src_l, dst_l], dtype=jnp.int32)      # [2, E]
    E = edge_index.shape[1]

    x0 = jax.random.normal(kx, (N, 2 * NT + GES), jnp.float32)   # [6, 24]
    edge_attr = jax.random.normal(ke, (E, 2 * NT), jnp.float32)  # [30, 8]
    params = init_params(kp)

    out = gnn_forward(x0, edge_attr, edge_index, params)
    out = jax.block_until_ready(out)

    ref = gnn_reference(x0, edge_attr, edge_index, params)
    assert out.shape == (N, 2 * NT)
    assert np.all(np.isfinite(np.asarray(out)))
    # Slightly relaxed vs pure-f32 because the fused gather operand (x @ W_emb)
    # is rounded to bf16 once per conv layer (one-hot S itself is exact in bf16).
    np.testing.assert_allclose(np.asarray(out), np.asarray(ref), rtol=1e-2, atol=1e-2)

    print("KERNEL_OK")
</pallas_src>

<mosaic_0001>
module attributes {stable_mosaic.version = 11 : i64} {
  func.func @gnn_kernel(%arg0: memref<16x8xf32, #tpu.memory_space<vmem>>, %arg1: memref<8x8xf32, #tpu.memory_space<vmem>>, %arg2: memref<1x8x128xbf16, #tpu.memory_space<vmem>>, %arg3: memref<1x8x128xf32, #tpu.memory_space<vmem>>, %arg4: memref<1x8x128xf32, #tpu.memory_space<vmem>>, %arg5: memref<1x8xf32, #tpu.memory_space<vmem>>, %arg6: memref<32x16xf32, #tpu.memory_space<vmem>>, %arg7: memref<32x8xf32, #tpu.memory_space<vmem>>, %arg8: memref<32x8xf32, #tpu.memory_space<vmem>>, %arg9: memref<32x1xf32, #tpu.memory_space<vmem>>, %arg10: memref<32x32xf32, #tpu.memory_space<vmem>>, %arg11: memref<32x1xf32, #tpu.memory_space<vmem>>, %arg12: memref<32x16xf32, #tpu.memory_space<vmem>>, %arg13: memref<32x8xf32, #tpu.memory_space<vmem>>, %arg14: memref<32x32xf32, #tpu.memory_space<vmem>>, %arg15: memref<32x1xf32, #tpu.memory_space<vmem>>, %arg16: memref<16x32xf32, #tpu.memory_space<vmem>>, %arg17: memref<16x1xf32, #tpu.memory_space<vmem>>, %arg18: memref<32x16xf32, #tpu.memory_space<vmem>>, %arg19: memref<32x1xf32, #tpu.memory_space<vmem>>, %arg20: memref<8x32xf32, #tpu.memory_space<vmem>>, %arg21: memref<8x1xf32, #tpu.memory_space<vmem>>, %arg22: memref<8x8xf32, #tpu.memory_space<vmem>>) attributes {dimension_semantics = [], scalar_prefetch = 0 : i64, scratch_operands = 0 : i64, tpu.core_type = #tpu.core_type<tc>} {
    %c0 = arith.constant 0 : index
    %c0_0 = arith.constant 0 : index
    %0 = vector.load %arg1[%c0, %c0_0] : memref<8x8xf32, #tpu.memory_space<vmem>>, vector<8x8xf32>
    %c0_1 = arith.constant 0 : index
    %c0_2 = arith.constant 0 : index
    %1 = vector.load %arg5[%c0_1, %c0_2] : memref<1x8xf32, #tpu.memory_space<vmem>>, vector<1x8xf32>
    %cst = arith.constant 5.000000e-01 : f32
    %2 = vector.broadcast %cst : f32 to vector<1x8xf32>
    %3 = arith.cmpf ogt, %1, %2 : vector<1x8xf32>
    %c0_3 = arith.constant 0 : index
    %c0_4 = arith.constant 0 : index
    %4 = vector.load %arg7[%c0_3, %c0_4] : memref<32x8xf32, #tpu.memory_space<vmem>>, vector<32x8xf32>
    %cst_5 = arith.constant dense<0.000000e+00> : vector<32x8xf32>
    %5 = tpu.matmul %4, %0, %cst_5 {dimension_numbers = #tpu.dot_dimension_numbers<[1], [0], [0], [1], [0, 0, 1, 1], [], []>} : vector<32x8xf32>, vector<8x8xf32>, vector<32x8xf32> -> vector<32x8xf32>
    %c0_6 = arith.constant 0 : index
    %c0_7 = arith.constant 0 : index
    %6 = vector.load %arg13[%c0_6, %c0_7] : memref<32x8xf32, #tpu.memory_space<vmem>>, vector<32x8xf32>
    %cst_8 = arith.constant dense<0.000000e+00> : vector<32x8xf32>
    %7 = tpu.matmul %6, %0, %cst_8 {dimension_numbers = #tpu.dot_dimension_numbers<[1], [0], [0], [1], [0, 0, 1, 1], [], []>} : vector<32x8xf32>, vector<8x8xf32>, vector<32x8xf32> -> vector<32x8xf32>
    %c0_9 = arith.constant 0 : index
    %c0_10 = arith.constant 0 : index
    %8 = vector.load %arg15[%c0_9, %c0_10] : memref<32x1xf32, #tpu.memory_space<vmem>>, vector<32x1xf32>
    %9 = vector.broadcast %8 : vector<32x1xf32> to vector<32x8xf32>
    %10 = arith.addf %7, %9 : vector<32x8xf32>
    %c0_11 = arith.constant 0 : index
    %c0_12 = arith.constant 0 : index
    %11 = vector.load %arg8[%c0_11, %c0_12] : memref<32x8xf32, #tpu.memory_space<vmem>>, vector<32x8xf32>
    %c0_13 = arith.constant 0 : index
    %c0_14 = arith.constant 0 : index
    %12 = vector.load %arg9[%c0_13, %c0_14] : memref<32x1xf32, #tpu.memory_space<vmem>>, vector<32x1xf32>
    %c0_15 = arith.constant 0 : index
    %c0_16 = arith.constant 0 : index
    %13 = vector.load %arg10[%c0_15, %c0_16] : memref<32x32xf32, #tpu.memory_space<vmem>>, vector<32x32xf32>
    %c0_17 = arith.constant 0 : index
    %c0_18 = arith.constant 0 : index
    %14 = vector.load %arg11[%c0_17, %c0_18] : memref<32x1xf32, #tpu.memory_space<vmem>>, vector<32x1xf32>
    %c0_19 = arith.constant 0 : index
    %c0_20 = arith.constant 0 : index
    %15 = vector.load %arg0[%c0_19, %c0_20] : memref<16x8xf32, #tpu.memory_space<vmem>>, vector<16x8xf32>
    %c0_21 = arith.constant 0 : index
    %c0_22 = arith.constant 0 : index
    %16 = vector.load %arg6[%c0_21, %c0_22] : memref<32x16xf32, #tpu.memory_space<vmem>>, vector<32x16xf32>
    %cst_23 = arith.constant dense<0.000000e+00> : vector<32x8xf32>
    %17 = tpu.matmul %16, %15, %cst_23 {dimension_numbers = #tpu.dot_dimension_numbers<[1], [0], [0], [1], [0, 0, 1, 1], [], []>} : vector<32x16xf32>, vector<16x8xf32>, vector<32x8xf32> -> vector<32x8xf32>
    %18 = arith.addf %17, %5 : vector<32x8xf32>
    %19 = arith.truncf %18 : vector<32x8xf32> to vector<32x8xbf16>
    %cst_24 = arith.constant -3.000000e+38 : f32
    %20 = vector.broadcast %cst_24 : f32 to vector<32x8xf32>
    %c0_25 = arith.constant 0 : index
    %c0_26 = arith.constant 0 : index
    %c0_27 = arith.constant 0 : index
    %21 = vector.load %arg2[%c0_25, %c0_26, %c0_27] : memref<1x8x128xbf16, #tpu.memory_space<vmem>>, vector<1x8x128xbf16>
    %22 = vector.shape_cast %21 : vector<1x8x128xbf16> to vector<8x128xbf16>
    %cst_28 = arith.constant dense<0.000000e+00> : vector<32x128xf32>
    %23 = tpu.matmul %19, %22, %cst_28 {dimension_numbers = #tpu.dot_dimension_numbers<[1], [0], [0], [1], [0, 0, 1, 1], [], []>} : vector<32x8xbf16>, vector<8x128xbf16>, vector<32x128xf32> -> vector<32x128xf32>
    %c0_29 = arith.constant 0 : index
    %c0_30 = arith.constant 0 : index
    %c0_31 = arith.constant 0 : index
    %24 = vector.load %arg4[%c0_29, %c0_30, %c0_31] : memref<1x8x128xf32, #tpu.memory_space<vmem>>, vector<1x8x128xf32>
    %25 = vector.shape_cast %24 : vector<1x8x128xf32> to vector<8x128xf32>
    %cst_32 = arith.constant dense<0.000000e+00> : vector<32x128xf32>
    %26 = tpu.matmul %11, %25, %cst_32 {dimension_numbers = #tpu.dot_dimension_numbers<[1], [0], [0], [1], [0, 0, 1, 1], [], []>} : vector<32x8xf32>, vector<8x128xf32>, vector<32x128xf32> -> vector<32x128xf32>
    %27 = vector.broadcast %12 : vector<32x1xf32> to vector<32x128xf32>
    %28 = arith.addf %26, %27 : vector<32x128xf32>
    %29 = arith.addf %23, %28 : vector<32x128xf32>
    %cst_33 = arith.constant 0.000000e+00 : f32
    %30 = vector.broadcast %cst_33 : f32 to vector<32x128xf32>
    %31 = arith.maximumf %29, %30 : vector<32x128xf32>
    %cst_34 = arith.constant dense<0.000000e+00> : vector<32x128xf32>
    %32 = tpu.matmul %13, %31, %cst_34 {dimension_numbers = #tpu.dot_dimension_numbers<[1], [0], [0], [1], [0, 0, 1, 1], [], []>} : vector<32x32xf32>, vector<32x128xf32>, vector<32x128xf32> -> vector<32x128xf32>
    %33 = vector.broadcast %14 : vector<32x1xf32> to vector<32x128xf32>
    %34 = arith.addf %32, %33 : vector<32x128xf32>
    %cst_35 = arith.constant 0.000000e+00 : f32
    %35 = vector.broadcast %cst_35 : f32 to vector<32x128xf32>
    %36 = arith.maximumf %34, %35 : vector<32x128xf32>
    %37 = vector.shape_cast %36 : vector<32x128xf32> to vector<32x1x128xf32>
    %c0_36 = arith.constant 0 : index
    %c0_37 = arith.constant 0 : index
    %c0_38 = arith.constant 0 : index
    %38 = vector.load %arg3[%c0_36, %c0_37, %c0_38] : memref<1x8x128xf32, #tpu.memory_space<vmem>>, vector<1x8x128xf32>
    %39 = vector.shape_cast %38 : vector<1x8x128xf32> to vector<8x128xf32>
    %40 = vector.shape_cast %39 : vector<8x128xf32> to vector<1x8x128xf32>
    %41 = vector.broadcast %37 : vector<32x1x128xf32> to vector<32x8x128xf32>
    %42 = vector.broadcast %40 : vector<1x8x128xf32> to vector<32x8x128xf32>
    %43 = arith.addf %41, %42 : vector<32x8x128xf32>
    %cst_39 = arith.constant dense<0xFF800000> : vector<32x8xf32>
    %44 = vector.multi_reduction <maximumf>, %43, %cst_39 [2] : vector<32x8x128xf32> to vector<32x8xf32>
    %45 = arith.maximumf %20, %44 : vector<32x8xf32>
    %cst_40 = arith.constant 0.000000e+00 : f32
    %46 = vector.shape_cast %3 : vector<1x8xi1> to vector<1x8xi1>
    %47 = vector.broadcast %46 : vector<1x8xi1> to vector<32x8xi1>
    %48 = vector.broadcast %cst_40 : f32 to vector<32x8xf32>
    %49 = arith.select %47, %45, %48 : vector<32x8xi1>, vector<32x8xf32>
    %c0_41 = arith.constant 0 : index
    %c0_42 = arith.constant 0 : index
    %50 = vector.load %arg12[%c0_41, %c0_42] : memref<32x16xf32, #tpu.memory_space<vmem>>, vector<32x16xf32>
    %cst_43 = arith.constant dense<0.000000e+00> : vector<32x8xf32>
    %51 = tpu.matmul %50, %15, %cst_43 {dimension_numbers = #tpu.dot_dimension_numbers<[1], [0], [0], [1], [0, 0, 1, 1], [], []>} : vector<32x16xf32>, vector<16x8xf32>, vector<32x8xf32> -> vector<32x8xf32>
    %c0_44 = arith.constant 0 : index
    %c0_45 = arith.constant 0 : index
    %52 = vector.load %arg14[%c0_44, %c0_45] : memref<32x32xf32, #tpu.memory_space<vmem>>, vector<32x32xf32>
    %cst_46 = arith.constant dense<0.000000e+00> : vector<32x8xf32>
    %53 = tpu.matmul %52, %49, %cst_46 {dimension_numbers = #tpu.dot_dimension_numbers<[1], [0], [0], [1], [0, 0, 1, 1], [], []>} : vector<32x32xf32>, vector<32x8xf32>, vector<32x8xf32> -> vector<32x8xf32>
    %54 = arith.addf %51, %53 : vector<32x8xf32>
    %55 = arith.addf %54, %10 : vector<32x8xf32>
    %cst_47 = arith.constant 0.000000e+00 : f32
    %56 = vector.broadcast %cst_47 : f32 to vector<32x8xf32>
    %57 = arith.maximumf %55, %56 : vector<32x8xf32>
    %c0_48 = arith.constant 0 : index
    %c0_49 = arith.constant 0 : index
    %58 = vector.load %arg16[%c0_48, %c0_49] : memref<16x32xf32, #tpu.memory_space<vmem>>, vector<16x32xf32>
    %cst_50 = arith.constant dense<0.000000e+00> : vector<16x8xf32>
    %59 = tpu.matmul %58, %57, %cst_50 {dimension_numbers = #tpu.dot_dimension_numbers<[1], [0], [0], [1], [0, 0, 1, 1], [], []>} : vector<16x32xf32>, vector<32x8xf32>, vector<16x8xf32> -> vector<16x8xf32>
    %c0_51 = arith.constant 0 : index
    %c0_52 = arith.constant 0 : index
    %60 = vector.load %arg17[%c0_51, %c0_52] : memref<16x1xf32, #tpu.memory_space<vmem>>, vector<16x1xf32>
    %61 = vector.broadcast %60 : vector<16x1xf32> to vector<16x8xf32>
    %62 = arith.addf %59, %61 : vector<16x8xf32>
    %cst_53 = arith.constant 0.000000e+00 : f32
    %63 = vector.broadcast %cst_53 : f32 to vector<16x8xf32>
    %64 = arith.maximumf %62, %63 : vector<16x8xf32>
    %c0_54 = arith.constant 0 : index
    %c0_55 = arith.constant 0 : index
    %65 = vector.load %arg6[%c0_54, %c0_55] : memref<32x16xf32, #tpu.memory_space<vmem>>, vector<32x16xf32>
    %cst_56 = arith.constant dense<0.000000e+00> : vector<32x8xf32>
    %66 = tpu.matmul %65, %64, %cst_56 {dimension_numbers = #tpu.dot_dimension_numbers<[1], [0], [0], [1], [0, 0, 1, 1], [], []>} : vector<32x16xf32>, vector<16x8xf32>, vector<32x8xf32> -> vector<32x8xf32>
    %67 = arith.addf %66, %5 : vector<32x8xf32>
    %68 = arith.truncf %67 : vector<32x8xf32> to vector<32x8xbf16>
    %cst_57 = arith.constant -3.000000e+38 : f32
    %69 = vector.broadcast %cst_57 : f32 to vector<32x8xf32>
    %c0_58 = arith.constant 0 : index
    %c0_59 = arith.constant 0 : index
    %c0_60 = arith.constant 0 : index
    %70 = vector.load %arg2[%c0_58, %c0_59, %c0_60] : memref<1x8x128xbf16, #tpu.memory_space<vmem>>, vector<1x8x128xbf16>
    %71 = vector.shape_cast %70 : vector<1x8x128xbf16> to vector<8x128xbf16>
    %cst_61 = arith.constant dense<0.000000e+00> : vector<32x128xf32>
    %72 = tpu.matmul %68, %71, %cst_61 {dimension_numbers = #tpu.dot_dimension_numbers<[1], [0], [0], [1], [0, 0, 1, 1], [], []>} : vector<32x8xbf16>, vector<8x128xbf16>, vector<32x128xf32> -> vector<32x128xf32>
    %c0_62 = arith.constant 0 : index
    %c0_63 = arith.constant 0 : index
    %c0_64 = arith.constant 0 : index
    %73 = vector.load %arg4[%c0_62, %c0_63, %c0_64] : memref<1x8x128xf32, #tpu.memory_space<vmem>>, vector<1x8x128xf32>
    %74 = vector.shape_cast %73 : vector<1x8x128xf32> to vector<8x128xf32>
    %cst_65 = arith.constant dense<0.000000e+00> : vector<32x128xf32>
    %75 = tpu.matmul %11, %74, %cst_65 {dimension_numbers = #tpu.dot_dimension_numbers<[1], [0], [0], [1], [0, 0, 1, 1], [], []>} : vector<32x8xf32>, vector<8x128xf32>, vector<32x128xf32> -> vector<32x128xf32>
    %76 = vector.broadcast %12 : vector<32x1xf32> to vector<32x128xf32>
    %77 = arith.addf %75, %76 : vector<32x128xf32>
    %78 = arith.addf %72, %77 : vector<32x128xf32>
    %cst_66 = arith.constant 0.000000e+00 : f32
    %79 = vector.broadcast %cst_66 : f32 to vector<32x128xf32>
    %80 = arith.maximumf %78, %79 : vector<32x128xf32>
    %cst_67 = arith.constant dense<0.000000e+00> : vector<32x128xf32>
    %81 = tpu.matmul %13, %80, %cst_67 {dimension_numbers = #tpu.dot_dimension_numbers<[1], [0], [0], [1], [0, 0, 1, 1], [], []>} : vector<32x32xf32>, vector<32x128xf32>, vector<32x128xf32> -> vector<32x128xf32>
    %82 = vector.broadcast %14 : vector<32x1xf32> to vector<32x128xf32>
    %83 = arith.addf %81, %82 : vector<32x128xf32>
    %cst_68 = arith.constant 0.000000e+00 : f32
    %84 = vector.broadcast %cst_68 : f32 to vector<32x128xf32>
    %85 = arith.maximumf %83, %84 : vector<32x128xf32>
    %86 = vector.shape_cast %85 : vector<32x128xf32> to vector<32x1x128xf32>
    %c0_69 = arith.constant 0 : index
    %c0_70 = arith.constant 0 : index
    %c0_71 = arith.constant 0 : index
    %87 = vector.load %arg3[%c0_69, %c0_70, %c0_71] : memref<1x8x128xf32, #tpu.memory_space<vmem>>, vector<1x8x128xf32>
    %88 = vector.shape_cast %87 : vector<1x8x128xf32> to vector<8x128xf32>
    %89 = vector.shape_cast %88 : vector<8x128xf32> to vector<1x8x128xf32>
    %90 = vector.broadcast %86 : vector<32x1x128xf32> to vector<32x8x128xf32>
    %91 = vector.broadcast %89 : vector<1x8x128xf32> to vector<32x8x128xf32>
    %92 = arith.addf %90, %91 : vector<32x8x128xf32>
    %cst_72 = arith.constant dense<0xFF800000> : vector<32x8xf32>
    %93 = vector.multi_reduction <maximumf>, %92, %cst_72 [2] : vector<32x8x128xf32> to vector<32x8xf32>
    %94 = arith.maximumf %69, %93 : vector<32x8xf32>
    %cst_73 = arith.constant 0.000000e+00 : f32
    %95 = vector.shape_cast %3 : vector<1x8xi1> to vector<1x8xi1>
    %96 = vector.broadcast %95 : vector<1x8xi1> to vector<32x8xi1>
    %97 = vector.broadcast %cst_73 : f32 to vector<32x8xf32>
    %98 = arith.select %96, %94, %97 : vector<32x8xi1>, vector<32x8xf32>
    %c0_74 = arith.constant 0 : index
    %c0_75 = arith.constant 0 : index
    %99 = vector.load %arg12[%c0_74, %c0_75] : memref<32x16xf32, #tpu.memory_space<vmem>>, vector<32x16xf32>
    %cst_76 = arith.constant dense<0.000000e+00> : vector<32x8xf32>
    %100 = tpu.matmul %99, %64, %cst_76 {dimension_numbers = #tpu.dot_dimension_numbers<[1], [0], [0], [1], [0, 0, 1, 1], [], []>} : vector<32x16xf32>, vector<16x8xf32>, vector<32x8xf32> -> vector<32x8xf32>
    %c0_77 = arith.constant 0 : index
    %c0_78 = arith.constant 0 : index
    %101 = vector.load %arg14[%c0_77, %c0_78] : memref<32x32xf32, #tpu.memory_space<vmem>>, vector<32x32xf32>
    %cst_79 = arith.constant dense<0.000000e+00> : vector<32x8xf32>
    %102 = tpu.matmul %101, %98, %cst_79 {dimension_numbers = #tpu.dot_dimension_numbers<[1], [0], [0], [1], [0, 0, 1, 1], [], []>} : vector<32x32xf32>, vector<32x8xf32>, vector<32x8xf32> -> vector<32x8xf32>
    %103 = arith.addf %100, %102 : vector<32x8xf32>
    %104 = arith.addf %103, %10 : vector<32x8xf32>
    %cst_80 = arith.constant 0.000000e+00 : f32
    %105 = vector.broadcast %cst_80 : f32 to vector<32x8xf32>
    %106 = arith.maximumf %104, %105 : vector<32x8xf32>
    %c0_81 = arith.constant 0 : index
    %c0_82 = arith.constant 0 : index
    %107 = vector.load %arg16[%c0_81, %c0_82] : memref<16x32xf32, #tpu.memory_space<vmem>>, vector<16x32xf32>
    %cst_83 = arith.constant dense<0.000000e+00> : vector<16x8xf32>
    %108 = tpu.matmul %107, %106, %cst_83 {dimension_numbers = #tpu.dot_dimension_numbers<[1], [0], [0], [1], [0, 0, 1, 1], [], []>} : vector<16x32xf32>, vector<32x8xf32>, vector<16x8xf32> -> vector<16x8xf32>
    %c0_84 = arith.constant 0 : index
    %c0_85 = arith.constant 0 : index
    %109 = vector.load %arg17[%c0_84, %c0_85] : memref<16x1xf32, #tpu.memory_space<vmem>>, vector<16x1xf32>
    %110 = vector.broadcast %109 : vector<16x1xf32> to vector<16x8xf32>
    %111 = arith.addf %108, %110 : vector<16x8xf32>
    %cst_86 = arith.constant 0.000000e+00 : f32
    %112 = vector.broadcast %cst_86 : f32 to vector<16x8xf32>
    %113 = arith.maximumf %111, %112 : vector<16x8xf32>
    %c0_87 = arith.constant 0 : index
    %c0_88 = arith.constant 0 : index
    %114 = vector.load %arg18[%c0_87, %c0_88] : memref<32x16xf32, #tpu.memory_space<vmem>>, vector<32x16xf32>
    %cst_89 = arith.constant dense<0.000000e+00> : vector<32x8xf32>
    %115 = tpu.matmul %114, %113, %cst_89 {dimension_numbers = #tpu.dot_dimension_numbers<[1], [0], [0], [1], [0, 0, 1, 1], [], []>} : vector<32x16xf32>, vector<16x8xf32>, vector<32x8xf32> -> vector<32x8xf32>
    %c0_90 = arith.constant 0 : index
    %c0_91 = arith.constant 0 : index
    %116 = vector.load %arg19[%c0_90, %c0_91] : memref<32x1xf32, #tpu.memory_space<vmem>>, vector<32x1xf32>
    %117 = vector.broadcast %116 : vector<32x1xf32> to vector<32x8xf32>
    %118 = arith.addf %115, %117 : vector<32x8xf32>
    %cst_92 = arith.constant 0.000000e+00 : f32
    %119 = vector.broadcast %cst_92 : f32 to vector<32x8xf32>
    %120 = arith.maximumf %118, %119 : vector<32x8xf32>
    %c0_93 = arith.constant 0 : index
    %c0_94 = arith.constant 0 : index
    %121 = vector.load %arg20[%c0_93, %c0_94] : memref<8x32xf32, #tpu.memory_space<vmem>>, vector<8x32xf32>
    %cst_95 = arith.constant dense<0.000000e+00> : vector<8x8xf32>
    %122 = tpu.matmul %121, %120, %cst_95 {dimension_numbers = #tpu.dot_dimension_numbers<[1], [0], [0], [1], [0, 0, 1, 1], [], []>} : vector<8x32xf32>, vector<32x8xf32>, vector<8x8xf32> -> vector<8x8xf32>
    %c0_96 = arith.constant 0 : index
    %c0_97 = arith.constant 0 : index
    %123 = vector.load %arg21[%c0_96, %c0_97] : memref<8x1xf32, #tpu.memory_space<vmem>>, vector<8x1xf32>
    %124 = vector.broadcast %123 : vector<8x1xf32> to vector<8x8xf32>
    %125 = arith.addf %122, %124 : vector<8x8xf32>
    %126 = math.tanh %125 : vector<8x8xf32>
    %127 = arith.mulf %126, %126 : vector<8x8xf32>
    %cst_98 = arith.constant dense<0.000000e+00> : vector<8xf32>
    %128 = vector.multi_reduction <add>, %127, %cst_98 [0] : vector<8x8xf32> to vector<8xf32>
    %129 = vector.shape_cast %128 : vector<8xf32> to vector<1x8xf32>
    %130 = math.sqrt %129 : vector<1x8xf32>
    %cst_99 = arith.constant 1.000000e+00 : f32
    %131 = vector.broadcast %cst_99 : f32 to vector<1x8xf32>
    %132 = arith.maximumf %131, %130 : vector<1x8xf32>
    %133 = vector.broadcast %132 : vector<1x8xf32> to vector<8x8xf32>
    %134 = arith.divf %126, %133 : vector<8x8xf32>
    %c0_100 = arith.constant 0 : index
    %c0_101 = arith.constant 0 : index
    %135 = vector.load %arg22[%c0_100, %c0_101] : memref<8x8xf32, #tpu.memory_space<vmem>>, vector<8x8xf32>
    tpu.vector_store %arg22[%c0_100, %c0_101], %134 {strides = array<i32>} : memref<8x8xf32, #tpu.memory_space<vmem>>, vector<8x8xf32>,
    return
  }
}

</mosaic_0001>

<llo_original>
// kernel: tpu_custom_call.1
$region0: #{tpu_custom_call.1}
  #allocation0 [shape = 'u32[]', space=smem, size = 0x4, offset = 0x4, fixed_abs, tag = 'smem constant byte address 0x4 - core index']
  #allocation1 [shape = 'u32[144,128]{1,0:T(1,128)}', space=vmem, size = 0x12000, scoped, tag = 'internal scratch']
  %s0 = inlined_call_operand.vmem [shape: f32[16,8], index: 0, kind: input, shape index: {}]
  %s1 = inlined_call_operand.vmem [shape: f32[8,8], index: 1, kind: input, shape index: {}]
  %s2 = inlined_call_operand.vmem [shape: bf16[1,8,128], index: 2, kind: input, shape index: {}]
  %s3 = inlined_call_operand.vmem [shape: f32[1,8,128], index: 3, kind: input, shape index: {}]
  %s4 = inlined_call_operand.vmem [shape: f32[1,8,128], index: 4, kind: input, shape index: {}]
  %s5 = inlined_call_operand.vmem [shape: f32[1,8], index: 5, kind: input, shape index: {}]
  %s6 = inlined_call_operand.vmem [shape: f32[32,16], index: 6, kind: input, shape index: {}]
  %s7 = inlined_call_operand.vmem [shape: f32[32,8], index: 7, kind: input, shape index: {}]
  %s8 = inlined_call_operand.vmem [shape: f32[32,8], index: 8, kind: input, shape index: {}]
  %s9 = inlined_call_operand.vmem [shape: f32[32,1], index: 9, kind: input, shape index: {}]
  %s10 = inlined_call_operand.vmem [shape: f32[32,32], index: 10, kind: input, shape index: {}]
  %s11 = inlined_call_operand.vmem [shape: f32[32,1], index: 11, kind: input, shape index: {}]
  %s12 = inlined_call_operand.vmem [shape: f32[32,16], index: 12, kind: input, shape index: {}]
  %s13 = inlined_call_operand.vmem [shape: f32[32,8], index: 13, kind: input, shape index: {}]
  %s14 = inlined_call_operand.vmem [shape: f32[32,32], index: 14, kind: input, shape index: {}]
  %s15 = inlined_call_operand.vmem [shape: f32[32,1], index: 15, kind: input, shape index: {}]
  %s16 = inlined_call_operand.vmem [shape: f32[16,32], index: 16, kind: input, shape index: {}]
  %s17 = inlined_call_operand.vmem [shape: f32[16,1], index: 17, kind: input, shape index: {}]
  %s18 = inlined_call_operand.vmem [shape: f32[32,16], index: 18, kind: input, shape index: {}]
  %s19 = inlined_call_operand.vmem [shape: f32[32,1], index: 19, kind: input, shape index: {}]
  %s20 = inlined_call_operand.vmem [shape: f32[8,32], index: 20, kind: input, shape index: {}]
  %s21 = inlined_call_operand.vmem [shape: f32[8,1], index: 21, kind: input, shape index: {}]
  %s22 = inlined_call_operand.hbm [shape: f32[8,8], index: 22, kind: output, shape index: {}]
  %s23 = sld [smem:[#allocation0]]
  $region98: #{tpu_custom_call.1} parent=0
    _
  %s25 = ssub.s32 1, %s23
  %s26 = scalar_select 0, %s25, %s23
  $region1: #{tpu_custom_call.1} parent=0
    #allocation2 [shape = 'u8[4096]{0}', space=vmem, size = 0x1000, scoped, tag = 'output window, operand 0, single buffered']
    #allocation3 [shape = 's32[1]{0}', space=sflag, size = 0x4, scoped, tag = 'scoped memory for tpu_custom_call.1']
    %27 = vsyncpa [#allocation3], 0
    // Predicated region
    $region2: #{tpu_custom_call.1} parent=1 // pred_check
      _
    $region3: #{tpu_custom_call.1} parent=1 // pred_check_branch
      %29 = sbr.rel (0) target = $region5
    $region4: #{tpu_custom_call.1} parent=1 // pred_region
      _
    $region5: #{tpu_custom_call.1} parent=1 // pred_fallthru
      _
    // Predicated region
    $region6: #{tpu_custom_call.1} parent=1 // pred_check
      _
    $region7: #{tpu_custom_call.1} parent=1 // pred_check_branch
      %31 = sbr.rel (0) target = $region9
    $region8: #{tpu_custom_call.1} parent=1 // pred_region
      _
    $region9: #{tpu_custom_call.1} parent=1 // pred_fallthru
      _
    // Predicated region
    $region10: #{tpu_custom_call.1} parent=1 // pred_check
      _
    $region11: #{tpu_custom_call.1} parent=1 // pred_check_branch
      %33 = sbr.rel (0) target = $region13
    $region12: #{tpu_custom_call.1} parent=1 // pred_region
      _
    $region13: #{tpu_custom_call.1} parent=1 // pred_fallthru
      _
    // Predicated region
    $region14: #{tpu_custom_call.1} parent=1 // pred_check
      _
    $region15: #{tpu_custom_call.1} parent=1 // pred_check_branch
      %35 = sbr.rel (0) target = $region17
    $region16: #{tpu_custom_call.1} parent=1 // pred_region
      _
    $region17: #{tpu_custom_call.1} parent=1 // pred_fallthru
      _
    // Predicated region
    $region18: #{tpu_custom_call.1} parent=1 // pred_check
      _
    $region19: #{tpu_custom_call.1} parent=1 // pred_check_branch
      %37 = sbr.rel (0) target = $region21
    $region20: #{tpu_custom_call.1} parent=1 // pred_region
      _
    $region21: #{tpu_custom_call.1} parent=1 // pred_fallthru
      _
    // Predicated region
    $region22: #{tpu_custom_call.1} parent=1 // pred_check
      _
    $region23: #{tpu_custom_call.1} parent=1 // pred_check_branch
      %39 = sbr.rel (0) target = $region25
    $region24: #{tpu_custom_call.1} parent=1 // pred_region
      _
    $region25: #{tpu_custom_call.1} parent=1 // pred_fallthru
      _
    // Predicated region
    $region26: #{tpu_custom_call.1} parent=1 // pred_check
      _
    $region27: #{tpu_custom_call.1} parent=1 // pred_check_branch
      %41 = sbr.rel (0) target = $region29
    $region28: #{tpu_custom_call.1} parent=1 // pred_region
      _
    $region29: #{tpu_custom_call.1} parent=1 // pred_fallthru
      _
    // Predicated region
    $region30: #{tpu_custom_call.1} parent=1 // pred_check
      _
    $region31: #{tpu_custom_call.1} parent=1 // pred_check_branch
      %43 = sbr.rel (0) target = $region33
    $region32: #{tpu_custom_call.1} parent=1 // pred_region
      _
    $region33: #{tpu_custom_call.1} parent=1 // pred_fallthru
      _
    // Predicated region
    $region34: #{tpu_custom_call.1} parent=1 // pred_check
      _
    $region35: #{tpu_custom_call.1} parent=1 // pred_check_branch
      %45 = sbr.rel (0) target = $region37
    $region36: #{tpu_custom_call.1} parent=1 // pred_region
      _
    $region37: #{tpu_custom_call.1} parent=1 // pred_fallthru
      _
    // Predicated region
    $region38: #{tpu_custom_call.1} parent=1 // pred_check
      _
    $region39: #{tpu_custom_call.1} parent=1 // pred_check_branch
      %47 = sbr.rel (0) target = $region41
    $region40: #{tpu_custom_call.1} parent=1 // pred_region
      _
    $region41: #{tpu_custom_call.1} parent=1 // pred_fallthru
      _
    // Predicated region
    $region42: #{tpu_custom_call.1} parent=1 // pred_check
      _
    $region43: #{tpu_custom_call.1} parent=1 // pred_check_branch
      %49 = sbr.rel (0) target = $region45
    $region44: #{tpu_custom_call.1} parent=1 // pred_region
      _
    $region45: #{tpu_custom_call.1} parent=1 // pred_fallthru
      _
    // Predicated region
    $region46: #{tpu_custom_call.1} parent=1 // pred_check
      _
    $region47: #{tpu_custom_call.1} parent=1 // pred_check_branch
      %51 = sbr.rel (0) target = $region49
    $region48: #{tpu_custom_call.1} parent=1 // pred_region
      _
    $region49: #{tpu_custom_call.1} parent=1 // pred_fallthru
      _
    // Predicated region
    $region50: #{tpu_custom_call.1} parent=1 // pred_check
      _
    $region51: #{tpu_custom_call.1} parent=1 // pred_check_branch
      %53 = sbr.rel (0) target = $region53
    $region52: #{tpu_custom_call.1} parent=1 // pred_region
      _
    $region53: #{tpu_custom_call.1} parent=1 // pred_fallthru
      _
    // Predicated region
    $region54: #{tpu_custom_call.1} parent=1 // pred_check
      _
    $region55: #{tpu_custom_call.1} parent=1 // pred_check_branch
      %55 = sbr.rel (0) target = $region57
    $region56: #{tpu_custom_call.1} parent=1 // pred_region
      _
    $region57: #{tpu_custom_call.1} parent=1 // pred_fallthru
      _
    // Predicated region
    $region58: #{tpu_custom_call.1} parent=1 // pred_check
      _
    $region59: #{tpu_custom_call.1} parent=1 // pred_check_branch
      %57 = sbr.rel (0) target = $region61
    $region60: #{tpu_custom_call.1} parent=1 // pred_region
      _
    $region61: #{tpu_custom_call.1} parent=1 // pred_fallthru
      _
    // Predicated region
    $region62: #{tpu_custom_call.1} parent=1 // pred_check
      _
    $region63: #{tpu_custom_call.1} parent=1 // pred_check_branch
      %59 = sbr.rel (0) target = $region65
    $region64: #{tpu_custom_call.1} parent=1 // pred_region
      _
    $region65: #{tpu_custom_call.1} parent=1 // pred_fallthru
      _
    // Predicated region
    $region66: #{tpu_custom_call.1} parent=1 // pred_check
      _
    $region67: #{tpu_custom_call.1} parent=1 // pred_check_branch
      %61 = sbr.rel (0) target = $region69
    $region68: #{tpu_custom_call.1} parent=1 // pred_region
      _
    $region69: #{tpu_custom_call.1} parent=1 // pred_fallthru
      _
    // Predicated region
    $region70: #{tpu_custom_call.1} parent=1 // pred_check
      _
    $region71: #{tpu_custom_call.1} parent=1 // pred_check_branch
      %63 = sbr.rel (0) target = $region73
    $region72: #{tpu_custom_call.1} parent=1 // pred_region
      _
    $region73: #{tpu_custom_call.1} parent=1 // pred_fallthru
      _
    // Predicated region
    $region74: #{tpu_custom_call.1} parent=1 // pred_check
      _
    $region75: #{tpu_custom_call.1} parent=1 // pred_check_branch
      %65 = sbr.rel (0) target = $region77
    $region76: #{tpu_custom_call.1} parent=1 // pred_region
      _
    $region77: #{tpu_custom_call.1} parent=1 // pred_fallthru
      _
    // Predicated region
    $region78: #{tpu_custom_call.1} parent=1 // pred_check
      _
    $region79: #{tpu_custom_call.1} parent=1 // pred_check_branch
      %67 = sbr.rel (0) target = $region81
    $region80: #{tpu_custom_call.1} parent=1 // pred_region
      _
    $region81: #{tpu_custom_call.1} parent=1 // pred_fallthru
      _
    // Predicated region
    $region82: #{tpu_custom_call.1} parent=1 // pred_check
      _
    $region83: #{tpu_custom_call.1} parent=1 // pred_check_branch
      %69 = sbr.rel (0) target = $region85
    $region84: #{tpu_custom_call.1} parent=1 // pred_region
      _
    $region85: #{tpu_custom_call.1} parent=1 // pred_fallthru
      _
    // Predicated region
    $region86: #{tpu_custom_call.1} parent=1 // pred_check
      _
    $region87: #{tpu_custom_call.1} parent=1 // pred_check_branch
      %71 = sbr.rel (0) target = $region89
    $region88: #{tpu_custom_call.1} parent=1 // pred_region
      _
    $region89: #{tpu_custom_call.1} parent=1 // pred_fallthru
      _
    %v73 = vld [vmem:[%s1] sm:$0xff]
    %v74 = vld [vmem:[%s5] sm:$0x1]
    %vm75 = vcmp.gt.f32.partialorder %v74, 0.5
    %v76 = vld [vmem:[%s7] sm:$0xff]
    %v77 = vld [vmem:[%s7 + $0x8] sm:$0xff]
    %v78 = vld [vmem:[%s7 + $0x10] sm:$0xff]
    %v79 = vld [vmem:[%s7 + $0x18] sm:$0xff]
    %vm80 = vcmask 64512
    %v82 = vsel %vm80, %v76, 0
    %v85 = vsel %vm80, %v77, 0
    %v88 = vsel %vm80, %v78, 0
    %v91 = vsel %vm80, %v79, 0
    %93 = vmatprep.subr.mxu0 0.0
    %94 = vmatpush1.msra.mxu0 %v73
    %95 = vmatprep.subr.mxu0 0.0
    %96 = vmatpush1.msra.mxu0 0.0
    %97 = vmatprep.subr.mxu0 0.0
    %98 = vmatpush1.msra.mxu0 0.0
    %99 = vmatprep.subr.mxu0 0.0
    %100 = vmatpush1.msra.mxu0 0.0
    %101 = vmatprep.subr.mxu0 0.0
    %102 = vmatpush1.msra.mxu0 0.0
    %103 = vmatprep.subr.mxu0 0.0
    %104 = vmatpush1.msra.mxu0 0.0
    %105 = vmatprep.subr.mxu0 0.0
    %106 = vmatpush1.msra.mxu0 0.0
    %107 = vmatprep.subr.mxu0 0.0
    %108 = vmatpush1.msra.mxu0 0.0
    %109 = vmatprep.subr.mxu0 0.0
    %110 = vmatpush1.msra.mxu0 0.0
    %111 = vmatprep.subr.mxu0 0.0
    %112 = vmatpush1.msra.mxu0 0.0
    %113 = vmatprep.subr.mxu0 0.0
    %114 = vmatpush1.msra.mxu0 0.0
    %115 = vmatprep.subr.mxu0 0.0
    %116 = vmatpush1.msra.mxu0 0.0
    %117 = vmatprep.subr.mxu0 0.0
    %118 = vmatpush1.msra.mxu0 0.0
    %119 = vmatprep.subr.mxu0 0.0
    %120 = vmatpush1.msra.mxu0 0.0
    %121 = vmatprep.subr.mxu0 0.0
    %122 = vmatpush1.msra.mxu0 0.0
    %123 = vmatprep.subr.mxu0 0.0
    %124 = vmatpush1.msra.mxu0 0.0
    %125 = vmatprep.subr.mxu0 0.0
    %126 = vmatpush1.msra.mxu0 0.0
    %127 = vmatprep.subr.mxu0 0.0
    %128 = vmatpush1.msra.mxu0 0.0
    %129 = vmatprep.subr.mxu0 0.0
    %130 = vmatpush1.msra.mxu0 0.0
    %131 = vmatprep.subr.mxu0 0.0
    %132 = vmatpush1.msra.mxu0 0.0
    %133 = vmatprep.subr.mxu0 0.0
    %134 = vmatpush1.msra.mxu0 0.0
    %135 = vmatprep.subr.mxu0 0.0
    %136 = vmatpush1.msra.mxu0 0.0
    %137 = vmatprep.subr.mxu0 0.0
    %138 = vmatpush1.msra.mxu0 0.0
    %139 = vmatprep.subr.mxu0 0.0
    %140 = vmatpush1.msra.mxu0 0.0
    %141 = vmatprep.subr.mxu0 0.0
    %142 = vmatpush1.msra.mxu0 0.0
    %143 = vmatprep.subr.mxu0 0.0
    %144 = vmatpush1.msra.mxu0 0.0
    %145 = vmatprep.subr.mxu0 0.0
    %146 = vmatpush1.msra.mxu0 0.0
    %147 = vmatprep.subr.mxu0 0.0
    %148 = vmatpush1.msra.mxu0 0.0
    %149 = vmatprep.subr.mxu0 0.0
    %150 = vmatpush1.msra.mxu0 0.0
    %151 = vmatprep.subr.mxu0 0.0
    %152 = vmatpush1.msra.mxu0 0.0
    %153 = vmatprep.subr.mxu0 0.0
    %154 = vmatpush1.msra.mxu0 0.0
    %155 = vmatprep.subr.mxu0 0.0
    %156 = vmatpush1.msra.mxu0 0.0
    %157 = vmatprep.mubr.f32.mxu0 0.0
    %158 = vmatmul.mubr.f32.gmra.mrb[0].mxu0 %v82
    %v159 = vpop.f32.mrb[0].mxu0
    %v160 = vadd.f32 0.0, %v159
    %v161 = vpop.f32.mrb[0].mxu0
    %162 = vmatprep.mubr.f32.mxu0 0.0
    %163 = vmatmul.mubr.f32.gmra.mrb[0].mxu0 %v85
    %v164 = vpop.f32.mrb[0].mxu0
    %v165 = vadd.f32 0.0, %v164
    %v166 = vpop.f32.mrb[0].mxu0
    %167 = vmatprep.mubr.f32.mxu0 0.0
    %168 = vmatmul.mubr.f32.gmra.mrb[0].mxu0 %v88
    %v169 = vpop.f32.mrb[0].mxu0
    %v170 = vadd.f32 0.0, %v169
    %v171 = vpop.f32.mrb[0].mxu0
    %172 = vmatprep.mubr.f32.mxu0 0.0
    %173 = vmatmul.mubr.f32.gmra.mrb[0].mxu0 %v91
    %v174 = vpop.f32.mrb[0].mxu0
    %v175 = vadd.f32 0.0, %v174
    %v176 = vpop.f32.mrb[0].mxu0
    %177 = vdwg.mxu0
    %v178 = vld [vmem:[%s13] sm:$0xff]
    %v179 = vld [vmem:[%s13 + $0x8] sm:$0xff]
    %v180 = vld [vmem:[%s13 + $0x10] sm:$0xff]
    %v181 = vld [vmem:[%s13 + $0x18] sm:$0xff]
    %v182 = vld [vmem:[%s15] sm:$0xff]
    %v183 = vld [vmem:[%s15 + $0x8] sm:$0xff]
    %v184 = vld [vmem:[%s15 + $0x10] sm:$0xff]
    %v185 = vld [vmem:[%s15 + $0x18] sm:$0xff]
    %187 = vset.pattern.permute.xlu0 0
    %188 = vperm.xlu0 %187, %v182
    %v189 = vpop.permute.xlu0 %188
    %192 = vset.pattern.permute.xlu0 0
    %193 = vperm.xlu0 %192, %v183
    %v194 = vpop.permute.xlu0 %193
    %197 = vset.pattern.permute.xlu0 0
    %198 = vperm.xlu0 %197, %v184
    %v199 = vpop.permute.xlu0 %198
    %202 = vset.pattern.permute.xlu0 0
    %203 = vperm.xlu0 %202, %v185
    %v204 = vpop.permute.xlu0 %203
    %v207 = vsel %vm80, %v178, 0
    %v210 = vsel %vm80, %v179, 0
    %v213 = vsel %vm80, %v180, 0
    %v216 = vsel %vm80, %v181, 0
    %218 = vmatprep.subr.mxu0 0.0
    %219 = vmatpush1.msra.mxu0 %v73
    %220 = vmatprep.subr.mxu0 0.0
    %221 = vmatpush1.msra.mxu0 0.0
    %222 = vmatprep.subr.mxu0 0.0
    %223 = vmatpush1.msra.mxu0 0.0
    %224 = vmatprep.subr.mxu0 0.0
    %225 = vmatpush1.msra.mxu0 0.0
    %226 = vmatprep.subr.mxu0 0.0
    %227 = vmatpush1.msra.mxu0 0.0
    %228 = vmatprep.subr.mxu0 0.0
    %229 = vmatpush1.msra.mxu0 0.0
    %230 = vmatprep.subr.mxu0 0.0
    %231 = vmatpush1.msra.mxu0 0.0
    %232 = vmatprep.subr.mxu0 0.0
    %233 = vmatpush1.msra.mxu0 0.0
    %234 = vmatprep.subr.mxu0 0.0
    %235 = vmatpush1.msra.mxu0 0.0
    %236 = vmatprep.subr.mxu0 0.0
    %237 = vmatpush1.msra.mxu0 0.0
    %238 = vmatprep.subr.mxu0 0.0
    %239 = vmatpush1.msra.mxu0 0.0
    %240 = vmatprep.subr.mxu0 0.0
    %241 = vmatpush1.msra.mxu0 0.0
    %242 = vmatprep.subr.mxu0 0.0
    %243 = vmatpush1.msra.mxu0 0.0
    %244 = vmatprep.subr.mxu0 0.0
    %245 = vmatpush1.msra.mxu0 0.0
    %246 = vmatprep.subr.mxu0 0.0
    %247 = vmatpush1.msra.mxu0 0.0
    %248 = vmatprep.subr.mxu0 0.0
    %249 = vmatpush1.msra.mxu0 0.0
    %250 = vmatprep.subr.mxu0 0.0
    %251 = vmatpush1.msra.mxu0 0.0
    %252 = vmatprep.subr.mxu0 0.0
    %253 = vmatpush1.msra.mxu0 0.0
    %254 = vmatprep.subr.mxu0 0.0
    %255 = vmatpush1.msra.mxu0 0.0
    %256 = vmatprep.subr.mxu0 0.0
    %257 = vmatpush1.msra.mxu0 0.0
    %258 = vmatprep.subr.mxu0 0.0
    %259 = vmatpush1.msra.mxu0 0.0
    %260 = vmatprep.subr.mxu0 0.0
    %261 = vmatpush1.msra.mxu0 0.0
    %262 = vmatprep.subr.mxu0 0.0
    %263 = vmatpush1.msra.mxu0 0.0
    %264 = vmatprep.subr.mxu0 0.0
    %265 = vmatpush1.msra.mxu0 0.0
    %266 = vmatprep.subr.mxu0 0.0
    %267 = vmatpush1.msra.mxu0 0.0
    %268 = vmatprep.subr.mxu0 0.0
    %269 = vmatpush1.msra.mxu0 0.0
    %270 = vmatprep.subr.mxu0 0.0
    %271 = vmatpush1.msra.mxu0 0.0
    %272 = vmatprep.subr.mxu0 0.0
    %273 = vmatpush1.msra.mxu0 0.0
    %274 = vmatprep.subr.mxu0 0.0
    %275 = vmatpush1.msra.mxu0 0.0
    %276 = vmatprep.subr.mxu0 0.0
    %277 = vmatpush1.msra.mxu0 0.0
    %278 = vmatprep.subr.mxu0 0.0
    %279 = vmatpush1.msra.mxu0 0.0
    %280 = vmatprep.subr.mxu0 0.0
    %281 = vmatpush1.msra.mxu0 0.0
    %282 = vmatprep.mubr.f32.mxu0 0.0
    %283 = vmatmul.mubr.f32.gmra.mrb[0].mxu0 %v207
    %v284 = vpop.f32.mrb[0].mxu0
    %v285 = vadd.f32 %v189, %v284
    %v286 = vpop.f32.mrb[0].mxu0
    %287 = vmatprep.mubr.f32.mxu0 0.0
    %288 = vmatmul.mubr.f32.gmra.mrb[0].mxu0 %v210
    %v289 = vpop.f32.mrb[0].mxu0
    %v290 = vadd.f32 %v194, %v289
    %v291 = vpop.f32.mrb[0].mxu0
    %292 = vmatprep.mubr.f32.mxu0 0.0
    %293 = vmatmul.mubr.f32.gmra.mrb[0].mxu0 %v213
    %v294 = vpop.f32.mrb[0].mxu0
    %v295 = vadd.f32 %v199, %v294
    %v296 = vpop.f32.mrb[0].mxu0
    %297 = vmatprep.mubr.f32.mxu0 0.0
    %298 = vmatmul.mubr.f32.gmra.mrb[0].mxu0 %v216
    %v299 = vpop.f32.mrb[0].mxu0
    %v300 = vadd.f32 %v204, %v299
    %v301 = vpop.f32.mrb[0].mxu0
    %302 = vdwg.mxu0
    %v303 = vld [vmem:[%s8] sm:$0xff]
    %v304 = vld [vmem:[%s8 + $0x8] sm:$0xff]
    %v305 = vld [vmem:[%s8 + $0x10] sm:$0xff]
    %v306 = vld [vmem:[%s8 + $0x18] sm:$0xff]
    %v307 = vld [vmem:[%s9] sm:$0xff]
    %v308 = vld [vmem:[%s9 + $0x8] sm:$0xff]
    %v309 = vld [vmem:[%s9 + $0x10] sm:$0xff]
    %v310 = vld [vmem:[%s9 + $0x18] sm:$0xff]
    %v311 = vld [vmem:[%s10] sm:$0xff]
    %v312 = vld [vmem:[%s10 + $0x8] sm:$0xff]
    %v313 = vld [vmem:[%s10 + $0x10] sm:$0xff]
    %v314 = vld [vmem:[%s10 + $0x18] sm:$0xff]
    %v315 = vld [vmem:[%s11] sm:$0xff]
    %v316 = vld [vmem:[%s11 + $0x8] sm:$0xff]
    %v317 = vld [vmem:[%s11 + $0x10] sm:$0xff]
    %v318 = vld [vmem:[%s11 + $0x18] sm:$0xff]
    %v319 = vld [vmem:[%s0] sm:$0xff]
    %v320 = vld [vmem:[%s0 + $0x8] sm:$0xff]
    %v321 = vld [vmem:[%s6] sm:$0xff]
    %v322 = vld [vmem:[%s6 + $0x8] sm:$0xff]
    %v323 = vld [vmem:[%s6 + $0x10] sm:$0xff]
    %v324 = vld [vmem:[%s6 + $0x18] sm:$0xff]
    %vm325 = vcmask 130048
    %v327 = vsel %vm325, %v321, 0
    %v330 = vsel %vm325, %v322, 0
    %v333 = vsel %vm325, %v323, 0
    %v336 = vsel %vm325, %v324, 0
    %338 = vmatprep.subr.mxu0 0.0
    %339 = vmatpush1.msra.mxu0 %v319
    %340 = vmatprep.subr.mxu0 0.0
    %341 = vmatpush1.msra.mxu0 %v320
    %342 = vmatprep.subr.mxu0 0.0
    %343 = vmatpush1.msra.mxu0 0.0
    %344 = vmatprep.subr.mxu0 0.0
    %345 = vmatpush1.msra.mxu0 0.0
    %346 = vmatprep.subr.mxu0 0.0
    %347 = vmatpush1.msra.mxu0 0.0
    %348 = vmatprep.subr.mxu0 0.0
    %349 = vmatpush1.msra.mxu0 0.0
    %350 = vmatprep.subr.mxu0 0.0
    %351 = vmatpush1.msra.mxu0 0.0
    %352 = vmatprep.subr.mxu0 0.0
    %353 = vmatpush1.msra.mxu0 0.0
    %354 = vmatprep.subr.mxu0 0.0
    %355 = vmatpush1.msra.mxu0 0.0
    %356 = vmatprep.subr.mxu0 0.0
    %357 = vmatpush1.msra.mxu0 0.0
    %358 = vmatprep.subr.mxu0 0.0
    %359 = vmatpush1.msra.mxu0 0.0
    %360 = vmatprep.subr.mxu0 0.0
    %361 = vmatpush1.msra.mxu0 0.0
    %362 = vmatprep.subr.mxu0 0.0
    %363 = vmatpush1.msra.mxu0 0.0
    %364 = vmatprep.subr.mxu0 0.0
    %365 = vmatpush1.msra.mxu0 0.0
    %366 = vmatprep.subr.mxu0 0.0
    %367 = vmatpush1.msra.mxu0 0.0
    %368 = vmatprep.subr.mxu0 0.0
    %369 = vmatpush1.msra.mxu0 0.0
    %370 = vmatprep.subr.mxu0 0.0
    %371 = vmatpush1.msra.mxu0 0.0
    %372 = vmatprep.subr.mxu0 0.0
    %373 = vmatpush1.msra.mxu0 0.0
    %374 = vmatprep.subr.mxu0 0.0
    %375 = vmatpush1.msra.mxu0 0.0
    %376 = vmatprep.subr.mxu0 0.0
    %377 = vmatpush1.msra.mxu0 0.0
    %378 = vmatprep.subr.mxu0 0.0
    %379 = vmatpush1.msra.mxu0 0.0
    %380 = vmatprep.subr.mxu0 0.0
    %381 = vmatpush1.msra.mxu0 0.0
    %382 = vmatprep.subr.mxu0 0.0
    %383 = vmatpush1.msra.mxu0 0.0
    %384 = vmatprep.subr.mxu0 0.0
    %385 = vmatpush1.msra.mxu0 0.0
    %386 = vmatprep.subr.mxu0 0.0
    %387 = vmatpush1.msra.mxu0 0.0
    %388 = vmatprep.subr.mxu0 0.0
    %389 = vmatpush1.msra.mxu0 0.0
    %390 = vmatprep.subr.mxu0 0.0
    %391 = vmatpush1.msra.mxu0 0.0
    %392 = vmatprep.subr.mxu0 0.0
    %393 = vmatpush1.msra.mxu0 0.0
    %394 = vmatprep.subr.mxu0 0.0
    %395 = vmatpush1.msra.mxu0 0.0
    %396 = vmatprep.subr.mxu0 0.0
    %397 = vmatpush1.msra.mxu0 0.0
    %398 = vmatprep.subr.mxu0 0.0
    %399 = vmatpush1.msra.mxu0 0.0
    %400 = vmatprep.subr.mxu0 0.0
    %401 = vmatpush1.msra.mxu0 0.0
    %402 = vmatprep.mubr.f32.mxu0 0.0
    %403 = vmatmul.mubr.f32.gmra.mrb[0].mxu0 %v327
    %v404 = vpop.f32.mrb[0].mxu0
    %v405 = vadd.f32 %v160, %v404
    %v406 = vpop.f32.mrb[0].mxu0
    %407 = vmatprep.mubr.f32.mxu0 0.0
    %408 = vmatmul.mubr.f32.gmra.mrb[0].mxu0 %v330
    %v409 = vpop.f32.mrb[0].mxu0
    %v410 = vadd.f32 %v165, %v409
    %v411 = vpop.f32.mrb[0].mxu0
    %412 = vmatprep.mubr.f32.mxu0 0.0
    %413 = vmatmul.mubr.f32.gmra.mrb[0].mxu0 %v333
    %v414 = vpop.f32.mrb[0].mxu0
    %v415 = vadd.f32 %v170, %v414
    %v416 = vpop.f32.mrb[0].mxu0
    %417 = vmatprep.mubr.f32.mxu0 0.0
    %418 = vmatmul.mubr.f32.gmra.mrb[0].mxu0 %v336
    %v419 = vpop.f32.mrb[0].mxu0
    %v420 = vadd.f32 %v175, %v419
    %v421 = vpop.f32.mrb[0].mxu0
    %422 = vdwg.mxu0
    %v423 = vpack.c.bf16 %v410, %v405
    %v424 = vpack.c.bf16 %v420, %v415
    %v425 = vld [vmem:[%s2] sm:$0xf]
    %v426 = vld [vmem:[%s4] sm:$0xff]
    %428 = vset.pattern.permute.xlu0 0
    %429 = vperm.xlu0 %428, %v307
    %v430 = vpop.permute.xlu0 %429
    %433 = vset.pattern.permute.xlu0 0
    %434 = vperm.xlu0 %433, %v308
    %v435 = vpop.permute.xlu0 %434
    %438 = vset.pattern.permute.xlu0 0
    %439 = vperm.xlu0 %438, %v309
    %v440 = vpop.permute.xlu0 %439
    %443 = vset.pattern.permute.xlu0 0
    %444 = vperm.xlu0 %443, %v310
    %v445 = vpop.permute.xlu0 %444
    %v448 = vsel %vm80, %v303, 0
    %v451 = vsel %vm80, %v304, 0
    %v454 = vsel %vm80, %v305, 0
    %v457 = vsel %vm80, %v306, 0
    %459 = vmatprep.subr.mxu0 0.0
    %460 = vmatpush1.msra.mxu0 %v426
    %461 = vmatprep.subr.mxu0 0.0
    %462 = vmatpush1.msra.mxu0 0.0
    %463 = vmatprep.subr.mxu0 0.0
    %464 = vmatpush1.msra.mxu0 0.0
    %465 = vmatprep.subr.mxu0 0.0
    %466 = vmatpush1.msra.mxu0 0.0
    %467 = vmatprep.subr.mxu0 0.0
    %468 = vmatpush1.msra.mxu0 0.0
    %469 = vmatprep.subr.mxu0 0.0
    %470 = vmatpush1.msra.mxu0 0.0
    %471 = vmatprep.subr.mxu0 0.0
    %472 = vmatpush1.msra.mxu0 0.0
    %473 = vmatprep.subr.mxu0 0.0
    %474 = vmatpush1.msra.mxu0 0.0
    %475 = vmatprep.subr.mxu0 0.0
    %476 = vmatpush1.msra.mxu0 0.0
    %477 = vmatprep.subr.mxu0 0.0
    %478 = vmatpush1.msra.mxu0 0.0
    %479 = vmatprep.subr.mxu0 0.0
    %480 = vmatpush1.msra.mxu0 0.0
    %481 = vmatprep.subr.mxu0 0.0
    %482 = vmatpush1.msra.mxu0 0.0
    %483 = vmatprep.subr.mxu0 0.0
    %484 = vmatpush1.msra.mxu0 0.0
    %485 = vmatprep.subr.mxu0 0.0
    %486 = vmatpush1.msra.mxu0 0.0
    %487 = vmatprep.subr.mxu0 0.0
    %488 = vmatpush1.msra.mxu0 0.0
    %489 = vmatprep.subr.mxu0 0.0
    %490 = vmatpush1.msra.mxu0 0.0
    %491 = vmatprep.subr.mxu0 0.0
    %492 = vmatpush1.msra.mxu0 0.0
    %493 = vmatprep.subr.mxu0 0.0
    %494 = vmatpush1.msra.mxu0 0.0
    %495 = vmatprep.subr.mxu0 0.0
    %496 = vmatpush1.msra.mxu0 0.0
    %497 = vmatprep.subr.mxu0 0.0
    %498 = vmatpush1.msra.mxu0 0.0
    %499 = vmatprep.subr.mxu0 0.0
    %500 = vmatpush1.msra.mxu0 0.0
    %501 = vmatprep.subr.mxu0 0.0
    %502 = vmatpush1.msra.mxu0 0.0
    %503 = vmatprep.subr.mxu0 0.0
    %504 = vmatpush1.msra.mxu0 0.0
    %505 = vmatprep.subr.mxu0 0.0
    %506 = vmatpush1.msra.mxu0 0.0
    %507 = vmatprep.subr.mxu0 0.0
    %508 = vmatpush1.msra.mxu0 0.0
    %509 = vmatprep.subr.mxu0 0.0
    %510 = vmatpush1.msra.mxu0 0.0
    %511 = vmatprep.subr.mxu0 0.0
    %512 = vmatpush1.msra.mxu0 0.0
    %513 = vmatprep.subr.mxu0 0.0
    %514 = vmatpush1.msra.mxu0 0.0
    %515 = vmatprep.subr.mxu0 0.0
    %516 = vmatpush1.msra.mxu0 0.0
    %517 = vmatprep.subr.mxu0 0.0
    %518 = vmatpush1.msra.mxu0 0.0
    %519 = vmatprep.subr.mxu0 0.0
    %520 = vmatpush1.msra.mxu0 0.0
    %521 = vmatprep.subr.mxu0 0.0
    %522 = vmatpush1.msra.mxu0 0.0
    %523 = vmatprep.mubr.f32.mxu0 0.0
    %524 = vmatmul.mubr.f32.gmra.mrb[0].mxu0 %v448
    %v525 = vpop.f32.mrb[0].mxu0
    %v526 = vadd.f32 %v430, %v525
    %v527 = vpop.f32.mrb[0].mxu0
    %528 = vmatprep.mubr.f32.mxu0 0.0
    %529 = vmatmul.mubr.f32.gmra.mrb[0].mxu0 %v451
    %v530 = vpop.f32.mrb[0].mxu0
    %v531 = vadd.f32 %v435, %v530
    %v532 = vpop.f32.mrb[0].mxu0
    %533 = vmatprep.mubr.f32.mxu0 0.0
    %534 = vmatmul.mubr.f32.gmra.mrb[0].mxu0 %v454
    %v535 = vpop.f32.mrb[0].mxu0
    %v536 = vadd.f32 %v440, %v535
    %v537 = vpop.f32.mrb[0].mxu0
    %538 = vmatprep.mubr.f32.mxu0 0.0
    %539 = vmatmul.mubr.f32.gmra.mrb[0].mxu0 %v457
    %v540 = vpop.f32.mrb[0].mxu0
    %v541 = vadd.f32 %v445, %v540
    %v542 = vpop.f32.mrb[0].mxu0
    %543 = vdwg.mxu0
    %v545 = vsel %vm80, %v423, 0
    %v548 = vsel %vm80, %v424, 0
    %vm550 = vcmask 1043456
    %v552 = vsel %vm550, %v425, 0
    %554 = vmatprep.subr.bf16.mxu0 0
    %555 = vmatpush1.bf16.msra.mxu0 %v552
    %556 = vmatprep.subr.bf16.mxu0 0
    %557 = vmatpush1.bf16.msra.mxu0 0
    %558 = vmatprep.subr.bf16.mxu0 0
    %559 = vmatpush1.bf16.msra.mxu0 0
    %560 = vmatprep.subr.bf16.mxu0 0
    %561 = vmatpush1.bf16.msra.mxu0 0
    %562 = vmatprep.subr.bf16.mxu0 0
    %563 = vmatpush1.bf16.msra.mxu0 0
    %564 = vmatprep.subr.bf16.mxu0 0
    %565 = vmatpush1.bf16.msra.mxu0 0
    %566 = vmatprep.subr.bf16.mxu0 0
    %567 = vmatpush1.bf16.msra.mxu0 0
    %568 = vmatprep.subr.bf16.mxu0 0
    %569 = vmatpush1.bf16.msra.mxu0 0
    %570 = vmatprep.subr.bf16.mxu0 0
    %571 = vmatpush1.bf16.msra.mxu0 0
    %572 = vmatprep.subr.bf16.mxu0 0
    %573 = vmatpush1.bf16.msra.mxu0 0
    %574 = vmatprep.subr.bf16.mxu0 0
    %575 = vmatpush1.bf16.msra.mxu0 0
    %576 = vmatprep.subr.bf16.mxu0 0
    %577 = vmatpush1.bf16.msra.mxu0 0
    %578 = vmatprep.subr.bf16.mxu0 0
    %579 = vmatpush1.bf16.msra.mxu0 0
    %580 = vmatprep.subr.bf16.mxu0 0
    %581 = vmatpush1.bf16.msra.mxu0 0
    %582 = vmatprep.subr.bf16.mxu0 0
    %583 = vmatpush1.bf16.msra.mxu0 0
    %584 = vmatprep.subr.bf16.mxu0 0
    %585 = vmatpush1.bf16.msra.mxu0 0
    %586 = vmatprep.mubr.bf16.mxu0 0
    %587 = vmatmul.mubr.bf16.gmra.mrb[0].mxu0 %v545
    %v588 = vpop.f32.mrb[0].mxu0
    %v589 = vadd.f32 %v526, %v588
    %v590 = vpop.f32.mrb[0].mxu0
    %v591 = vpop.f32.mrb[0].mxu0
    %v592 = vadd.f32 %v531, %v591
    %v593 = vpop.f32.mrb[0].mxu0
    %594 = vmatprep.mubr.bf16.mxu0 0
    %595 = vmatmul.mubr.bf16.gmra.mrb[0].mxu0 %v548
    %v596 = vpop.f32.mrb[0].mxu0
    %v597 = vadd.f32 %v536, %v596
    %v598 = vpop.f32.mrb[0].mxu0
    %v599 = vpop.f32.mrb[0].mxu0
    %v600 = vadd.f32 %v541, %v599
    %v601 = vpop.f32.mrb[0].mxu0
    %602 = vdwg.mxu0
    %v603 = vmax.f32 %v589, 0.0
    %v604 = vmax.f32 %v592, 0.0
    %v605 = vmax.f32 %v597, 0.0
    %v606 = vmax.f32 %v600, 0.0
    %608 = vset.pattern.permute.xlu0 0
    %609 = vperm.xlu0 %608, %v315
    %v610 = vpop.permute.xlu0 %609
    %613 = vset.pattern.permute.xlu0 0
    %614 = vperm.xlu0 %613, %v316
    %v615 = vpop.permute.xlu0 %614
    %618 = vset.pattern.permute.xlu0 0
    %619 = vperm.xlu0 %618, %v317
    %v620 = vpop.permute.xlu0 %619
    %623 = vset.pattern.permute.xlu0 0
    %624 = vperm.xlu0 %623, %v318
    %v625 = vpop.permute.xlu0 %624
    %vm627 = vcmask 261120
    %v629 = vsel %vm627, %v311, 0
    %v632 = vsel %vm627, %v312, 0
    %v635 = vsel %vm627, %v313, 0
    %v638 = vsel %vm627, %v314, 0
    %640 = vmatprep.subr.mxu0 0.0
    %641 = vmatpush1.msra.mxu0 %v603
    %642 = vmatprep.subr.mxu0 0.0
    %643 = vmatpush1.msra.mxu0 %v604
    %644 = vmatprep.subr.mxu0 0.0
    %645 = vmatpush1.msra.mxu0 %v605
    %646 = vmatprep.subr.mxu0 0.0
    %647 = vmatpush1.msra.mxu0 %v606
    %648 = vmatprep.subr.mxu0 0.0
    %649 = vmatpush1.msra.mxu0 0.0
    %650 = vmatprep.subr.mxu0 0.0
    %651 = vmatpush1.msra.mxu0 0.0
    %652 = vmatprep.subr.mxu0 0.0
    %653 = vmatpush1.msra.mxu0 0.0
    %654 = vmatprep.subr.mxu0 0.0
    %655 = vmatpush1.msra.mxu0 0.0
    %656 = vmatprep.subr.mxu0 0.0
    %657 = vmatpush1.msra.mxu0 0.0
    %658 = vmatprep.subr.mxu0 0.0
    %659 = vmatpush1.msra.mxu0 0.0
    %660 = vmatprep.subr.mxu0 0.0
    %661 = vmatpush1.msra.mxu0 0.0
    %662 = vmatprep.subr.mxu0 0.0
    %663 = vmatpush1.msra.mxu0 0.0
    %664 = vmatprep.subr.mxu0 0.0
    %665 = vmatpush1.msra.mxu0 0.0
    %666 = vmatprep.subr.mxu0 0.0
    %667 = vmatpush1.msra.mxu0 0.0
    %668 = vmatprep.subr.mxu0 0.0
    %669 = vmatpush1.msra.mxu0 0.0
    %670 = vmatprep.subr.mxu0 0.0
    %671 = vmatpush1.msra.mxu0 0.0
    %672 = vmatprep.subr.mxu0 0.0
    %673 = vmatpush1.msra.mxu0 0.0
    %674 = vmatprep.subr.mxu0 0.0
    %675 = vmatpush1.msra.mxu0 0.0
    %676 = vmatprep.subr.mxu0 0.0
    %677 = vmatpush1.msra.mxu0 0.0
    %678 = vmatprep.subr.mxu0 0.0
    %679 = vmatpush1.msra.mxu0 0.0
    %680 = vmatprep.subr.mxu0 0.0
    %681 = vmatpush1.msra.mxu0 0.0
    %682 = vmatprep.subr.mxu0 0.0
    %683 = vmatpush1.msra.mxu0 0.0
    %684 = vmatprep.subr.mxu0 0.0
    %685 = vmatpush1.msra.mxu0 0.0
    %686 = vmatprep.subr.mxu0 0.0
    %687 = vmatpush1.msra.mxu0 0.0
    %688 = vmatprep.subr.mxu0 0.0
    %689 = vmatpush1.msra.mxu0 0.0
    %690 = vmatprep.subr.mxu0 0.0
    %691 = vmatpush1.msra.mxu0 0.0
    %692 = vmatprep.subr.mxu0 0.0
    %693 = vmatpush1.msra.mxu0 0.0
    %694 = vmatprep.subr.mxu0 0.0
    %695 = vmatpush1.msra.mxu0 0.0
    %696 = vmatprep.subr.mxu0 0.0
    %697 = vmatpush1.msra.mxu0 0.0
    %698 = vmatprep.subr.mxu0 0.0
    %699 = vmatpush1.msra.mxu0 0.0
    %700 = vmatprep.subr.mxu0 0.0
    %701 = vmatpush1.msra.mxu0 0.0
    %702 = vmatprep.subr.mxu0 0.0
    %703 = vmatpush1.msra.mxu0 0.0
    %704 = vmatprep.mubr.f32.mxu0 0.0
    %705 = vmatmul.mubr.f32.gmra.mrb[0].mxu0 %v629
    %v706 = vpop.f32.mrb[0].mxu0
    %v707 = vadd.f32 %v610, %v706
    %v708 = vpop.f32.mrb[0].mxu0
    %709 = vmatprep.mubr.f32.mxu0 0.0
    %710 = vmatmul.mubr.f32.gmra.mrb[0].mxu0 %v632
    %v711 = vpop.f32.mrb[0].mxu0
    %v712 = vadd.f32 %v615, %v711
    %v713 = vpop.f32.mrb[0].mxu0
    %714 = vmatprep.mubr.f32.mxu0 0.0
    %715 = vmatmul.mubr.f32.gmra.mrb[0].mxu0 %v635
    %v716 = vpop.f32.mrb[0].mxu0
    %v717 = vadd.f32 %v620, %v716
    %v718 = vpop.f32.mrb[0].mxu0
    %719 = vmatprep.mubr.f32.mxu0 0.0
    %720 = vmatmul.mubr.f32.gmra.mrb[0].mxu0 %v638
    %v721 = vpop.f32.mrb[0].mxu0
    %v722 = vadd.f32 %v625, %v721
    %v723 = vpop.f32.mrb[0].mxu0
    %724 = vdwg.mxu0
    %v725 = vmax.f32 %v707, 0.0
    %v726 = vmax.f32 %v712, 0.0
    %v727 = vmax.f32 %v717, 0.0
    %v728 = vmax.f32 %v722, 0.0
    %v733 = vcombine.high %v725, %v725
    %v735 = vunpack.c.l.s4 1966171168
    %v736 = vunpack.c.0.s8 %v735
    %v737 = vlaneseq
    %v738 = vshrl.u32 %v737, 7
    %v739 = vsub.s32 %v736, %v738
    %v740 = vrot.slane %v725, %v739
    %v742 = vunpack.c.l.s4 1966171168
    %v743 = vunpack.c.0.s8 %v742
    %v744 = vlaneseq
    %v745 = vshrl.u32 %v744, 7
    %v746 = vsub.s32 %v743, %v745
    %v747 = vrot.slane %v733, %v746
    %v748 = vcombine.high %v740, %v740
    %v749 = vcombine.high %v747, %v747
    %v751 = vunpack.c.l.s4 1966171168
    %v752 = vunpack.c.0.s8 %v751
    %v753 = vlaneseq
    %v754 = vshrl.u32 %v753, 7
    %v755 = vsub.s32 %v752, %v754
    %v756 = vrot.slane %v740, %v755
    %v758 = vunpack.c.l.s4 1966171168
    %v759 = vunpack.c.0.s8 %v758
    %v760 = vlaneseq
    %v761 = vshrl.u32 %v760, 7
    %v762 = vsub.s32 %v759, %v761
    %v763 = vrot.slane %v747, %v762
    %v765 = vunpack.c.l.s4 1966171168
    %v766 = vunpack.c.0.s8 %v765
    %v767 = vlaneseq
    %v768 = vshrl.u32 %v767, 7
    %v769 = vsub.s32 %v766, %v768
    %v770 = vrot.slane %v748, %v769
    %v772 = vunpack.c.l.s4 1966171168
    %v773 = vunpack.c.0.s8 %v772
    %v774 = vlaneseq
    %v775 = vshrl.u32 %v774, 7
    %v776 = vsub.s32 %v773, %v775
    %v777 = vrot.slane %v749, %v776
    %v778 = vcombine.high %v756, %v756
    %v779 = vcombine.high %v763, %v763
    %v780 = vcombine.high %v770, %v770
    %v781 = vcombine.high %v777, %v777
    %v782 = vcombine.high %v726, %v726
    %v784 = vunpack.c.l.s4 1966171168
    %v785 = vunpack.c.0.s8 %v784
    %v786 = vlaneseq
    %v787 = vshrl.u32 %v786, 7
    %v788 = vsub.s32 %v785, %v787
    %v789 = vrot.slane %v726, %v788
    %v791 = vunpack.c.l.s4 1966171168
    %v792 = vunpack.c.0.s8 %v791
    %v793 = vlaneseq
    %v794 = vshrl.u32 %v793, 7
    %v795 = vsub.s32 %v792, %v794
    %v796 = vrot.slane %v782, %v795
    %v797 = vcombine.high %v789, %v789
    %v798 = vcombine.high %v796, %v796
    %v800 = vunpack.c.l.s4 1966171168
    %v801 = vunpack.c.0.s8 %v800
    %v802 = vlaneseq
    %v803 = vshrl.u32 %v802, 7
    %v804 = vsub.s32 %v801, %v803
    %v805 = vrot.slane %v789, %v804
    %v807 = vunpack.c.l.s4 1966171168
    %v808 = vunpack.c.0.s8 %v807
    %v809 = vlaneseq
    %v810 = vshrl.u32 %v809, 7
    %v811 = vsub.s32 %v808, %v810
    %v812 = vrot.slane %v796, %v811
    %v814 = vunpack.c.l.s4 1966171168
    %v815 = vunpack.c.0.s8 %v814
    %v816 = vlaneseq
    %v817 = vshrl.u32 %v816, 7
    %v818 = vsub.s32 %v815, %v817
    %v819 = vrot.slane %v797, %v818
    %v821 = vunpack.c.l.s4 1966171168
    %v822 = vunpack.c.0.s8 %v821
    %v823 = vlaneseq
    %v824 = vshrl.u32 %v823, 7
    %v825 = vsub.s32 %v822, %v824
    %v826 = vrot.slane %v798, %v825
    %v827 = vcombine.high %v805, %v805
    %v828 = vcombine.high %v812, %v812
    %v829 = vcombine.high %v819, %v819
    %v830 = vcombine.high %v826, %v826
    %v831 = vcombine.high %v727, %v727
    %v833 = vunpack.c.l.s4 1966171168
    %v834 = vunpack.c.0.s8 %v833
    %v835 = vlaneseq
    %v836 = vshrl.u32 %v835, 7
    %v837 = vsub.s32 %v834, %v836
    %v838 = vrot.slane %v727, %v837
    %v840 = vunpack.c.l.s4 1966171168
    %v841 = vunpack.c.0.s8 %v840
    %v842 = vlaneseq
    %v843 = vshrl.u32 %v842, 7
    %v844 = vsub.s32 %v841, %v843
    %v845 = vrot.slane %v831, %v844
    %v846 = vcombine.high %v838, %v838
    %v847 = vcombine.high %v845, %v845
    %v849 = vunpack.c.l.s4 1966171168
    %v850 = vunpack.c.0.s8 %v849
    %v851 = vlaneseq
    %v852 = vshrl.u32 %v851, 7
    %v853 = vsub.s32 %v850, %v852
    %v854 = vrot.slane %v838, %v853
    %v856 = vunpack.c.l.s4 1966171168
    %v857 = vunpack.c.0.s8 %v856
    %v858 = vlaneseq
    %v859 = vshrl.u32 %v858, 7
    %v860 = vsub.s32 %v857, %v859
    %v861 = vrot.slane %v845, %v860
    %v863 = vunpack.c.l.s4 1966171168
    %v864 = vunpack.c.0.s8 %v863
    %v865 = vlaneseq
    %v866 = vshrl.u32 %v865, 7
    %v867 = vsub.s32 %v864, %v866
    %v868 = vrot.slane %v846, %v867
    %v870 = vunpack.c.l.s4 1966171168
    %v871 = vunpack.c.0.s8 %v870
    %v872 = vlaneseq
    %v873 = vshrl.u32 %v872, 7
    %v874 = vsub.s32 %v871, %v873
    %v875 = vrot.slane %v847, %v874
    %v876 = vcombine.high %v854, %v854
    %v877 = vcombine.high %v861, %v861
    %v878 = vcombine.high %v868, %v868
    %v879 = vcombine.high %v875, %v875
    %v880 = vcombine.high %v728, %v728
    %v882 = vunpack.c.l.s4 1966171168
    %v883 = vunpack.c.0.s8 %v882
    %v884 = vlaneseq
    %v885 = vshrl.u32 %v884, 7
    %v886 = vsub.s32 %v883, %v885
    %v887 = vrot.slane %v728, %v886
    %v889 = vunpack.c.l.s4 1966171168
    %v890 = vunpack.c.0.s8 %v889
    %v891 = vlaneseq
    %v892 = vshrl.u32 %v891, 7
    %v893 = vsub.s32 %v890, %v892
    %v894 = vrot.slane %v880, %v893
    %v895 = vcombine.high %v887, %v887
    %v896 = vcombine.high %v894, %v894
    %v898 = vunpack.c.l.s4 1966171168
    %v899 = vunpack.c.0.s8 %v898
    %v900 = vlaneseq
    %v901 = vshrl.u32 %v900, 7
    %v902 = vsub.s32 %v899, %v901
    %v903 = vrot.slane %v887, %v902
    %v905 = vunpack.c.l.s4 1966171168
    %v906 = vunpack.c.0.s8 %v905
    %v907 = vlaneseq
    %v908 = vshrl.u32 %v907, 7
    %v909 = vsub.s32 %v906, %v908
    %v910 = vrot.slane %v894, %v909
    %v912 = vunpack.c.l.s4 1966171168
    %v913 = vunpack.c.0.s8 %v912
    %v914 = vlaneseq
    %v915 = vshrl.u32 %v914, 7
    %v916 = vsub.s32 %v913, %v915
    %v917 = vrot.slane %v895, %v916
    %v919 = vunpack.c.l.s4 1966171168
    %v920 = vunpack.c.0.s8 %v919
    %v921 = vlaneseq
    %v922 = vshrl.u32 %v921, 7
    %v923 = vsub.s32 %v920, %v922
    %v924 = vrot.slane %v896, %v923
    %v925 = vcombine.high %v903, %v903
    %v926 = vcombine.high %v910, %v910
    %v927 = vcombine.high %v917, %v917
    %v928 = vcombine.high %v924, %v924
    %v929 = vld [vmem:[%s3] sm:$0xff]
    %v930 = vlaneseq
    %v931 = vshrl.u32 %v930, 7
    %v932 = vsub.s32 0, %v931
    %v933 = vrot.slane %v756, %v932
    %v934 = vlaneseq
    %v935 = vshrl.u32 %v934, 7
    %v936 = vsub.s32 0, %v935
    %v937 = vrot.slane %v770, %v936
    %v938 = vlaneseq
    %v939 = vshrl.u32 %v938, 7
    %v940 = vsub.s32 0, %v939
    %v941 = vrot.slane %v778, %v940
    %v942 = vlaneseq
    %v943 = vshrl.u32 %v942, 7
    %v944 = vsub.s32 0, %v943
    %v945 = vrot.slane %v780, %v944
    %v946 = vlaneseq
    %v947 = vshrl.u32 %v946, 7
    %v948 = vsub.s32 0, %v947
    %v949 = vrot.slane %v763, %v948
    %v950 = vlaneseq
    %v951 = vshrl.u32 %v950, 7
    %v952 = vsub.s32 0, %v951
    %v953 = vrot.slane %v777, %v952
    %v954 = vlaneseq
    %v955 = vshrl.u32 %v954, 7
    %v956 = vsub.s32 0, %v955
    %v957 = vrot.slane %v779, %v956
    %v958 = vlaneseq
    %v959 = vshrl.u32 %v958, 7
    %v960 = vsub.s32 0, %v959
    %v961 = vrot.slane %v781, %v960
    %v962 = vlaneseq
    %v963 = vshrl.u32 %v962, 7
    %v964 = vsub.s32 0, %v963
    %v965 = vrot.slane %v805, %v964
    %v966 = vlaneseq
    %v967 = vshrl.u32 %v966, 7
    %v968 = vsub.s32 0, %v967
    %v969 = vrot.slane %v819, %v968
    %v970 = vlaneseq
    %v971 = vshrl.u32 %v970, 7
    %v972 = vsub.s32 0, %v971
    %v973 = vrot.slane %v827, %v972
    %v974 = vlaneseq
    %v975 = vshrl.u32 %v974, 7
    %v976 = vsub.s32 0, %v975
    %v977 = vrot.slane %v829, %v976
    %v978 = vlaneseq
    %v979 = vshrl.u32 %v978, 7
    %v980 = vsub.s32 0, %v979
    %v981 = vrot.slane %v812, %v980
    %v982 = vlaneseq
    %v983 = vshrl.u32 %v982, 7
    %v984 = vsub.s32 0, %v983
    %v985 = vrot.slane %v826, %v984
    %v986 = vlaneseq
    %v987 = vshrl.u32 %v986, 7
    %v988 = vsub.s32 0, %v987
    %v989 = vrot.slane %v828, %v988
    %v990 = vlaneseq
    %v991 = vshrl.u32 %v990, 7
    %v992 = vsub.s32 0, %v991
    %v993 = vrot.slane %v830, %v992
    %v994 = vlaneseq
    %v995 = vshrl.u32 %v994, 7
    %v996 = vsub.s32 0, %v995
    %v997 = vrot.slane %v854, %v996
    %v998 = vlaneseq
    %v999 = vshrl.u32 %v998, 7
    %v1000 = vsub.s32 0, %v999
    %v1001 = vrot.slane %v868, %v1000
    %v1002 = vlaneseq
    %v1003 = vshrl.u32 %v1002, 7
    %v1004 = vsub.s32 0, %v1003
    %v1005 = vrot.slane %v876, %v1004
    %v1006 = vlaneseq
    %v1007 = vshrl.u32 %v1006, 7
    %v1008 = vsub.s32 0, %v1007
    %v1009 = vrot.slane %v878, %v1008
    %v1010 = vlaneseq
    %v1011 = vshrl.u32 %v1010, 7
    %v1012 = vsub.s32 0, %v1011
    %v1013 = vrot.slane %v861, %v1012
    %v1014 = vlaneseq
    %v1015 = vshrl.u32 %v1014, 7
    %v1016 = vsub.s32 0, %v1015
    %v1017 = vrot.slane %v875, %v1016
    %v1018 = vlaneseq
    %v1019 = vshrl.u32 %v1018, 7
    %v1020 = vsub.s32 0, %v1019
    %v1021 = vrot.slane %v877, %v1020
    %v1022 = vlaneseq
    %v1023 = vshrl.u32 %v1022, 7
    %v1024 = vsub.s32 0, %v1023
    %v1025 = vrot.slane %v879, %v1024
    %v1026 = vlaneseq
    %v1027 = vshrl.u32 %v1026, 7
    %v1028 = vsub.s32 0, %v1027
    %v1029 = vrot.slane %v903, %v1028
    %v1030 = vlaneseq
    %v1031 = vshrl.u32 %v1030, 7
    %v1032 = vsub.s32 0, %v1031
    %v1033 = vrot.slane %v917, %v1032
    %v1034 = vlaneseq
    %v1035 = vshrl.u32 %v1034, 7
    %v1036 = vsub.s32 0, %v1035
    %v1037 = vrot.slane %v925, %v1036
    %v1038 = vlaneseq
    %v1039 = vshrl.u32 %v1038, 7
    %v1040 = vsub.s32 0, %v1039
    %v1041 = vrot.slane %v927, %v1040
    %v1042 = vlaneseq
    %v1043 = vshrl.u32 %v1042, 7
    %v1044 = vsub.s32 0, %v1043
    %v1045 = vrot.slane %v910, %v1044
    %v1046 = vlaneseq
    %v1047 = vshrl.u32 %v1046, 7
    %v1048 = vsub.s32 0, %v1047
    %v1049 = vrot.slane %v924, %v1048
    %v1050 = vlaneseq
    %v1051 = vshrl.u32 %v1050, 7
    %v1052 = vsub.s32 0, %v1051
    %v1053 = vrot.slane %v926, %v1052
    %v1054 = vlaneseq
    %v1055 = vshrl.u32 %v1054, 7
    %v1056 = vsub.s32 0, %v1055
    %v1057 = vrot.slane %v928, %v1056
    %v1090 = vadd.f32 %v933, %v929
    %v1091 = vadd.f32 %v937, %v929
    %v1092 = vadd.f32 %v941, %v929
    %v1093 = vadd.f32 %v945, %v929
    %v1094 = vadd.f32 %v949, %v929
    %v1095 = vadd.f32 %v953, %v929
    %v1096 = vadd.f32 %v957, %v929
    %v1097 = vadd.f32 %v961, %v929
    %v1098 = vadd.f32 %v965, %v929
    %v1099 = vadd.f32 %v969, %v929
    %v1100 = vadd.f32 %v973, %v929
    %v1101 = vadd.f32 %v977, %v929
    %v1102 = vadd.f32 %v981, %v929
    %v1103 = vadd.f32 %v985, %v929
    %v1104 = vadd.f32 %v989, %v929
    %v1105 = vadd.f32 %v993, %v929
    %v1106 = vadd.f32 %v997, %v929
    %v1107 = vadd.f32 %v1001, %v929
    %v1108 = vadd.f32 %v1005, %v929
    %v1109 = vadd.f32 %v1009, %v929
    %v1110 = vadd.f32 %v1013, %v929
    %v1111 = vadd.f32 %v1017, %v929
    %v1112 = vadd.f32 %v1021, %v929
    %v1113 = vadd.f32 %v1025, %v929
    %v1114 = vadd.f32 %v1029, %v929
    %v1115 = vadd.f32 %v1033, %v929
    %v1116 = vadd.f32 %v1037, %v929
    %v1117 = vadd.f32 %v1041, %v929
    %v1118 = vadd.f32 %v1045, %v929
    %v1119 = vadd.f32 %v1049, %v929
    %v1120 = vadd.f32 %v1053, %v929
    %v1121 = vadd.f32 %v1057, %v929
    %1122 = vmax.xlane.f32.xlu0 %v1090
    %v1123 = vpop.xlane.xlu0 %1122
    %1124 = vmax.xlane.f32.xlu0 %v1091
    %v1125 = vpop.xlane.xlu0 %1124
    %1126 = vmax.xlane.f32.xlu0 %v1092
    %v1127 = vpop.xlane.xlu0 %1126
    %1128 = vmax.xlane.f32.xlu0 %v1093
    %v1129 = vpop.xlane.xlu0 %1128
    %1130 = vmax.xlane.f32.xlu0 %v1094
    %v1131 = vpop.xlane.xlu0 %1130
    %1132 = vmax.xlane.f32.xlu0 %v1095
    %v1133 = vpop.xlane.xlu0 %1132
    %1134 = vmax.xlane.f32.xlu0 %v1096
    %v1135 = vpop.xlane.xlu0 %1134
    %1136 = vmax.xlane.f32.xlu0 %v1097
    %v1137 = vpop.xlane.xlu0 %1136
    %1138 = vmax.xlane.f32.xlu0 %v1098
    %v1139 = vpop.xlane.xlu0 %1138
    %1140 = vmax.xlane.f32.xlu0 %v1099
    %v1141 = vpop.xlane.xlu0 %1140
    %1142 = vmax.xlane.f32.xlu0 %v1100
    %v1143 = vpop.xlane.xlu0 %1142
    %1144 = vmax.xlane.f32.xlu0 %v1101
    %v1145 = vpop.xlane.xlu0 %1144
    %1146 = vmax.xlane.f32.xlu0 %v1102
    %v1147 = vpop.xlane.xlu0 %1146
    %1148 = vmax.xlane.f32.xlu0 %v1103
    %v1149 = vpop.xlane.xlu0 %1148
    %1150 = vmax.xlane.f32.xlu0 %v1104
    %v1151 = vpop.xlane.xlu0 %1150
    %1152 = vmax.xlane.f32.xlu0 %v1105
    %v1153 = vpop.xlane.xlu0 %1152
    %1154 = vmax.xlane.f32.xlu0 %v1106
    %v1155 = vpop.xlane.xlu0 %1154
    %1156 = vmax.xlane.f32.xlu0 %v1107
    %v1157 = vpop.xlane.xlu0 %1156
    %1158 = vmax.xlane.f32.xlu0 %v1108
    %v1159 = vpop.xlane.xlu0 %1158
    %1160 = vmax.xlane.f32.xlu0 %v1109
    %v1161 = vpop.xlane.xlu0 %1160
    %1162 = vmax.xlane.f32.xlu0 %v1110
    %v1163 = vpop.xlane.xlu0 %1162
    %1164 = vmax.xlane.f32.xlu0 %v1111
    %v1165 = vpop.xlane.xlu0 %1164
    %1166 = vmax.xlane.f32.xlu0 %v1112
    %v1167 = vpop.xlane.xlu0 %1166
    %1168 = vmax.xlane.f32.xlu0 %v1113
    %v1169 = vpop.xlane.xlu0 %1168
    %1170 = vmax.xlane.f32.xlu0 %v1114
    %v1171 = vpop.xlane.xlu0 %1170
    %1172 = vmax.xlane.f32.xlu0 %v1115
    %v1173 = vpop.xlane.xlu0 %1172
    %1174 = vmax.xlane.f32.xlu0 %v1116
    %v1175 = vpop.xlane.xlu0 %1174
    %1176 = vmax.xlane.f32.xlu0 %v1117
    %v1177 = vpop.xlane.xlu0 %1176
    %1178 = vmax.xlane.f32.xlu0 %v1118
    %v1179 = vpop.xlane.xlu0 %1178
    %1180 = vmax.xlane.f32.xlu0 %v1119
    %v1181 = vpop.xlane.xlu0 %1180
    %1182 = vmax.xlane.f32.xlu0 %v1120
    %v1183 = vpop.xlane.xlu0 %1182
    %1184 = vmax.xlane.f32.xlu0 %v1121
    %v1185 = vpop.xlane.xlu0 %1184
    %v1186 = vmax.f32 %v1123, -3e+38
    %v1187 = vmax.f32 %v1125, -3e+38
    %v1188 = vmax.f32 %v1127, -3e+38
    %v1189 = vmax.f32 %v1129, -3e+38
    %v1190 = vmax.f32 %v1131, -3e+38
    %v1191 = vmax.f32 %v1133, -3e+38
    %v1192 = vmax.f32 %v1135, -3e+38
    %v1193 = vmax.f32 %v1137, -3e+38
    %v1194 = vmax.f32 %v1139, -3e+38
    %v1195 = vmax.f32 %v1141, -3e+38
    %v1196 = vmax.f32 %v1143, -3e+38
    %v1197 = vmax.f32 %v1145, -3e+38
    %v1198 = vmax.f32 %v1147, -3e+38
    %v1199 = vmax.f32 %v1149, -3e+38
    %v1200 = vmax.f32 %v1151, -3e+38
    %v1201 = vmax.f32 %v1153, -3e+38
    %v1202 = vmax.f32 %v1155, -3e+38
    %v1203 = vmax.f32 %v1157, -3e+38
    %v1204 = vmax.f32 %v1159, -3e+38
    %v1205 = vmax.f32 %v1161, -3e+38
    %v1206 = vmax.f32 %v1163, -3e+38
    %v1207 = vmax.f32 %v1165, -3e+38
    %v1208 = vmax.f32 %v1167, -3e+38
    %v1209 = vmax.f32 %v1169, -3e+38
    %v1210 = vmax.f32 %v1171, -3e+38
    %v1211 = vmax.f32 %v1173, -3e+38
    %v1212 = vmax.f32 %v1175, -3e+38
    %v1213 = vmax.f32 %v1177, -3e+38
    %v1214 = vmax.f32 %v1179, -3e+38
    %v1215 = vmax.f32 %v1181, -3e+38
    %v1216 = vmax.f32 %v1183, -3e+38
    %v1217 = vmax.f32 %v1185, -3e+38
    %v1218 = vsel %vm75, 1, 0
    %v1219 = vlaneseq
    %v1220 = vshrl.u32 %v1219, 7
    %v1221 = vsub.s32 0, %v1220
    %v1222 = vrot.slane %v1218, %v1221
    %vm1223 = vcmp.eq.s32.totalorder %v1222, 1
    %v1256 = vlaneseq
    %v1257 = vand.u32 %v1256, 127
    %v1258 = vlaneseq
    %v1259 = vshrl.u32 %v1258, 7
    %v1260 = vsub.s32 %v1257, %v1259
    %v1261 = vrot.slane %v1186, %v1260
    %v1262 = vlaneseq
    %v1263 = vshrl.u32 %v1262, 7
    %v1264 = vsub.s32 %v1257, %v1263
    %v1265 = vrot.slane %v1187, %v1264
    %v1266 = vlaneseq
    %v1267 = vshrl.u32 %v1266, 7
    %v1268 = vsub.s32 %v1257, %v1267
    %v1269 = vrot.slane %v1188, %v1268
    %v1270 = vlaneseq
    %v1271 = vshrl.u32 %v1270, 7
    %v1272 = vsub.s32 %v1257, %v1271
    %v1273 = vrot.slane %v1189, %v1272
    %v1274 = vlaneseq
    %v1275 = vshrl.u32 %v1274, 7
    %v1276 = vsub.s32 %v1257, %v1275
    %v1277 = vrot.slane %v1190, %v1276
    %v1278 = vlaneseq
    %v1279 = vshrl.u32 %v1278, 7
    %v1280 = vsub.s32 %v1257, %v1279
    %v1281 = vrot.slane %v1191, %v1280
    %v1282 = vlaneseq
    %v1283 = vshrl.u32 %v1282, 7
    %v1284 = vsub.s32 %v1257, %v1283
    %v1285 = vrot.slane %v1192, %v1284
    %v1286 = vlaneseq
    %v1287 = vshrl.u32 %v1286, 7
    %v1288 = vsub.s32 %v1257, %v1287
    %v1289 = vrot.slane %v1193, %v1288
    %v1290 = vlaneseq
    %v1291 = vshrl.u32 %v1290, 7
    %v1292 = vsub.s32 %v1257, %v1291
    %v1293 = vrot.slane %v1194, %v1292
    %v1294 = vlaneseq
    %v1295 = vshrl.u32 %v1294, 7
    %v1296 = vsub.s32 %v1257, %v1295
    %v1297 = vrot.slane %v1195, %v1296
    %v1298 = vlaneseq
    %v1299 = vshrl.u32 %v1298, 7
    %v1300 = vsub.s32 %v1257, %v1299
    %v1301 = vrot.slane %v1196, %v1300
    %v1302 = vlaneseq
    %v1303 = vshrl.u32 %v1302, 7
    %v1304 = vsub.s32 %v1257, %v1303
    %v1305 = vrot.slane %v1197, %v1304
    %v1306 = vlaneseq
    %v1307 = vshrl.u32 %v1306, 7
    %v1308 = vsub.s32 %v1257, %v1307
    %v1309 = vrot.slane %v1198, %v1308
    %v1310 = vlaneseq
    %v1311 = vshrl.u32 %v1310, 7
    %v1312 = vsub.s32 %v1257, %v1311
    %v1313 = vrot.slane %v1199, %v1312
    %v1314 = vlaneseq
    %v1315 = vshrl.u32 %v1314, 7
    %v1316 = vsub.s32 %v1257, %v1315
    %v1317 = vrot.slane %v1200, %v1316
    %v1318 = vlaneseq
    %v1319 = vshrl.u32 %v1318, 7
    %v1320 = vsub.s32 %v1257, %v1319
    %v1321 = vrot.slane %v1201, %v1320
    %v1322 = vlaneseq
    %v1323 = vshrl.u32 %v1322, 7
    %v1324 = vsub.s32 %v1257, %v1323
    %v1325 = vrot.slane %v1202, %v1324
    %v1326 = vlaneseq
    %v1327 = vshrl.u32 %v1326, 7
    %v1328 = vsub.s32 %v1257, %v1327
    %v1329 = vrot.slane %v1203, %v1328
    %v1330 = vlaneseq
    %v1331 = vshrl.u32 %v1330, 7
    %v1332 = vsub.s32 %v1257, %v1331
    %v1333 = vrot.slane %v1204, %v1332
    %v1334 = vlaneseq
    %v1335 = vshrl.u32 %v1334, 7
    %v1336 = vsub.s32 %v1257, %v1335
    %v1337 = vrot.slane %v1205, %v1336
    %v1338 = vlaneseq
    %v1339 = vshrl.u32 %v1338, 7
    %v1340 = vsub.s32 %v1257, %v1339
    %v1341 = vrot.slane %v1206, %v1340
    %v1342 = vlaneseq
    %v1343 = vshrl.u32 %v1342, 7
    %v1344 = vsub.s32 %v1257, %v1343
    %v1345 = vrot.slane %v1207, %v1344
    %v1346 = vlaneseq
    %v1347 = vshrl.u32 %v1346, 7
    %v1348 = vsub.s32 %v1257, %v1347
    %v1349 = vrot.slane %v1208, %v1348
    %v1350 = vlaneseq
    %v1351 = vshrl.u32 %v1350, 7
    %v1352 = vsub.s32 %v1257, %v1351
    %v1353 = vrot.slane %v1209, %v1352
    %v1354 = vlaneseq
    %v1355 = vshrl.u32 %v1354, 7
    %v1356 = vsub.s32 %v1257, %v1355
    %v1357 = vrot.slane %v1210, %v1356
    %v1358 = vlaneseq
    %v1359 = vshrl.u32 %v1358, 7
    %v1360 = vsub.s32 %v1257, %v1359
    %v1361 = vrot.slane %v1211, %v1360
    %v1362 = vlaneseq
    %v1363 = vshrl.u32 %v1362, 7
    %v1364 = vsub.s32 %v1257, %v1363
    %v1365 = vrot.slane %v1212, %v1364
    %v1366 = vlaneseq
    %v1367 = vshrl.u32 %v1366, 7
    %v1368 = vsub.s32 %v1257, %v1367
    %v1369 = vrot.slane %v1213, %v1368
    %v1370 = vlaneseq
    %v1371 = vshrl.u32 %v1370, 7
    %v1372 = vsub.s32 %v1257, %v1371
    %v1373 = vrot.slane %v1214, %v1372
    %v1374 = vlaneseq
    %v1375 = vshrl.u32 %v1374, 7
    %v1376 = vsub.s32 %v1257, %v1375
    %v1377 = vrot.slane %v1215, %v1376
    %v1378 = vlaneseq
    %v1379 = vshrl.u32 %v1378, 7
    %v1380 = vsub.s32 %v1257, %v1379
    %v1381 = vrot.slane %v1216, %v1380
    %v1382 = vlaneseq
    %v1383 = vshrl.u32 %v1382, 7
    %v1384 = vsub.s32 %v1257, %v1383
    %v1385 = vrot.slane %v1217, %v1384
    %vm1386 = vcmask 1041409
    %v1387 = vsel %vm1386, %v1265, %v1261
    %vm1388 = vcmask 1042434
    %v1389 = vsel %vm1388, %v1269, %v1387
    %vm1390 = vcmask 1043459
    %v1391 = vsel %vm1390, %v1273, %v1389
    %vm1392 = vcmask 1044484
    %v1393 = vsel %vm1392, %v1277, %v1391
    %vm1394 = vcmask 1045509
    %v1395 = vsel %vm1394, %v1281, %v1393
    %vm1396 = vcmask 1046534
    %v1397 = vsel %vm1396, %v1285, %v1395
    %vm1398 = vcmask 1047559
    %v1399 = vsel %vm1398, %v1289, %v1397
    %v1400 = vsel %vm1386, %v1297, %v1293
    %v1401 = vsel %vm1388, %v1301, %v1400
    %v1402 = vsel %vm1390, %v1305, %v1401
    %v1403 = vsel %vm1392, %v1309, %v1402
    %v1404 = vsel %vm1394, %v1313, %v1403
    %v1405 = vsel %vm1396, %v1317, %v1404
    %v1406 = vsel %vm1398, %v1321, %v1405
    %v1407 = vsel %vm1386, %v1329, %v1325
    %v1408 = vsel %vm1388, %v1333, %v1407
    %v1409 = vsel %vm1390, %v1337, %v1408
    %v1410 = vsel %vm1392, %v1341, %v1409
    %v1411 = vsel %vm1394, %v1345, %v1410
    %v1412 = vsel %vm1396, %v1349, %v1411
    %v1413 = vsel %vm1398, %v1353, %v1412
    %v1414 = vsel %vm1386, %v1361, %v1357
    %v1415 = vsel %vm1388, %v1365, %v1414
    %v1416 = vsel %vm1390, %v1369, %v1415
    %v1417 = vsel %vm1392, %v1373, %v1416
    %v1418 = vsel %vm1394, %v1377, %v1417
    %v1419 = vsel %vm1396, %v1381, %v1418
    %v1420 = vsel %vm1398, %v1385, %v1419
    %v1425 = vsel %vm1223, %v1399, 0.0
    %v1426 = vsel %vm1223, %v1406, 0.0
    %v1427 = vsel %vm1223, %v1413, 0.0
    %v1428 = vsel %vm1223, %v1420, 0.0
    %v1429 = vld [vmem:[%s12] sm:$0xff]
    %v1430 = vld [vmem:[%s12 + $0x8] sm:$0xff]
    %v1431 = vld [vmem:[%s12 + $0x10] sm:$0xff]
    %v1432 = vld [vmem:[%s12 + $0x18] sm:$0xff]
    %v1433 = vld [vmem:[%s14] sm:$0xff]
    %v1434 = vld [vmem:[%s14 + $0x8] sm:$0xff]
    %v1435 = vld [vmem:[%s14 + $0x10] sm:$0xff]
    %v1436 = vld [vmem:[%s14 + $0x18] sm:$0xff]
    %v1438 = vsel %vm627, %v1433, 0
    %v1441 = vsel %vm627, %v1434, 0
    %v1444 = vsel %vm627, %v1435, 0
    %v1447 = vsel %vm627, %v1436, 0
    %1449 = vmatprep.subr.mxu0 0.0
    %1450 = vmatpush1.msra.mxu0 %v1425
    %1451 = vmatprep.subr.mxu0 0.0
    %1452 = vmatpush1.msra.mxu0 %v1426
    %1453 = vmatprep.subr.mxu0 0.0
    %1454 = vmatpush1.msra.mxu0 %v1427
    %1455 = vmatprep.subr.mxu0 0.0
    %1456 = vmatpush1.msra.mxu0 %v1428
    %1457 = vmatprep.subr.mxu0 0.0
    %1458 = vmatpush1.msra.mxu0 0.0
    %1459 = vmatprep.subr.mxu0 0.0
    %1460 = vmatpush1.msra.mxu0 0.0
    %1461 = vmatprep.subr.mxu0 0.0
    %1462 = vmatpush1.msra.mxu0 0.0
    %1463 = vmatprep.subr.mxu0 0.0
    %1464 = vmatpush1.msra.mxu0 0.0
    %1465 = vmatprep.subr.mxu0 0.0
    %1466 = vmatpush1.msra.mxu0 0.0
    %1467 = vmatprep.subr.mxu0 0.0
    %1468 = vmatpush1.msra.mxu0 0.0
    %1469 = vmatprep.subr.mxu0 0.0
    %1470 = vmatpush1.msra.mxu0 0.0
    %1471 = vmatprep.subr.mxu0 0.0
    %1472 = vmatpush1.msra.mxu0 0.0
    %1473 = vmatprep.subr.mxu0 0.0
    %1474 = vmatpush1.msra.mxu0 0.0
    %1475 = vmatprep.subr.mxu0 0.0
    %1476 = vmatpush1.msra.mxu0 0.0
    %1477 = vmatprep.subr.mxu0 0.0
    %1478 = vmatpush1.msra.mxu0 0.0
    %1479 = vmatprep.subr.mxu0 0.0
    %1480 = vmatpush1.msra.mxu0 0.0
    %1481 = vmatprep.subr.mxu0 0.0
    %1482 = vmatpush1.msra.mxu0 0.0
    %1483 = vmatprep.subr.mxu0 0.0
    %1484 = vmatpush1.msra.mxu0 0.0
    %1485 = vmatprep.subr.mxu0 0.0
    %1486 = vmatpush1.msra.mxu0 0.0
    %1487 = vmatprep.subr.mxu0 0.0
    %1488 = vmatpush1.msra.mxu0 0.0
    %1489 = vmatprep.subr.mxu0 0.0
    %1490 = vmatpush1.msra.mxu0 0.0
    %1491 = vmatprep.subr.mxu0 0.0
    %1492 = vmatpush1.msra.mxu0 0.0
    %1493 = vmatprep.subr.mxu0 0.0
    %1494 = vmatpush1.msra.mxu0 0.0
    %1495 = vmatprep.subr.mxu0 0.0
    %1496 = vmatpush1.msra.mxu0 0.0
    %1497 = vmatprep.subr.mxu0 0.0
    %1498 = vmatpush1.msra.mxu0 0.0
    %1499 = vmatprep.subr.mxu0 0.0
    %1500 = vmatpush1.msra.mxu0 0.0
    %1501 = vmatprep.subr.mxu0 0.0
    %1502 = vmatpush1.msra.mxu0 0.0
    %1503 = vmatprep.subr.mxu0 0.0
    %1504 = vmatpush1.msra.mxu0 0.0
    %1505 = vmatprep.subr.mxu0 0.0
    %1506 = vmatpush1.msra.mxu0 0.0
    %1507 = vmatprep.subr.mxu0 0.0
    %1508 = vmatpush1.msra.mxu0 0.0
    %1509 = vmatprep.subr.mxu0 0.0
    %1510 = vmatpush1.msra.mxu0 0.0
    %1511 = vmatprep.subr.mxu0 0.0
    %1512 = vmatpush1.msra.mxu0 0.0
    %1513 = vmatprep.mubr.f32.mxu0 0.0
    %1514 = vmatmul.mubr.f32.gmra.mrb[0].mxu0 %v1438
    %v1515 = vpop.f32.mrb[0].mxu0
    %v1516 = vadd.f32 0.0, %v1515
    %v1517 = vpop.f32.mrb[0].mxu0
    %1518 = vmatprep.mubr.f32.mxu0 0.0
    %1519 = vmatmul.mubr.f32.gmra.mrb[0].mxu0 %v1441
    %v1520 = vpop.f32.mrb[0].mxu0
    %v1521 = vadd.f32 0.0, %v1520
    %v1522 = vpop.f32.mrb[0].mxu0
    %1523 = vmatprep.mubr.f32.mxu0 0.0
    %1524 = vmatmul.mubr.f32.gmra.mrb[0].mxu0 %v1444
    %v1525 = vpop.f32.mrb[0].mxu0
    %v1526 = vadd.f32 0.0, %v1525
    %v1527 = vpop.f32.mrb[0].mxu0
    %1528 = vmatprep.mubr.f32.mxu0 0.0
    %1529 = vmatmul.mubr.f32.gmra.mrb[0].mxu0 %v1447
    %v1530 = vpop.f32.mrb[0].mxu0
    %v1531 = vadd.f32 0.0, %v1530
    %v1532 = vpop.f32.mrb[0].mxu0
    %1533 = vdwg.mxu0
    %v1535 = vsel %vm325, %v1429, 0
    %v1538 = vsel %vm325, %v1430, 0
    %v1541 = vsel %vm325, %v1431, 0
    %v1544 = vsel %vm325, %v1432, 0
    %1546 = vmatprep.subr.mxu0 0.0
    %1547 = vmatpush1.msra.mxu0 %v319
    %1548 = vmatprep.subr.mxu0 0.0
    %1549 = vmatpush1.msra.mxu0 %v320
    %1550 = vmatprep.subr.mxu0 0.0
    %1551 = vmatpush1.msra.mxu0 0.0
    %1552 = vmatprep.subr.mxu0 0.0
    %1553 = vmatpush1.msra.mxu0 0.0
    %1554 = vmatprep.subr.mxu0 0.0
    %1555 = vmatpush1.msra.mxu0 0.0
    %1556 = vmatprep.subr.mxu0 0.0
    %1557 = vmatpush1.msra.mxu0 0.0
    %1558 = vmatprep.subr.mxu0 0.0
    %1559 = vmatpush1.msra.mxu0 0.0
    %1560 = vmatprep.subr.mxu0 0.0
    %1561 = vmatpush1.msra.mxu0 0.0
    %1562 = vmatprep.subr.mxu0 0.0
    %1563 = vmatpush1.msra.mxu0 0.0
    %1564 = vmatprep.subr.mxu0 0.0
    %1565 = vmatpush1.msra.mxu0 0.0
    %1566 = vmatprep.subr.mxu0 0.0
    %1567 = vmatpush1.msra.mxu0 0.0
    %1568 = vmatprep.subr.mxu0 0.0
    %1569 = vmatpush1.msra.mxu0 0.0
    %1570 = vmatprep.subr.mxu0 0.0
    %1571 = vmatpush1.msra.mxu0 0.0
    %1572 = vmatprep.subr.mxu0 0.0
    %1573 = vmatpush1.msra.mxu0 0.0
    %1574 = vmatprep.subr.mxu0 0.0
    %1575 = vmatpush1.msra.mxu0 0.0
    %1576 = vmatprep.subr.mxu0 0.0
    %1577 = vmatpush1.msra.mxu0 0.0
    %1578 = vmatprep.subr.mxu0 0.0
    %1579 = vmatpush1.msra.mxu0 0.0
    %1580 = vmatprep.subr.mxu0 0.0
    %1581 = vmatpush1.msra.mxu0 0.0
    %1582 = vmatprep.subr.mxu0 0.0
    %1583 = vmatpush1.msra.mxu0 0.0
    %1584 = vmatprep.subr.mxu0 0.0
    %1585 = vmatpush1.msra.mxu0 0.0
    %1586 = vmatprep.subr.mxu0 0.0
    %1587 = vmatpush1.msra.mxu0 0.0
    %1588 = vmatprep.subr.mxu0 0.0
    %1589 = vmatpush1.msra.mxu0 0.0
    %1590 = vmatprep.subr.mxu0 0.0
    %1591 = vmatpush1.msra.mxu0 0.0
    %1592 = vmatprep.subr.mxu0 0.0
    %1593 = vmatpush1.msra.mxu0 0.0
    %1594 = vmatprep.subr.mxu0 0.0
    %1595 = vmatpush1.msra.mxu0 0.0
    %1596 = vmatprep.subr.mxu0 0.0
    %1597 = vmatpush1.msra.mxu0 0.0
    %1598 = vmatprep.subr.mxu0 0.0
    %1599 = vmatpush1.msra.mxu0 0.0
    %1600 = vmatprep.subr.mxu0 0.0
    %1601 = vmatpush1.msra.mxu0 0.0
    %1602 = vmatprep.subr.mxu0 0.0
    %1603 = vmatpush1.msra.mxu0 0.0
    %1604 = vmatprep.subr.mxu0 0.0
    %1605 = vmatpush1.msra.mxu0 0.0
    %1606 = vmatprep.subr.mxu0 0.0
    %1607 = vmatpush1.msra.mxu0 0.0
    %1608 = vmatprep.subr.mxu0 0.0
    %1609 = vmatpush1.msra.mxu0 0.0
    %1610 = vmatprep.mubr.f32.mxu0 0.0
    %1611 = vmatmul.mubr.f32.gmra.mrb[0].mxu0 %v1535
    %v1612 = vpop.f32.mrb[0].mxu0
    %v1613 = vadd.f32 %v1516, %v1612
    %v1614 = vpop.f32.mrb[0].mxu0
    %1615 = vmatprep.mubr.f32.mxu0 0.0
    %1616 = vmatmul.mubr.f32.gmra.mrb[0].mxu0 %v1538
    %v1617 = vpop.f32.mrb[0].mxu0
    %v1618 = vadd.f32 %v1521, %v1617
    %v1619 = vpop.f32.mrb[0].mxu0
    %1620 = vmatprep.mubr.f32.mxu0 0.0
    %1621 = vmatmul.mubr.f32.gmra.mrb[0].mxu0 %v1541
    %v1622 = vpop.f32.mrb[0].mxu0
    %v1623 = vadd.f32 %v1526, %v1622
    %v1624 = vpop.f32.mrb[0].mxu0
    %1625 = vmatprep.mubr.f32.mxu0 0.0
    %1626 = vmatmul.mubr.f32.gmra.mrb[0].mxu0 %v1544
    %v1627 = vpop.f32.mrb[0].mxu0
    %v1628 = vadd.f32 %v1531, %v1627
    %v1629 = vpop.f32.mrb[0].mxu0
    %1630 = vdwg.mxu0
    %v1631 = vadd.f32 %v1613, %v285
    %v1632 = vadd.f32 %v1618, %v290
    %v1633 = vadd.f32 %v1623, %v295
    %v1634 = vadd.f32 %v1628, %v300
    %v1635 = vmax.f32 %v1631, 0.0
    %v1636 = vmax.f32 %v1632, 0.0
    %v1637 = vmax.f32 %v1633, 0.0
    %v1638 = vmax.f32 %v1634, 0.0
    %v1639 = vld [vmem:[%s16] sm:$0xff]
    %v1640 = vld [vmem:[%s16 + $0x8] sm:$0xff]
    %v1641 = vld [vmem:[%s17] sm:$0xff]
    %v1642 = vld [vmem:[%s17 + $0x8] sm:$0xff]
    %1644 = vset.pattern.permute.xlu0 0
    %1645 = vperm.xlu0 %1644, %v1641
    %v1646 = vpop.permute.xlu0 %1645
    %1649 = vset.pattern.permute.xlu0 0
    %1650 = vperm.xlu0 %1649, %v1642
    %v1651 = vpop.permute.xlu0 %1650
    %v1654 = vsel %vm627, %v1639, 0
    %v1657 = vsel %vm627, %v1640, 0
    %1659 = vmatprep.subr.mxu0 0.0
    %1660 = vmatpush1.msra.mxu0 %v1635
    %1661 = vmatprep.subr.mxu0 0.0
    %1662 = vmatpush1.msra.mxu0 %v1636
    %1663 = vmatprep.subr.mxu0 0.0
    %1664 = vmatpush1.msra.mxu0 %v1637
    %1665 = vmatprep.subr.mxu0 0.0
    %1666 = vmatpush1.msra.mxu0 %v1638
    %1667 = vmatprep.subr.mxu0 0.0
    %1668 = vmatpush1.msra.mxu0 0.0
    %1669 = vmatprep.subr.mxu0 0.0
    %1670 = vmatpush1.msra.mxu0 0.0
    %1671 = vmatprep.subr.mxu0 0.0
    %1672 = vmatpush1.msra.mxu0 0.0
    %1673 = vmatprep.subr.mxu0 0.0
    %1674 = vmatpush1.msra.mxu0 0.0
    %1675 = vmatprep.subr.mxu0 0.0
    %1676 = vmatpush1.msra.mxu0 0.0
    %1677 = vmatprep.subr.mxu0 0.0
    %1678 = vmatpush1.msra.mxu0 0.0
    %1679 = vmatprep.subr.mxu0 0.0
    %1680 = vmatpush1.msra.mxu0 0.0
    %1681 = vmatprep.subr.mxu0 0.0
    %1682 = vmatpush1.msra.mxu0 0.0
    %1683 = vmatprep.subr.mxu0 0.0
    %1684 = vmatpush1.msra.mxu0 0.0
    %1685 = vmatprep.subr.mxu0 0.0
    %1686 = vmatpush1.msra.mxu0 0.0
    %1687 = vmatprep.subr.mxu0 0.0
    %1688 = vmatpush1.msra.mxu0 0.0
    %1689 = vmatprep.subr.mxu0 0.0
    %1690 = vmatpush1.msra.mxu0 0.0
    %1691 = vmatprep.subr.mxu0 0.0
    %1692 = vmatpush1.msra.mxu0 0.0
    %1693 = vmatprep.subr.mxu0 0.0
    %1694 = vmatpush1.msra.mxu0 0.0
    %1695 = vmatprep.subr.mxu0 0.0
    %1696 = vmatpush1.msra.mxu0 0.0
    %1697 = vmatprep.subr.mxu0 0.0
    %1698 = vmatpush1.msra.mxu0 0.0
    %1699 = vmatprep.subr.mxu0 0.0
    %1700 = vmatpush1.msra.mxu0 0.0
    %1701 = vmatprep.subr.mxu0 0.0
    %1702 = vmatpush1.msra.mxu0 0.0
    %1703 = vmatprep.subr.mxu0 0.0
    %1704 = vmatpush1.msra.mxu0 0.0
    %1705 = vmatprep.subr.mxu0 0.0
    %1706 = vmatpush1.msra.mxu0 0.0
    %1707 = vmatprep.subr.mxu0 0.0
    %1708 = vmatpush1.msra.mxu0 0.0
    %1709 = vmatprep.subr.mxu0 0.0
    %1710 = vmatpush1.msra.mxu0 0.0
    %1711 = vmatprep.subr.mxu0 0.0
    %1712 = vmatpush1.msra.mxu0 0.0
    %1713 = vmatprep.subr.mxu0 0.0
    %1714 = vmatpush1.msra.mxu0 0.0
    %1715 = vmatprep.subr.mxu0 0.0
    %1716 = vmatpush1.msra.mxu0 0.0
    %1717 = vmatprep.subr.mxu0 0.0
    %1718 = vmatpush1.msra.mxu0 0.0
    %1719 = vmatprep.subr.mxu0 0.0
    %1720 = vmatpush1.msra.mxu0 0.0
    %1721 = vmatprep.subr.mxu0 0.0
    %1722 = vmatpush1.msra.mxu0 0.0
    %1723 = vmatprep.mubr.f32.mxu0 0.0
    %1724 = vmatmul.mubr.f32.gmra.mrb[0].mxu0 %v1654
    %v1725 = vpop.f32.mrb[0].mxu0
    %v1726 = vadd.f32 %v1646, %v1725
    %v1727 = vpop.f32.mrb[0].mxu0
    %1728 = vmatprep.mubr.f32.mxu0 0.0
    %1729 = vmatmul.mubr.f32.gmra.mrb[0].mxu0 %v1657
    %v1730 = vpop.f32.mrb[0].mxu0
    %v1731 = vadd.f32 %v1651, %v1730
    %v1732 = vpop.f32.mrb[0].mxu0
    %1733 = vdwg.mxu0
    %v1734 = vmax.f32 %v1726, 0.0
    %v1735 = vmax.f32 %v1731, 0.0
    %1736 = vmatprep.subr.mxu0 0.0
    %1737 = vmatpush1.msra.mxu0 %v1734
    %1738 = vmatprep.subr.mxu0 0.0
    %1739 = vmatpush1.msra.mxu0 %v1735
    %1740 = vmatprep.subr.mxu0 0.0
    %1741 = vmatpush1.msra.mxu0 0.0
    %1742 = vmatprep.subr.mxu0 0.0
    %1743 = vmatpush1.msra.mxu0 0.0
    %1744 = vmatprep.subr.mxu0 0.0
    %1745 = vmatpush1.msra.mxu0 0.0
    %1746 = vmatprep.subr.mxu0 0.0
    %1747 = vmatpush1.msra.mxu0 0.0
    %1748 = vmatprep.subr.mxu0 0.0
    %1749 = vmatpush1.msra.mxu0 0.0
    %1750 = vmatprep.subr.mxu0 0.0
    %1751 = vmatpush1.msra.mxu0 0.0
    %1752 = vmatprep.subr.mxu0 0.0
    %1753 = vmatpush1.msra.mxu0 0.0
    %1754 = vmatprep.subr.mxu0 0.0
    %1755 = vmatpush1.msra.mxu0 0.0
    %1756 = vmatprep.subr.mxu0 0.0
    %1757 = vmatpush1.msra.mxu0 0.0
    %1758 = vmatprep.subr.mxu0 0.0
    %1759 = vmatpush1.msra.mxu0 0.0
    %1760 = vmatprep.subr.mxu0 0.0
    %1761 = vmatpush1.msra.mxu0 0.0
    %1762 = vmatprep.subr.mxu0 0.0
    %1763 = vmatpush1.msra.mxu0 0.0
    %1764 = vmatprep.subr.mxu0 0.0
    %1765 = vmatpush1.msra.mxu0 0.0
    %1766 = vmatprep.subr.mxu0 0.0
    %1767 = vmatpush1.msra.mxu0 0.0
    %1768 = vmatprep.subr.mxu0 0.0
    %1769 = vmatpush1.msra.mxu0 0.0
    %1770 = vmatprep.subr.mxu0 0.0
    %1771 = vmatpush1.msra.mxu0 0.0
    %1772 = vmatprep.subr.mxu0 0.0
    %1773 = vmatpush1.msra.mxu0 0.0
    %1774 = vmatprep.subr.mxu0 0.0
    %1775 = vmatpush1.msra.mxu0 0.0
    %1776 = vmatprep.subr.mxu0 0.0
    %1777 = vmatpush1.msra.mxu0 0.0
    %1778 = vmatprep.subr.mxu0 0.0
    %1779 = vmatpush1.msra.mxu0 0.0
    %1780 = vmatprep.subr.mxu0 0.0
    %1781 = vmatpush1.msra.mxu0 0.0
    %1782 = vmatprep.subr.mxu0 0.0
    %1783 = vmatpush1.msra.mxu0 0.0
    %1784 = vmatprep.subr.mxu0 0.0
    %1785 = vmatpush1.msra.mxu0 0.0
    %1786 = vmatprep.subr.mxu0 0.0
    %1787 = vmatpush1.msra.mxu0 0.0
    %1788 = vmatprep.subr.mxu0 0.0
    %1789 = vmatpush1.msra.mxu0 0.0
    %1790 = vmatprep.subr.mxu0 0.0
    %1791 = vmatpush1.msra.mxu0 0.0
    %1792 = vmatprep.subr.mxu0 0.0
    %1793 = vmatpush1.msra.mxu0 0.0
    %1794 = vmatprep.subr.mxu0 0.0
    %1795 = vmatpush1.msra.mxu0 0.0
    %1796 = vmatprep.subr.mxu0 0.0
    %1797 = vmatpush1.msra.mxu0 0.0
    %1798 = vmatprep.subr.mxu0 0.0
    %1799 = vmatpush1.msra.mxu0 0.0
    %1800 = vmatprep.mubr.f32.mxu0 0.0
    %1801 = vmatmul.mubr.f32.gmra.mrb[0].mxu0 %v327
    %v1802 = vpop.f32.mrb[0].mxu0
    %v1803 = vadd.f32 %v160, %v1802
    %v1804 = vpop.f32.mrb[0].mxu0
    %1805 = vmatprep.mubr.f32.mxu0 0.0
    %1806 = vmatmul.mubr.f32.gmra.mrb[0].mxu0 %v330
    %v1807 = vpop.f32.mrb[0].mxu0
    %v1808 = vadd.f32 %v165, %v1807
    %v1809 = vpop.f32.mrb[0].mxu0
    %1810 = vmatprep.mubr.f32.mxu0 0.0
    %1811 = vmatmul.mubr.f32.gmra.mrb[0].mxu0 %v333
    %v1812 = vpop.f32.mrb[0].mxu0
    %v1813 = vadd.f32 %v170, %v1812
    %v1814 = vpop.f32.mrb[0].mxu0
    %1815 = vmatprep.mubr.f32.mxu0 0.0
    %1816 = vmatmul.mubr.f32.gmra.mrb[0].mxu0 %v336
    %v1817 = vpop.f32.mrb[0].mxu0
    %v1818 = vadd.f32 %v175, %v1817
    %v1819 = vpop.f32.mrb[0].mxu0
    %1820 = vdwg.mxu0
    %v1821 = vpack.c.bf16 %v1808, %v1803
    %v1822 = vpack.c.bf16 %v1818, %v1813
    %v1824 = vsel %vm80, %v1821, 0
    %v1827 = vsel %vm80, %v1822, 0
    %1829 = vmatprep.subr.bf16.mxu0 0
    %1830 = vmatpush1.bf16.msra.mxu0 %v552
    %1831 = vmatprep.subr.bf16.mxu0 0
    %1832 = vmatpush1.bf16.msra.mxu0 0
    %1833 = vmatprep.subr.bf16.mxu0 0
    %1834 = vmatpush1.bf16.msra.mxu0 0
    %1835 = vmatprep.subr.bf16.mxu0 0
    %1836 = vmatpush1.bf16.msra.mxu0 0
    %1837 = vmatprep.subr.bf16.mxu0 0
    %1838 = vmatpush1.bf16.msra.mxu0 0
    %1839 = vmatprep.subr.bf16.mxu0 0
    %1840 = vmatpush1.bf16.msra.mxu0 0
    %1841 = vmatprep.subr.bf16.mxu0 0
    %1842 = vmatpush1.bf16.msra.mxu0 0
    %1843 = vmatprep.subr.bf16.mxu0 0
    %1844 = vmatpush1.bf16.msra.mxu0 0
    %1845 = vmatprep.subr.bf16.mxu0 0
    %1846 = vmatpush1.bf16.msra.mxu0 0
    %1847 = vmatprep.subr.bf16.mxu0 0
    %1848 = vmatpush1.bf16.msra.mxu0 0
    %1849 = vmatprep.subr.bf16.mxu0 0
    %1850 = vmatpush1.bf16.msra.mxu0 0
    %1851 = vmatprep.subr.bf16.mxu0 0
    %1852 = vmatpush1.bf16.msra.mxu0 0
    %1853 = vmatprep.subr.bf16.mxu0 0
    %1854 = vmatpush1.bf16.msra.mxu0 0
    %1855 = vmatprep.subr.bf16.mxu0 0
    %1856 = vmatpush1.bf16.msra.mxu0 0
    %1857 = vmatprep.subr.bf16.mxu0 0
    %1858 = vmatpush1.bf16.msra.mxu0 0
    %1859 = vmatprep.subr.bf16.mxu0 0
    %1860 = vmatpush1.bf16.msra.mxu0 0
    %1861 = vmatprep.mubr.bf16.mxu0 0
    %1862 = vmatmul.mubr.bf16.gmra.mrb[0].mxu0 %v1824
    %v1863 = vpop.f32.mrb[0].mxu0
    %v1864 = vadd.f32 %v526, %v1863
    %v1865 = vpop.f32.mrb[0].mxu0
    %v1866 = vpop.f32.mrb[0].mxu0
    %v1867 = vadd.f32 %v531, %v1866
    %v1868 = vpop.f32.mrb[0].mxu0
    %1869 = vmatprep.mubr.bf16.mxu0 0
    %1870 = vmatmul.mubr.bf16.gmra.mrb[0].mxu0 %v1827
    %v1871 = vpop.f32.mrb[0].mxu0
    %v1872 = vadd.f32 %v536, %v1871
    %v1873 = vpop.f32.mrb[0].mxu0
    %v1874 = vpop.f32.mrb[0].mxu0
    %v1875 = vadd.f32 %v541, %v1874
    %v1876 = vpop.f32.mrb[0].mxu0
    %1877 = vdwg.mxu0
    %v1878 = vmax.f32 %v1864, 0.0
    %v1879 = vmax.f32 %v1867, 0.0
    %v1880 = vmax.f32 %v1872, 0.0
    %v1881 = vmax.f32 %v1875, 0.0
    %1882 = vmatprep.subr.mxu0 0.0
    %1883 = vmatpush1.msra.mxu0 %v1878
    %1884 = vmatprep.subr.mxu0 0.0
    %1885 = vmatpush1.msra.mxu0 %v1879
    %1886 = vmatprep.subr.mxu0 0.0
    %1887 = vmatpush1.msra.mxu0 %v1880
    %1888 = vmatprep.subr.mxu0 0.0
    %1889 = vmatpush1.msra.mxu0 %v1881
    %1890 = vmatprep.subr.mxu0 0.0
    %1891 = vmatpush1.msra.mxu0 0.0
    %1892 = vmatprep.subr.mxu0 0.0
    %1893 = vmatpush1.msra.mxu0 0.0
    %1894 = vmatprep.subr.mxu0 0.0
    %1895 = vmatpush1.msra.mxu0 0.0
    %1896 = vmatprep.subr.mxu0 0.0
    %1897 = vmatpush1.msra.mxu0 0.0
    %1898 = vmatprep.subr.mxu0 0.0
    %1899 = vmatpush1.msra.mxu0 0.0
    %1900 = vmatprep.subr.mxu0 0.0
    %1901 = vmatpush1.msra.mxu0 0.0
    %1902 = vmatprep.subr.mxu0 0.0
    %1903 = vmatpush1.msra.mxu0 0.0
    %1904 = vmatprep.subr.mxu0 0.0
    %1905 = vmatpush1.msra.mxu0 0.0
    %1906 = vmatprep.subr.mxu0 0.0
    %1907 = vmatpush1.msra.mxu0 0.0
    %1908 = vmatprep.subr.mxu0 0.0
    %1909 = vmatpush1.msra.mxu0 0.0
    %1910 = vmatprep.subr.mxu0 0.0
    %1911 = vmatpush1.msra.mxu0 0.0
    %1912 = vmatprep.subr.mxu0 0.0
    %1913 = vmatpush1.msra.mxu0 0.0
    %1914 = vmatprep.subr.mxu0 0.0
    %1915 = vmatpush1.msra.mxu0 0.0
    %1916 = vmatprep.subr.mxu0 0.0
    %1917 = vmatpush1.msra.mxu0 0.0
    %1918 = vmatprep.subr.mxu0 0.0
    %1919 = vmatpush1.msra.mxu0 0.0
    %1920 = vmatprep.subr.mxu0 0.0
    %1921 = vmatpush1.msra.mxu0 0.0
    %1922 = vmatprep.subr.mxu0 0.0
    %1923 = vmatpush1.msra.mxu0 0.0
    %1924 = vmatprep.subr.mxu0 0.0
    %1925 = vmatpush1.msra.mxu0 0.0
    %1926 = vmatprep.subr.mxu0 0.0
    %1927 = vmatpush1.msra.mxu0 0.0
    %1928 = vmatprep.subr.mxu0 0.0
    %1929 = vmatpush1.msra.mxu0 0.0
    %1930 = vmatprep.subr.mxu0 0.0
    %1931 = vmatpush1.msra.mxu0 0.0
    %1932 = vmatprep.subr.mxu0 0.0
    %1933 = vmatpush1.msra.mxu0 0.0
    %1934 = vmatprep.subr.mxu0 0.0
    %1935 = vmatpush1.msra.mxu0 0.0
    %1936 = vmatprep.subr.mxu0 0.0
    %1937 = vmatpush1.msra.mxu0 0.0
    %1938 = vmatprep.subr.mxu0 0.0
    %1939 = vmatpush1.msra.mxu0 0.0
    %1940 = vmatprep.subr.mxu0 0.0
    %1941 = vmatpush1.msra.mxu0 0.0
    %1942 = vmatprep.subr.mxu0 0.0
    %1943 = vmatpush1.msra.mxu0 0.0
    %1944 = vmatprep.subr.mxu0 0.0
    %1945 = vmatpush1.msra.mxu0 0.0
    %1946 = vmatprep.mubr.f32.mxu0 0.0
    %1947 = vmatmul.mubr.f32.gmra.mrb[0].mxu0 %v629
    %v1948 = vpop.f32.mrb[0].mxu0
    %v1949 = vadd.f32 %v610, %v1948
    %v1950 = vpop.f32.mrb[0].mxu0
    %1951 = vmatprep.mubr.f32.mxu0 0.0
    %1952 = vmatmul.mubr.f32.gmra.mrb[0].mxu0 %v632
    %v1953 = vpop.f32.mrb[0].mxu0
    %v1954 = vadd.f32 %v615, %v1953
    %v1955 = vpop.f32.mrb[0].mxu0
    %1956 = vmatprep.mubr.f32.mxu0 0.0
    %1957 = vmatmul.mubr.f32.gmra.mrb[0].mxu0 %v635
    %v1958 = vpop.f32.mrb[0].mxu0
    %v1959 = vadd.f32 %v620, %v1958
    %v1960 = vpop.f32.mrb[0].mxu0
    %1961 = vmatprep.mubr.f32.mxu0 0.0
    %1962 = vmatmul.mubr.f32.gmra.mrb[0].mxu0 %v638
    %v1963 = vpop.f32.mrb[0].mxu0
    %v1964 = vadd.f32 %v625, %v1963
    %v1965 = vpop.f32.mrb[0].mxu0
    %1966 = vdwg.mxu0
    %v1967 = vmax.f32 %v1949, 0.0
    %v1968 = vmax.f32 %v1954, 0.0
    %v1969 = vmax.f32 %v1959, 0.0
    %v1970 = vmax.f32 %v1964, 0.0
    %v1975 = vcombine.high %v1967, %v1967
    %v1977 = vunpack.c.l.s4 1966171168
    %v1978 = vunpack.c.0.s8 %v1977
    %v1979 = vlaneseq
    %v1980 = vshrl.u32 %v1979, 7
    %v1981 = vsub.s32 %v1978, %v1980
    %v1982 = vrot.slane %v1967, %v1981
    %v1984 = vunpack.c.l.s4 1966171168
    %v1985 = vunpack.c.0.s8 %v1984
    %v1986 = vlaneseq
    %v1987 = vshrl.u32 %v1986, 7
    %v1988 = vsub.s32 %v1985, %v1987
    %v1989 = vrot.slane %v1975, %v1988
    %v1990 = vcombine.high %v1982, %v1982
    %v1991 = vcombine.high %v1989, %v1989
    %v1993 = vunpack.c.l.s4 1966171168
    %v1994 = vunpack.c.0.s8 %v1993
    %v1995 = vlaneseq
    %v1996 = vshrl.u32 %v1995, 7
    %v1997 = vsub.s32 %v1994, %v1996
    %v1998 = vrot.slane %v1982, %v1997
    %v2000 = vunpack.c.l.s4 1966171168
    %v2001 = vunpack.c.0.s8 %v2000
    %v2002 = vlaneseq
    %v2003 = vshrl.u32 %v2002, 7
    %v2004 = vsub.s32 %v2001, %v2003
    %v2005 = vrot.slane %v1989, %v2004
    %v2007 = vunpack.c.l.s4 1966171168
    %v2008 = vunpack.c.0.s8 %v2007
    %v2009 = vlaneseq
    %v2010 = vshrl.u32 %v2009, 7
    %v2011 = vsub.s32 %v2008, %v2010
    %v2012 = vrot.slane %v1990, %v2011
    %v2014 = vunpack.c.l.s4 1966171168
    %v2015 = vunpack.c.0.s8 %v2014
    %v2016 = vlaneseq
    %v2017 = vshrl.u32 %v2016, 7
    %v2018 = vsub.s32 %v2015, %v2017
    %v2019 = vrot.slane %v1991, %v2018
    %v2020 = vcombine.high %v1998, %v1998
    %v2021 = vcombine.high %v2005, %v2005
    %v2022 = vcombine.high %v2012, %v2012
    %v2023 = vcombine.high %v2019, %v2019
    %v2024 = vcombine.high %v1968, %v1968
    %v2026 = vunpack.c.l.s4 1966171168
    %v2027 = vunpack.c.0.s8 %v2026
    %v2028 = vlaneseq
    %v2029 = vshrl.u32 %v2028, 7
    %v2030 = vsub.s32 %v2027, %v2029
    %v2031 = vrot.slane %v1968, %v2030
    %v2033 = vunpack.c.l.s4 1966171168
    %v2034 = vunpack.c.0.s8 %v2033
    %v2035 = vlaneseq
    %v2036 = vshrl.u32 %v2035, 7
    %v2037 = vsub.s32 %v2034, %v2036
    %v2038 = vrot.slane %v2024, %v2037
    %v2039 = vcombine.high %v2031, %v2031
    %v2040 = vcombine.high %v2038, %v2038
    %v2042 = vunpack.c.l.s4 1966171168
    %v2043 = vunpack.c.0.s8 %v2042
    %v2044 = vlaneseq
    %v2045 = vshrl.u32 %v2044, 7
    %v2046 = vsub.s32 %v2043, %v2045
    %v2047 = vrot.slane %v2031, %v2046
    %v2049 = vunpack.c.l.s4 1966171168
    %v2050 = vunpack.c.0.s8 %v2049
    %v2051 = vlaneseq
    %v2052 = vshrl.u32 %v2051, 7
    %v2053 = vsub.s32 %v2050, %v2052
    %v2054 = vrot.slane %v2038, %v2053
    %v2056 = vunpack.c.l.s4 1966171168
    %v2057 = vunpack.c.0.s8 %v2056
    %v2058 = vlaneseq
    %v2059 = vshrl.u32 %v2058, 7
    %v2060 = vsub.s32 %v2057, %v2059
    %v2061 = vrot.slane %v2039, %v2060
    %v2063 = vunpack.c.l.s4 1966171168
    %v2064 = vunpack.c.0.s8 %v2063
    %v2065 = vlaneseq
    %v2066 = vshrl.u32 %v2065, 7
    %v2067 = vsub.s32 %v2064, %v2066
    %v2068 = vrot.slane %v2040, %v2067
    %v2069 = vcombine.high %v2047, %v2047
    %v2070 = vcombine.high %v2054, %v2054
    %v2071 = vcombine.high %v2061, %v2061
    %v2072 = vcombine.high %v2068, %v2068
    %v2073 = vcombine.high %v1969, %v1969
    %v2075 = vunpack.c.l.s4 1966171168
    %v2076 = vunpack.c.0.s8 %v2075
    %v2077 = vlaneseq
    %v2078 = vshrl.u32 %v2077, 7
    %v2079 = vsub.s32 %v2076, %v2078
    %v2080 = vrot.slane %v1969, %v2079
    %v2082 = vunpack.c.l.s4 1966171168
    %v2083 = vunpack.c.0.s8 %v2082
    %v2084 = vlaneseq
    %v2085 = vshrl.u32 %v2084, 7
    %v2086 = vsub.s32 %v2083, %v2085
    %v2087 = vrot.slane %v2073, %v2086
    %v2088 = vcombine.high %v2080, %v2080
    %v2089 = vcombine.high %v2087, %v2087
    %v2091 = vunpack.c.l.s4 1966171168
    %v2092 = vunpack.c.0.s8 %v2091
    %v2093 = vlaneseq
    %v2094 = vshrl.u32 %v2093, 7
    %v2095 = vsub.s32 %v2092, %v2094
    %v2096 = vrot.slane %v2080, %v2095
    %v2098 = vunpack.c.l.s4 1966171168
    %v2099 = vunpack.c.0.s8 %v2098
    %v2100 = vlaneseq
    %v2101 = vshrl.u32 %v2100, 7
    %v2102 = vsub.s32 %v2099, %v2101
    %v2103 = vrot.slane %v2087, %v2102
    %v2105 = vunpack.c.l.s4 1966171168
    %v2106 = vunpack.c.0.s8 %v2105
    %v2107 = vlaneseq
    %v2108 = vshrl.u32 %v2107, 7
    %v2109 = vsub.s32 %v2106, %v2108
    %v2110 = vrot.slane %v2088, %v2109
    %v2112 = vunpack.c.l.s4 1966171168
    %v2113 = vunpack.c.0.s8 %v2112
    %v2114 = vlaneseq
    %v2115 = vshrl.u32 %v2114, 7
    %v2116 = vsub.s32 %v2113, %v2115
    %v2117 = vrot.slane %v2089, %v2116
    %v2118 = vcombine.high %v2096, %v2096
    %v2119 = vcombine.high %v2103, %v2103
    %v2120 = vcombine.high %v2110, %v2110
    %v2121 = vcombine.high %v2117, %v2117
    %v2122 = vcombine.high %v1970, %v1970
    %v2124 = vunpack.c.l.s4 1966171168
    %v2125 = vunpack.c.0.s8 %v2124
    %v2126 = vlaneseq
    %v2127 = vshrl.u32 %v2126, 7
    %v2128 = vsub.s32 %v2125, %v2127
    %v2129 = vrot.slane %v1970, %v2128
    %v2131 = vunpack.c.l.s4 1966171168
    %v2132 = vunpack.c.0.s8 %v2131
    %v2133 = vlaneseq
    %v2134 = vshrl.u32 %v2133, 7
    %v2135 = vsub.s32 %v2132, %v2134
    %v2136 = vrot.slane %v2122, %v2135
    %v2137 = vcombine.high %v2129, %v2129
    %v2138 = vcombine.high %v2136, %v2136
    %v2140 = vunpack.c.l.s4 1966171168
    %v2141 = vunpack.c.0.s8 %v2140
    %v2142 = vlaneseq
    %v2143 = vshrl.u32 %v2142, 7
    %v2144 = vsub.s32 %v2141, %v2143
    %v2145 = vrot.slane %v2129, %v2144
    %v2147 = vunpack.c.l.s4 1966171168
    %v2148 = vunpack.c.0.s8 %v2147
    %v2149 = vlaneseq
    %v2150 = vshrl.u32 %v2149, 7
    %v2151 = vsub.s32 %v2148, %v2150
    %v2152 = vrot.slane %v2136, %v2151
    %v2154 = vunpack.c.l.s4 1966171168
    %v2155 = vunpack.c.0.s8 %v2154
    %v2156 = vlaneseq
    %v2157 = vshrl.u32 %v2156, 7
    %v2158 = vsub.s32 %v2155, %v2157
    %v2159 = vrot.slane %v2137, %v2158
    %v2161 = vunpack.c.l.s4 1966171168
    %v2162 = vunpack.c.0.s8 %v2161
    %v2163 = vlaneseq
    %v2164 = vshrl.u32 %v2163, 7
    %v2165 = vsub.s32 %v2162, %v2164
    %v2166 = vrot.slane %v2138, %v2165
    %v2167 = vcombine.high %v2145, %v2145
    %v2168 = vcombine.high %v2152, %v2152
    %v2169 = vcombine.high %v2159, %v2159
    %v2170 = vcombine.high %v2166, %v2166
    %v2171 = vlaneseq
    %v2172 = vshrl.u32 %v2171, 7
    %v2173 = vsub.s32 0, %v2172
    %v2174 = vrot.slane %v1998, %v2173
    %v2175 = vlaneseq
    %v2176 = vshrl.u32 %v2175, 7
    %v2177 = vsub.s32 0, %v2176
    %v2178 = vrot.slane %v2012, %v2177
    %v2179 = vlaneseq
    %v2180 = vshrl.u32 %v2179, 7
    %v2181 = vsub.s32 0, %v2180
    %v2182 = vrot.slane %v2020, %v2181
    %v2183 = vlaneseq
    %v2184 = vshrl.u32 %v2183, 7
    %v2185 = vsub.s32 0, %v2184
    %v2186 = vrot.slane %v2022, %v2185
    %v2187 = vlaneseq
    %v2188 = vshrl.u32 %v2187, 7
    %v2189 = vsub.s32 0, %v2188
    %v2190 = vrot.slane %v2005, %v2189
    %v2191 = vlaneseq
    %v2192 = vshrl.u32 %v2191, 7
    %v2193 = vsub.s32 0, %v2192
    %v2194 = vrot.slane %v2019, %v2193
    %v2195 = vlaneseq
    %v2196 = vshrl.u32 %v2195, 7
    %v2197 = vsub.s32 0, %v2196
    %v2198 = vrot.slane %v2021, %v2197
    %v2199 = vlaneseq
    %v2200 = vshrl.u32 %v2199, 7
    %v2201 = vsub.s32 0, %v2200
    %v2202 = vrot.slane %v2023, %v2201
    %v2203 = vlaneseq
    %v2204 = vshrl.u32 %v2203, 7
    %v2205 = vsub.s32 0, %v2204
    %v2206 = vrot.slane %v2047, %v2205
    %v2207 = vlaneseq
    %v2208 = vshrl.u32 %v2207, 7
    %v2209 = vsub.s32 0, %v2208
    %v2210 = vrot.slane %v2061, %v2209
    %v2211 = vlaneseq
    %v2212 = vshrl.u32 %v2211, 7
    %v2213 = vsub.s32 0, %v2212
    %v2214 = vrot.slane %v2069, %v2213
    %v2215 = vlaneseq
    %v2216 = vshrl.u32 %v2215, 7
    %v2217 = vsub.s32 0, %v2216
    %v2218 = vrot.slane %v2071, %v2217
    %v2219 = vlaneseq
    %v2220 = vshrl.u32 %v2219, 7
    %v2221 = vsub.s32 0, %v2220
    %v2222 = vrot.slane %v2054, %v2221
    %v2223 = vlaneseq
    %v2224 = vshrl.u32 %v2223, 7
    %v2225 = vsub.s32 0, %v2224
    %v2226 = vrot.slane %v2068, %v2225
    %v2227 = vlaneseq
    %v2228 = vshrl.u32 %v2227, 7
    %v2229 = vsub.s32 0, %v2228
    %v2230 = vrot.slane %v2070, %v2229
    %v2231 = vlaneseq
    %v2232 = vshrl.u32 %v2231, 7
    %v2233 = vsub.s32 0, %v2232
    %v2234 = vrot.slane %v2072, %v2233
    %v2235 = vlaneseq
    %v2236 = vshrl.u32 %v2235, 7
    %v2237 = vsub.s32 0, %v2236
    %v2238 = vrot.slane %v2096, %v2237
    %v2239 = vlaneseq
    %v2240 = vshrl.u32 %v2239, 7
    %v2241 = vsub.s32 0, %v2240
    %v2242 = vrot.slane %v2110, %v2241
    %v2243 = vlaneseq
    %v2244 = vshrl.u32 %v2243, 7
    %v2245 = vsub.s32 0, %v2244
    %v2246 = vrot.slane %v2118, %v2245
    %v2247 = vlaneseq
    %v2248 = vshrl.u32 %v2247, 7
    %v2249 = vsub.s32 0, %v2248
    %v2250 = vrot.slane %v2120, %v2249
    %v2251 = vlaneseq
    %v2252 = vshrl.u32 %v2251, 7
    %v2253 = vsub.s32 0, %v2252
    %v2254 = vrot.slane %v2103, %v2253
    %v2255 = vlaneseq
    %v2256 = vshrl.u32 %v2255, 7
    %v2257 = vsub.s32 0, %v2256
    %v2258 = vrot.slane %v2117, %v2257
    %v2259 = vlaneseq
    %v2260 = vshrl.u32 %v2259, 7
    %v2261 = vsub.s32 0, %v2260
    %v2262 = vrot.slane %v2119, %v2261
    %v2263 = vlaneseq
    %v2264 = vshrl.u32 %v2263, 7
    %v2265 = vsub.s32 0, %v2264
    %v2266 = vrot.slane %v2121, %v2265
    %v2267 = vlaneseq
    %v2268 = vshrl.u32 %v2267, 7
    %v2269 = vsub.s32 0, %v2268
    %v2270 = vrot.slane %v2145, %v2269
    %v2271 = vlaneseq
    %v2272 = vshrl.u32 %v2271, 7
    %v2273 = vsub.s32 0, %v2272
    %v2274 = vrot.slane %v2159, %v2273
    %v2275 = vlaneseq
    %v2276 = vshrl.u32 %v2275, 7
    %v2277 = vsub.s32 0, %v2276
    %v2278 = vrot.slane %v2167, %v2277
    %v2279 = vlaneseq
    %v2280 = vshrl.u32 %v2279, 7
    %v2281 = vsub.s32 0, %v2280
    %v2282 = vrot.slane %v2169, %v2281
    %v2283 = vlaneseq
    %v2284 = vshrl.u32 %v2283, 7
    %v2285 = vsub.s32 0, %v2284
    %v2286 = vrot.slane %v2152, %v2285
    %v2287 = vlaneseq
    %v2288 = vshrl.u32 %v2287, 7
    %v2289 = vsub.s32 0, %v2288
    %v2290 = vrot.slane %v2166, %v2289
    %v2291 = vlaneseq
    %v2292 = vshrl.u32 %v2291, 7
    %v2293 = vsub.s32 0, %v2292
    %v2294 = vrot.slane %v2168, %v2293
    %v2295 = vlaneseq
    %v2296 = vshrl.u32 %v2295, 7
    %v2297 = vsub.s32 0, %v2296
    %v2298 = vrot.slane %v2170, %v2297
    %v2331 = vadd.f32 %v2174, %v929
    %v2332 = vadd.f32 %v2178, %v929
    %v2333 = vadd.f32 %v2182, %v929
    %v2334 = vadd.f32 %v2186, %v929
    %v2335 = vadd.f32 %v2190, %v929
    %v2336 = vadd.f32 %v2194, %v929
    %v2337 = vadd.f32 %v2198, %v929
    %v2338 = vadd.f32 %v2202, %v929
    %v2339 = vadd.f32 %v2206, %v929
    %v2340 = vadd.f32 %v2210, %v929
    %v2341 = vadd.f32 %v2214, %v929
    %v2342 = vadd.f32 %v2218, %v929
    %v2343 = vadd.f32 %v2222, %v929
    %v2344 = vadd.f32 %v2226, %v929
    %v2345 = vadd.f32 %v2230, %v929
    %v2346 = vadd.f32 %v2234, %v929
    %v2347 = vadd.f32 %v2238, %v929
    %v2348 = vadd.f32 %v2242, %v929
    %v2349 = vadd.f32 %v2246, %v929
    %v2350 = vadd.f32 %v2250, %v929
    %v2351 = vadd.f32 %v2254, %v929
    %v2352 = vadd.f32 %v2258, %v929
    %v2353 = vadd.f32 %v2262, %v929
    %v2354 = vadd.f32 %v2266, %v929
    %v2355 = vadd.f32 %v2270, %v929
    %v2356 = vadd.f32 %v2274, %v929
    %v2357 = vadd.f32 %v2278, %v929
    %v2358 = vadd.f32 %v2282, %v929
    %v2359 = vadd.f32 %v2286, %v929
    %v2360 = vadd.f32 %v2290, %v929
    %v2361 = vadd.f32 %v2294, %v929
    %v2362 = vadd.f32 %v2298, %v929
    %2363 = vmax.xlane.f32.xlu0 %v2331
    %v2364 = vpop.xlane.xlu0 %2363
    %2365 = vmax.xlane.f32.xlu0 %v2332
    %v2366 = vpop.xlane.xlu0 %2365
    %2367 = vmax.xlane.f32.xlu0 %v2333
    %v2368 = vpop.xlane.xlu0 %2367
    %2369 = vmax.xlane.f32.xlu0 %v2334
    %v2370 = vpop.xlane.xlu0 %2369
    %2371 = vmax.xlane.f32.xlu0 %v2335
    %v2372 = vpop.xlane.xlu0 %2371
    %2373 = vmax.xlane.f32.xlu0 %v2336
    %v2374 = vpop.xlane.xlu0 %2373
    %2375 = vmax.xlane.f32.xlu0 %v2337
    %v2376 = vpop.xlane.xlu0 %2375
    %2377 = vmax.xlane.f32.xlu0 %v2338
    %v2378 = vpop.xlane.xlu0 %2377
    %2379 = vmax.xlane.f32.xlu0 %v2339
    %v2380 = vpop.xlane.xlu0 %2379
    %2381 = vmax.xlane.f32.xlu0 %v2340
    %v2382 = vpop.xlane.xlu0 %2381
    %2383 = vmax.xlane.f32.xlu0 %v2341
    %v2384 = vpop.xlane.xlu0 %2383
    %2385 = vmax.xlane.f32.xlu0 %v2342
    %v2386 = vpop.xlane.xlu0 %2385
    %2387 = vmax.xlane.f32.xlu0 %v2343
    %v2388 = vpop.xlane.xlu0 %2387
    %2389 = vmax.xlane.f32.xlu0 %v2344
    %v2390 = vpop.xlane.xlu0 %2389
    %2391 = vmax.xlane.f32.xlu0 %v2345
    %v2392 = vpop.xlane.xlu0 %2391
    %2393 = vmax.xlane.f32.xlu0 %v2346
    %v2394 = vpop.xlane.xlu0 %2393
    %2395 = vmax.xlane.f32.xlu0 %v2347
    %v2396 = vpop.xlane.xlu0 %2395
    %2397 = vmax.xlane.f32.xlu0 %v2348
    %v2398 = vpop.xlane.xlu0 %2397
    %2399 = vmax.xlane.f32.xlu0 %v2349
    %v2400 = vpop.xlane.xlu0 %2399
    %2401 = vmax.xlane.f32.xlu0 %v2350
    %v2402 = vpop.xlane.xlu0 %2401
    %2403 = vmax.xlane.f32.xlu0 %v2351
    %v2404 = vpop.xlane.xlu0 %2403
    %2405 = vmax.xlane.f32.xlu0 %v2352
    %v2406 = vpop.xlane.xlu0 %2405
    %2407 = vmax.xlane.f32.xlu0 %v2353
    %v2408 = vpop.xlane.xlu0 %2407
    %2409 = vmax.xlane.f32.xlu0 %v2354
    %v2410 = vpop.xlane.xlu0 %2409
    %2411 = vmax.xlane.f32.xlu0 %v2355
    %v2412 = vpop.xlane.xlu0 %2411
    %2413 = vmax.xlane.f32.xlu0 %v2356
    %v2414 = vpop.xlane.xlu0 %2413
    %2415 = vmax.xlane.f32.xlu0 %v2357
    %v2416 = vpop.xlane.xlu0 %2415
    %2417 = vmax.xlane.f32.xlu0 %v2358
    %v2418 = vpop.xlane.xlu0 %2417
    %2419 = vmax.xlane.f32.xlu0 %v2359
    %v2420 = vpop.xlane.xlu0 %2419
    %2421 = vmax.xlane.f32.xlu0 %v2360
    %v2422 = vpop.xlane.xlu0 %2421
    %2423 = vmax.xlane.f32.xlu0 %v2361
    %v2424 = vpop.xlane.xlu0 %2423
    %2425 = vmax.xlane.f32.xlu0 %v2362
    %v2426 = vpop.xlane.xlu0 %2425
    %v2427 = vmax.f32 %v2364, -3e+38
    %v2428 = vmax.f32 %v2366, -3e+38
    %v2429 = vmax.f32 %v2368, -3e+38
    %v2430 = vmax.f32 %v2370, -3e+38
    %v2431 = vmax.f32 %v2372, -3e+38
    %v2432 = vmax.f32 %v2374, -3e+38
    %v2433 = vmax.f32 %v2376, -3e+38
    %v2434 = vmax.f32 %v2378, -3e+38
    %v2435 = vmax.f32 %v2380, -3e+38
    %v2436 = vmax.f32 %v2382, -3e+38
    %v2437 = vmax.f32 %v2384, -3e+38
    %v2438 = vmax.f32 %v2386, -3e+38
    %v2439 = vmax.f32 %v2388, -3e+38
    %v2440 = vmax.f32 %v2390, -3e+38
    %v2441 = vmax.f32 %v2392, -3e+38
    %v2442 = vmax.f32 %v2394, -3e+38
    %v2443 = vmax.f32 %v2396, -3e+38
    %v2444 = vmax.f32 %v2398, -3e+38
    %v2445 = vmax.f32 %v2400, -3e+38
    %v2446 = vmax.f32 %v2402, -3e+38
    %v2447 = vmax.f32 %v2404, -3e+38
    %v2448 = vmax.f32 %v2406, -3e+38
    %v2449 = vmax.f32 %v2408, -3e+38
    %v2450 = vmax.f32 %v2410, -3e+38
    %v2451 = vmax.f32 %v2412, -3e+38
    %v2452 = vmax.f32 %v2414, -3e+38
    %v2453 = vmax.f32 %v2416, -3e+38
    %v2454 = vmax.f32 %v2418, -3e+38
    %v2455 = vmax.f32 %v2420, -3e+38
    %v2456 = vmax.f32 %v2422, -3e+38
    %v2457 = vmax.f32 %v2424, -3e+38
    %v2458 = vmax.f32 %v2426, -3e+38
    %v2491 = vlaneseq
    %v2492 = vshrl.u32 %v2491, 7
    %v2493 = vsub.s32 %v1257, %v2492
    %v2494 = vrot.slane %v2427, %v2493
    %v2495 = vlaneseq
    %v2496 = vshrl.u32 %v2495, 7
    %v2497 = vsub.s32 %v1257, %v2496
    %v2498 = vrot.slane %v2428, %v2497
    %v2499 = vlaneseq
    %v2500 = vshrl.u32 %v2499, 7
    %v2501 = vsub.s32 %v1257, %v2500
    %v2502 = vrot.slane %v2429, %v2501
    %v2503 = vlaneseq
    %v2504 = vshrl.u32 %v2503, 7
    %v2505 = vsub.s32 %v1257, %v2504
    %v2506 = vrot.slane %v2430, %v2505
    %v2507 = vlaneseq
    %v2508 = vshrl.u32 %v2507, 7
    %v2509 = vsub.s32 %v1257, %v2508
    %v2510 = vrot.slane %v2431, %v2509
    %v2511 = vlaneseq
    %v2512 = vshrl.u32 %v2511, 7
    %v2513 = vsub.s32 %v1257, %v2512
    %v2514 = vrot.slane %v2432, %v2513
    %v2515 = vlaneseq
    %v2516 = vshrl.u32 %v2515, 7
    %v2517 = vsub.s32 %v1257, %v2516
    %v2518 = vrot.slane %v2433, %v2517
    %v2519 = vlaneseq
    %v2520 = vshrl.u32 %v2519, 7
    %v2521 = vsub.s32 %v1257, %v2520
    %v2522 = vrot.slane %v2434, %v2521
    %v2523 = vlaneseq
    %v2524 = vshrl.u32 %v2523, 7
    %v2525 = vsub.s32 %v1257, %v2524
    %v2526 = vrot.slane %v2435, %v2525
    %v2527 = vlaneseq
    %v2528 = vshrl.u32 %v2527, 7
    %v2529 = vsub.s32 %v1257, %v2528
    %v2530 = vrot.slane %v2436, %v2529
    %v2531 = vlaneseq
    %v2532 = vshrl.u32 %v2531, 7
    %v2533 = vsub.s32 %v1257, %v2532
    %v2534 = vrot.slane %v2437, %v2533
    %v2535 = vlaneseq
    %v2536 = vshrl.u32 %v2535, 7
    %v2537 = vsub.s32 %v1257, %v2536
    %v2538 = vrot.slane %v2438, %v2537
    %v2539 = vlaneseq
    %v2540 = vshrl.u32 %v2539, 7
    %v2541 = vsub.s32 %v1257, %v2540
    %v2542 = vrot.slane %v2439, %v2541
    %v2543 = vlaneseq
    %v2544 = vshrl.u32 %v2543, 7
    %v2545 = vsub.s32 %v1257, %v2544
    %v2546 = vrot.slane %v2440, %v2545
    %v2547 = vlaneseq
    %v2548 = vshrl.u32 %v2547, 7
    %v2549 = vsub.s32 %v1257, %v2548
    %v2550 = vrot.slane %v2441, %v2549
    %v2551 = vlaneseq
    %v2552 = vshrl.u32 %v2551, 7
    %v2553 = vsub.s32 %v1257, %v2552
    %v2554 = vrot.slane %v2442, %v2553
    %v2555 = vlaneseq
    %v2556 = vshrl.u32 %v2555, 7
    %v2557 = vsub.s32 %v1257, %v2556
    %v2558 = vrot.slane %v2443, %v2557
    %v2559 = vlaneseq
    %v2560 = vshrl.u32 %v2559, 7
    %v2561 = vsub.s32 %v1257, %v2560
    %v2562 = vrot.slane %v2444, %v2561
    %v2563 = vlaneseq
    %v2564 = vshrl.u32 %v2563, 7
    %v2565 = vsub.s32 %v1257, %v2564
    %v2566 = vrot.slane %v2445, %v2565
    %v2567 = vlaneseq
    %v2568 = vshrl.u32 %v2567, 7
    %v2569 = vsub.s32 %v1257, %v2568
    %v2570 = vrot.slane %v2446, %v2569
    %v2571 = vlaneseq
    %v2572 = vshrl.u32 %v2571, 7
    %v2573 = vsub.s32 %v1257, %v2572
    %v2574 = vrot.slane %v2447, %v2573
    %v2575 = vlaneseq
    %v2576 = vshrl.u32 %v2575, 7
    %v2577 = vsub.s32 %v1257, %v2576
    %v2578 = vrot.slane %v2448, %v2577
    %v2579 = vlaneseq
    %v2580 = vshrl.u32 %v2579, 7
    %v2581 = vsub.s32 %v1257, %v2580
    %v2582 = vrot.slane %v2449, %v2581
    %v2583 = vlaneseq
    %v2584 = vshrl.u32 %v2583, 7
    %v2585 = vsub.s32 %v1257, %v2584
    %v2586 = vrot.slane %v2450, %v2585
    %v2587 = vlaneseq
    %v2588 = vshrl.u32 %v2587, 7
    %v2589 = vsub.s32 %v1257, %v2588
    %v2590 = vrot.slane %v2451, %v2589
    %v2591 = vlaneseq
    %v2592 = vshrl.u32 %v2591, 7
    %v2593 = vsub.s32 %v1257, %v2592
    %v2594 = vrot.slane %v2452, %v2593
    %v2595 = vlaneseq
    %v2596 = vshrl.u32 %v2595, 7
    %v2597 = vsub.s32 %v1257, %v2596
    %v2598 = vrot.slane %v2453, %v2597
    %v2599 = vlaneseq
    %v2600 = vshrl.u32 %v2599, 7
    %v2601 = vsub.s32 %v1257, %v2600
    %v2602 = vrot.slane %v2454, %v2601
    %v2603 = vlaneseq
    %v2604 = vshrl.u32 %v2603, 7
    %v2605 = vsub.s32 %v1257, %v2604
    %v2606 = vrot.slane %v2455, %v2605
    %v2607 = vlaneseq
    %v2608 = vshrl.u32 %v2607, 7
    %v2609 = vsub.s32 %v1257, %v2608
    %v2610 = vrot.slane %v2456, %v2609
    %v2611 = vlaneseq
    %v2612 = vshrl.u32 %v2611, 7
    %v2613 = vsub.s32 %v1257, %v2612
    %v2614 = vrot.slane %v2457, %v2613
    %v2615 = vlaneseq
    %v2616 = vshrl.u32 %v2615, 7
    %v2617 = vsub.s32 %v1257, %v2616
    %v2618 = vrot.slane %v2458, %v2617
    %v2619 = vsel %vm1386, %v2498, %v2494
    %v2620 = vsel %vm1388, %v2502, %v2619
    %v2621 = vsel %vm1390, %v2506, %v2620
    %v2622 = vsel %vm1392, %v2510, %v2621
    %v2623 = vsel %vm1394, %v2514, %v2622
    %v2624 = vsel %vm1396, %v2518, %v2623
    %v2625 = vsel %vm1398, %v2522, %v2624
    %v2626 = vsel %vm1386, %v2530, %v2526
    %v2627 = vsel %vm1388, %v2534, %v2626
    %v2628 = vsel %vm1390, %v2538, %v2627
    %v2629 = vsel %vm1392, %v2542, %v2628
    %v2630 = vsel %vm1394, %v2546, %v2629
    %v2631 = vsel %vm1396, %v2550, %v2630
    %v2632 = vsel %vm1398, %v2554, %v2631
    %v2633 = vsel %vm1386, %v2562, %v2558
    %v2634 = vsel %vm1388, %v2566, %v2633
    %v2635 = vsel %vm1390, %v2570, %v2634
    %v2636 = vsel %vm1392, %v2574, %v2635
    %v2637 = vsel %vm1394, %v2578, %v2636
    %v2638 = vsel %vm1396, %v2582, %v2637
    %v2639 = vsel %vm1398, %v2586, %v2638
    %v2640 = vsel %vm1386, %v2594, %v2590
    %v2641 = vsel %vm1388, %v2598, %v2640
    %v2642 = vsel %vm1390, %v2602, %v2641
    %v2643 = vsel %vm1392, %v2606, %v2642
    %v2644 = vsel %vm1394, %v2610, %v2643
    %v2645 = vsel %vm1396, %v2614, %v2644
    %v2646 = vsel %vm1398, %v2618, %v2645
    %v2651 = vsel %vm1223, %v2625, 0.0
    %v2652 = vsel %vm1223, %v2632, 0.0
    %v2653 = vsel %vm1223, %v2639, 0.0
    %v2654 = vsel %vm1223, %v2646, 0.0
    %2655 = vmatprep.subr.mxu0 0.0
    %2656 = vmatpush1.msra.mxu0 %v2651
    %2657 = vmatprep.subr.mxu0 0.0
    %2658 = vmatpush1.msra.mxu0 %v2652
    %2659 = vmatprep.subr.mxu0 0.0
    %2660 = vmatpush1.msra.mxu0 %v2653
    %2661 = vmatprep.subr.mxu0 0.0
    %2662 = vmatpush1.msra.mxu0 %v2654
    %2663 = vmatprep.subr.mxu0 0.0
    %2664 = vmatpush1.msra.mxu0 0.0
    %2665 = vmatprep.subr.mxu0 0.0
    %2666 = vmatpush1.msra.mxu0 0.0
    %2667 = vmatprep.subr.mxu0 0.0
    %2668 = vmatpush1.msra.mxu0 0.0
    %2669 = vmatprep.subr.mxu0 0.0
    %2670 = vmatpush1.msra.mxu0 0.0
    %2671 = vmatprep.subr.mxu0 0.0
    %2672 = vmatpush1.msra.mxu0 0.0
    %2673 = vmatprep.subr.mxu0 0.0
    %2674 = vmatpush1.msra.mxu0 0.0
    %2675 = vmatprep.subr.mxu0 0.0
    %2676 = vmatpush1.msra.mxu0 0.0
    %2677 = vmatprep.subr.mxu0 0.0
    %2678 = vmatpush1.msra.mxu0 0.0
    %2679 = vmatprep.subr.mxu0 0.0
    %2680 = vmatpush1.msra.mxu0 0.0
    %2681 = vmatprep.subr.mxu0 0.0
    %2682 = vmatpush1.msra.mxu0 0.0
    %2683 = vmatprep.subr.mxu0 0.0
    %2684 = vmatpush1.msra.mxu0 0.0
    %2685 = vmatprep.subr.mxu0 0.0
    %2686 = vmatpush1.msra.mxu0 0.0
    %2687 = vmatprep.subr.mxu0 0.0
    %2688 = vmatpush1.msra.mxu0 0.0
    %2689 = vmatprep.subr.mxu0 0.0
    %2690 = vmatpush1.msra.mxu0 0.0
    %2691 = vmatprep.subr.mxu0 0.0
    %2692 = vmatpush1.msra.mxu0 0.0
    %2693 = vmatprep.subr.mxu0 0.0
    %2694 = vmatpush1.msra.mxu0 0.0
    %2695 = vmatprep.subr.mxu0 0.0
    %2696 = vmatpush1.msra.mxu0 0.0
    %2697 = vmatprep.subr.mxu0 0.0
    %2698 = vmatpush1.msra.mxu0 0.0
    %2699 = vmatprep.subr.mxu0 0.0
    %2700 = vmatpush1.msra.mxu0 0.0
    %2701 = vmatprep.subr.mxu0 0.0
    %2702 = vmatpush1.msra.mxu0 0.0
    %2703 = vmatprep.subr.mxu0 0.0
    %2704 = vmatpush1.msra.mxu0 0.0
    %2705 = vmatprep.subr.mxu0 0.0
    %2706 = vmatpush1.msra.mxu0 0.0
    %2707 = vmatprep.subr.mxu0 0.0
    %2708 = vmatpush1.msra.mxu0 0.0
    %2709 = vmatprep.subr.mxu0 0.0
    %2710 = vmatpush1.msra.mxu0 0.0
    %2711 = vmatprep.subr.mxu0 0.0
    %2712 = vmatpush1.msra.mxu0 0.0
    %2713 = vmatprep.subr.mxu0 0.0
    %2714 = vmatpush1.msra.mxu0 0.0
    %2715 = vmatprep.subr.mxu0 0.0
    %2716 = vmatpush1.msra.mxu0 0.0
    %2717 = vmatprep.subr.mxu0 0.0
    %2718 = vmatpush1.msra.mxu0 0.0
    %2719 = vmatprep.mubr.f32.mxu0 0.0
    %2720 = vmatmul.mubr.f32.gmra.mrb[0].mxu0 %v1438
    %v2721 = vpop.f32.mrb[0].mxu0
    %v2722 = vadd.f32 0.0, %v2721
    %v2723 = vpop.f32.mrb[0].mxu0
    %2724 = vmatprep.mubr.f32.mxu0 0.0
    %2725 = vmatmul.mubr.f32.gmra.mrb[0].mxu0 %v1441
    %v2726 = vpop.f32.mrb[0].mxu0
    %v2727 = vadd.f32 0.0, %v2726
    %v2728 = vpop.f32.mrb[0].mxu0
    %2729 = vmatprep.mubr.f32.mxu0 0.0
    %2730 = vmatmul.mubr.f32.gmra.mrb[0].mxu0 %v1444
    %v2731 = vpop.f32.mrb[0].mxu0
    %v2732 = vadd.f32 0.0, %v2731
    %v2733 = vpop.f32.mrb[0].mxu0
    %2734 = vmatprep.mubr.f32.mxu0 0.0
    %2735 = vmatmul.mubr.f32.gmra.mrb[0].mxu0 %v1447
    %v2736 = vpop.f32.mrb[0].mxu0
    %v2737 = vadd.f32 0.0, %v2736
    %v2738 = vpop.f32.mrb[0].mxu0
    %2739 = vdwg.mxu0
    %2740 = vmatprep.subr.mxu0 0.0
    %2741 = vmatpush1.msra.mxu0 %v1734
    %2742 = vmatprep.subr.mxu0 0.0
    %2743 = vmatpush1.msra.mxu0 %v1735
    %2744 = vmatprep.subr.mxu0 0.0
    %2745 = vmatpush1.msra.mxu0 0.0
    %2746 = vmatprep.subr.mxu0 0.0
    %2747 = vmatpush1.msra.mxu0 0.0
    %2748 = vmatprep.subr.mxu0 0.0
    %2749 = vmatpush1.msra.mxu0 0.0
    %2750 = vmatprep.subr.mxu0 0.0
    %2751 = vmatpush1.msra.mxu0 0.0
    %2752 = vmatprep.subr.mxu0 0.0
    %2753 = vmatpush1.msra.mxu0 0.0
    %2754 = vmatprep.subr.mxu0 0.0
    %2755 = vmatpush1.msra.mxu0 0.0
    %2756 = vmatprep.subr.mxu0 0.0
    %2757 = vmatpush1.msra.mxu0 0.0
    %2758 = vmatprep.subr.mxu0 0.0
    %2759 = vmatpush1.msra.mxu0 0.0
    %2760 = vmatprep.subr.mxu0 0.0
    %2761 = vmatpush1.msra.mxu0 0.0
    %2762 = vmatprep.subr.mxu0 0.0
    %2763 = vmatpush1.msra.mxu0 0.0
    %2764 = vmatprep.subr.mxu0 0.0
    %2765 = vmatpush1.msra.mxu0 0.0
    %2766 = vmatprep.subr.mxu0 0.0
    %2767 = vmatpush1.msra.mxu0 0.0
    %2768 = vmatprep.subr.mxu0 0.0
    %2769 = vmatpush1.msra.mxu0 0.0
    %2770 = vmatprep.subr.mxu0 0.0
    %2771 = vmatpush1.msra.mxu0 0.0
    %2772 = vmatprep.subr.mxu0 0.0
    %2773 = vmatpush1.msra.mxu0 0.0
    %2774 = vmatprep.subr.mxu0 0.0
    %2775 = vmatpush1.msra.mxu0 0.0
    %2776 = vmatprep.subr.mxu0 0.0
    %2777 = vmatpush1.msra.mxu0 0.0
    %2778 = vmatprep.subr.mxu0 0.0
    %2779 = vmatpush1.msra.mxu0 0.0
    %2780 = vmatprep.subr.mxu0 0.0
    %2781 = vmatpush1.msra.mxu0 0.0
    %2782 = vmatprep.subr.mxu0 0.0
    %2783 = vmatpush1.msra.mxu0 0.0
    %2784 = vmatprep.subr.mxu0 0.0
    %2785 = vmatpush1.msra.mxu0 0.0
    %2786 = vmatprep.subr.mxu0 0.0
    %2787 = vmatpush1.msra.mxu0 0.0
    %2788 = vmatprep.subr.mxu0 0.0
    %2789 = vmatpush1.msra.mxu0 0.0
    %2790 = vmatprep.subr.mxu0 0.0
    %2791 = vmatpush1.msra.mxu0 0.0
    %2792 = vmatprep.subr.mxu0 0.0
    %2793 = vmatpush1.msra.mxu0 0.0
    %2794 = vmatprep.subr.mxu0 0.0
    %2795 = vmatpush1.msra.mxu0 0.0
    %2796 = vmatprep.subr.mxu0 0.0
    %2797 = vmatpush1.msra.mxu0 0.0
    %2798 = vmatprep.subr.mxu0 0.0
    %2799 = vmatpush1.msra.mxu0 0.0
    %2800 = vmatprep.subr.mxu0 0.0
    %2801 = vmatpush1.msra.mxu0 0.0
    %2802 = vmatprep.subr.mxu0 0.0
    %2803 = vmatpush1.msra.mxu0 0.0
    %2804 = vmatprep.mubr.f32.mxu0 0.0
    %2805 = vmatmul.mubr.f32.gmra.mrb[0].mxu0 %v1535
    %v2806 = vpop.f32.mrb[0].mxu0
    %v2807 = vadd.f32 %v2722, %v2806
    %v2808 = vpop.f32.mrb[0].mxu0
    %2809 = vmatprep.mubr.f32.mxu0 0.0
    %2810 = vmatmul.mubr.f32.gmra.mrb[0].mxu0 %v1538
    %v2811 = vpop.f32.mrb[0].mxu0
    %v2812 = vadd.f32 %v2727, %v2811
    %v2813 = vpop.f32.mrb[0].mxu0
    %2814 = vmatprep.mubr.f32.mxu0 0.0
    %2815 = vmatmul.mubr.f32.gmra.mrb[0].mxu0 %v1541
    %v2816 = vpop.f32.mrb[0].mxu0
    %v2817 = vadd.f32 %v2732, %v2816
    %v2818 = vpop.f32.mrb[0].mxu0
    %2819 = vmatprep.mubr.f32.mxu0 0.0
    %2820 = vmatmul.mubr.f32.gmra.mrb[0].mxu0 %v1544
    %v2821 = vpop.f32.mrb[0].mxu0
    %v2822 = vadd.f32 %v2737, %v2821
    %v2823 = vpop.f32.mrb[0].mxu0
    %2824 = vdwg.mxu0
    %v2825 = vadd.f32 %v2807, %v285
    %v2826 = vadd.f32 %v2812, %v290
    %v2827 = vadd.f32 %v2817, %v295
    %v2828 = vadd.f32 %v2822, %v300
    %v2829 = vmax.f32 %v2825, 0.0
    %v2830 = vmax.f32 %v2826, 0.0
    %v2831 = vmax.f32 %v2827, 0.0
    %v2832 = vmax.f32 %v2828, 0.0
    %2833 = vmatprep.subr.mxu0 0.0
    %2834 = vmatpush1.msra.mxu0 %v2829
    %2835 = vmatprep.subr.mxu0 0.0
    %2836 = vmatpush1.msra.mxu0 %v2830
    %2837 = vmatprep.subr.mxu0 0.0
    %2838 = vmatpush1.msra.mxu0 %v2831
    %2839 = vmatprep.subr.mxu0 0.0
    %2840 = vmatpush1.msra.mxu0 %v2832
    %2841 = vmatprep.subr.mxu0 0.0
    %2842 = vmatpush1.msra.mxu0 0.0
    %2843 = vmatprep.subr.mxu0 0.0
    %2844 = vmatpush1.msra.mxu0 0.0
    %2845 = vmatprep.subr.mxu0 0.0
    %2846 = vmatpush1.msra.mxu0 0.0
    %2847 = vmatprep.subr.mxu0 0.0
    %2848 = vmatpush1.msra.mxu0 0.0
    %2849 = vmatprep.subr.mxu0 0.0
    %2850 = vmatpush1.msra.mxu0 0.0
    %2851 = vmatprep.subr.mxu0 0.0
    %2852 = vmatpush1.msra.mxu0 0.0
    %2853 = vmatprep.subr.mxu0 0.0
    %2854 = vmatpush1.msra.mxu0 0.0
    %2855 = vmatprep.subr.mxu0 0.0
    %2856 = vmatpush1.msra.mxu0 0.0
    %2857 = vmatprep.subr.mxu0 0.0
    %2858 = vmatpush1.msra.mxu0 0.0
    %2859 = vmatprep.subr.mxu0 0.0
    %2860 = vmatpush1.msra.mxu0 0.0
    %2861 = vmatprep.subr.mxu0 0.0
    %2862 = vmatpush1.msra.mxu0 0.0
    %2863 = vmatprep.subr.mxu0 0.0
    %2864 = vmatpush1.msra.mxu0 0.0
    %2865 = vmatprep.subr.mxu0 0.0
    %2866 = vmatpush1.msra.mxu0 0.0
    %2867 = vmatprep.subr.mxu0 0.0
    %2868 = vmatpush1.msra.mxu0 0.0
    %2869 = vmatprep.subr.mxu0 0.0
    %2870 = vmatpush1.msra.mxu0 0.0
    %2871 = vmatprep.subr.mxu0 0.0
    %2872 = vmatpush1.msra.mxu0 0.0
    %2873 = vmatprep.subr.mxu0 0.0
    %2874 = vmatpush1.msra.mxu0 0.0
    %2875 = vmatprep.subr.mxu0 0.0
    %2876 = vmatpush1.msra.mxu0 0.0
    %2877 = vmatprep.subr.mxu0 0.0
    %2878 = vmatpush1.msra.mxu0 0.0
    %2879 = vmatprep.subr.mxu0 0.0
    %2880 = vmatpush1.msra.mxu0 0.0
    %2881 = vmatprep.subr.mxu0 0.0
    %2882 = vmatpush1.msra.mxu0 0.0
    %2883 = vmatprep.subr.mxu0 0.0
    %2884 = vmatpush1.msra.mxu0 0.0
    %2885 = vmatprep.subr.mxu0 0.0
    %2886 = vmatpush1.msra.mxu0 0.0
    %2887 = vmatprep.subr.mxu0 0.0
    %2888 = vmatpush1.msra.mxu0 0.0
    %2889 = vmatprep.subr.mxu0 0.0
    %2890 = vmatpush1.msra.mxu0 0.0
    %2891 = vmatprep.subr.mxu0 0.0
    %2892 = vmatpush1.msra.mxu0 0.0
    %2893 = vmatprep.subr.mxu0 0.0
    %2894 = vmatpush1.msra.mxu0 0.0
    %2895 = vmatprep.subr.mxu0 0.0
    %2896 = vmatpush1.msra.mxu0 0.0
    %2897 = vmatprep.mubr.f32.mxu0 0.0
    %2898 = vmatmul.mubr.f32.gmra.mrb[0].mxu0 %v1654
    %v2899 = vpop.f32.mrb[0].mxu0
    %v2900 = vadd.f32 %v1646, %v2899
    %v2901 = vpop.f32.mrb[0].mxu0
    %2902 = vmatprep.mubr.f32.mxu0 0.0
    %2903 = vmatmul.mubr.f32.gmra.mrb[0].mxu0 %v1657
    %v2904 = vpop.f32.mrb[0].mxu0
    %v2905 = vadd.f32 %v1651, %v2904
    %v2906 = vpop.f32.mrb[0].mxu0
    %2907 = vdwg.mxu0
    %v2908 = vmax.f32 %v2900, 0.0
    %v2909 = vmax.f32 %v2905, 0.0
    %v2910 = vld [vmem:[%s18] sm:$0xff]
    %v2911 = vld [vmem:[%s18 + $0x8] sm:$0xff]
    %v2912 = vld [vmem:[%s18 + $0x10] sm:$0xff]
    %v2913 = vld [vmem:[%s18 + $0x18] sm:$0xff]
    %v2914 = vld [vmem:[%s19] sm:$0xff]
    %v2915 = vld [vmem:[%s19 + $0x8] sm:$0xff]
    %v2916 = vld [vmem:[%s19 + $0x10] sm:$0xff]
    %v2917 = vld [vmem:[%s19 + $0x18] sm:$0xff]
    %2919 = vset.pattern.permute.xlu0 0
    %2920 = vperm.xlu0 %2919, %v2914
    %v2921 = vpop.permute.xlu0 %2920
    %2924 = vset.pattern.permute.xlu0 0
    %2925 = vperm.xlu0 %2924, %v2915
    %v2926 = vpop.permute.xlu0 %2925
    %2929 = vset.pattern.permute.xlu0 0
    %2930 = vperm.xlu0 %2929, %v2916
    %v2931 = vpop.permute.xlu0 %2930
    %2934 = vset.pattern.permute.xlu0 0
    %2935 = vperm.xlu0 %2934, %v2917
    %v2936 = vpop.permute.xlu0 %2935
    %v2939 = vsel %vm325, %v2910, 0
    %v2942 = vsel %vm325, %v2911, 0
    %v2945 = vsel %vm325, %v2912, 0
    %v2948 = vsel %vm325, %v2913, 0
    %2950 = vmatprep.subr.mxu0 0.0
    %2951 = vmatpush1.msra.mxu0 %v2908
    %2952 = vmatprep.subr.mxu0 0.0
    %2953 = vmatpush1.msra.mxu0 %v2909
    %2954 = vmatprep.subr.mxu0 0.0
    %2955 = vmatpush1.msra.mxu0 0.0
    %2956 = vmatprep.subr.mxu0 0.0
    %2957 = vmatpush1.msra.mxu0 0.0
    %2958 = vmatprep.subr.mxu0 0.0
    %2959 = vmatpush1.msra.mxu0 0.0
    %2960 = vmatprep.subr.mxu0 0.0
    %2961 = vmatpush1.msra.mxu0 0.0
    %2962 = vmatprep.subr.mxu0 0.0
    %2963 = vmatpush1.msra.mxu0 0.0
    %2964 = vmatprep.subr.mxu0 0.0
    %2965 = vmatpush1.msra.mxu0 0.0
    %2966 = vmatprep.subr.mxu0 0.0
    %2967 = vmatpush1.msra.mxu0 0.0
    %2968 = vmatprep.subr.mxu0 0.0
    %2969 = vmatpush1.msra.mxu0 0.0
    %2970 = vmatprep.subr.mxu0 0.0
    %2971 = vmatpush1.msra.mxu0 0.0
    %2972 = vmatprep.subr.mxu0 0.0
    %2973 = vmatpush1.msra.mxu0 0.0
    %2974 = vmatprep.subr.mxu0 0.0
    %2975 = vmatpush1.msra.mxu0 0.0
    %2976 = vmatprep.subr.mxu0 0.0
    %2977 = vmatpush1.msra.mxu0 0.0
    %2978 = vmatprep.subr.mxu0 0.0
    %2979 = vmatpush1.msra.mxu0 0.0
    %2980 = vmatprep.subr.mxu0 0.0
    %2981 = vmatpush1.msra.mxu0 0.0
    %2982 = vmatprep.subr.mxu0 0.0
    %2983 = vmatpush1.msra.mxu0 0.0
    %2984 = vmatprep.subr.mxu0 0.0
    %2985 = vmatpush1.msra.mxu0 0.0
    %2986 = vmatprep.subr.mxu0 0.0
    %2987 = vmatpush1.msra.mxu0 0.0
    %2988 = vmatprep.subr.mxu0 0.0
    %2989 = vmatpush1.msra.mxu0 0.0
    %2990 = vmatprep.subr.mxu0 0.0
    %2991 = vmatpush1.msra.mxu0 0.0
    %2992 = vmatprep.subr.mxu0 0.0
    %2993 = vmatpush1.msra.mxu0 0.0
    %2994 = vmatprep.subr.mxu0 0.0
    %2995 = vmatpush1.msra.mxu0 0.0
    %2996 = vmatprep.subr.mxu0 0.0
    %2997 = vmatpush1.msra.mxu0 0.0
    %2998 = vmatprep.subr.mxu0 0.0
    %2999 = vmatpush1.msra.mxu0 0.0
    %3000 = vmatprep.subr.mxu0 0.0
    %3001 = vmatpush1.msra.mxu0 0.0
    %3002 = vmatprep.subr.mxu0 0.0
    %3003 = vmatpush1.msra.mxu0 0.0
    %3004 = vmatprep.subr.mxu0 0.0
    %3005 = vmatpush1.msra.mxu0 0.0
    %3006 = vmatprep.subr.mxu0 0.0
    %3007 = vmatpush1.msra.mxu0 0.0
    %3008 = vmatprep.subr.mxu0 0.0
    %3009 = vmatpush1.msra.mxu0 0.0
    %3010 = vmatprep.subr.mxu0 0.0
    %3011 = vmatpush1.msra.mxu0 0.0
    %3012 = vmatprep.subr.mxu0 0.0
    %3013 = vmatpush1.msra.mxu0 0.0
    %3014 = vmatprep.mubr.f32.mxu0 0.0
    %3015 = vmatmul.mubr.f32.gmra.mrb[0].mxu0 %v2939
    %v3016 = vpop.f32.mrb[0].mxu0
    %v3017 = vadd.f32 %v2921, %v3016
    %v3018 = vpop.f32.mrb[0].mxu0
    %3019 = vmatprep.mubr.f32.mxu0 0.0
    %3020 = vmatmul.mubr.f32.gmra.mrb[0].mxu0 %v2942
    %v3021 = vpop.f32.mrb[0].mxu0
    %v3022 = vadd.f32 %v2926, %v3021
    %v3023 = vpop.f32.mrb[0].mxu0
    %3024 = vmatprep.mubr.f32.mxu0 0.0
    %3025 = vmatmul.mubr.f32.gmra.mrb[0].mxu0 %v2945
    %v3026 = vpop.f32.mrb[0].mxu0
    %v3027 = vadd.f32 %v2931, %v3026
    %v3028 = vpop.f32.mrb[0].mxu0
    %3029 = vmatprep.mubr.f32.mxu0 0.0
    %3030 = vmatmul.mubr.f32.gmra.mrb[0].mxu0 %v2948
    %v3031 = vpop.f32.mrb[0].mxu0
    %v3032 = vadd.f32 %v2936, %v3031
    %v3033 = vpop.f32.mrb[0].mxu0
    %3034 = vdwg.mxu0
    %v3035 = vmax.f32 %v3017, 0.0
    %v3036 = vmax.f32 %v3022, 0.0
    %v3037 = vmax.f32 %v3027, 0.0
    %v3038 = vmax.f32 %v3032, 0.0
    %v3039 = vld [vmem:[%s20] sm:$0xff]
    %v3040 = vld [vmem:[%s21] sm:$0xff]
    %3042 = vset.pattern.permute.xlu0 0
    %3043 = vperm.xlu0 %3042, %v3040
    %v3044 = vpop.permute.xlu0 %3043
    %v3047 = vsel %vm627, %v3039, 0
    %3049 = vmatprep.subr.mxu0 0.0
    %3050 = vmatpush1.msra.mxu0 %v3035
    %3051 = vmatprep.subr.mxu0 0.0
    %3052 = vmatpush1.msra.mxu0 %v3036
    %3053 = vmatprep.subr.mxu0 0.0
    %3054 = vmatpush1.msra.mxu0 %v3037
    %3055 = vmatprep.subr.mxu0 0.0
    %3056 = vmatpush1.msra.mxu0 %v3038
    %3057 = vmatprep.subr.mxu0 0.0
    %3058 = vmatpush1.msra.mxu0 0.0
    %3059 = vmatprep.subr.mxu0 0.0
    %3060 = vmatpush1.msra.mxu0 0.0
    %3061 = vmatprep.subr.mxu0 0.0
    %3062 = vmatpush1.msra.mxu0 0.0
    %3063 = vmatprep.subr.mxu0 0.0
    %3064 = vmatpush1.msra.mxu0 0.0
    %3065 = vmatprep.subr.mxu0 0.0
    %3066 = vmatpush1.msra.mxu0 0.0
    %3067 = vmatprep.subr.mxu0 0.0
    %3068 = vmatpush1.msra.mxu0 0.0
    %3069 = vmatprep.subr.mxu0 0.0
    %3070 = vmatpush1.msra.mxu0 0.0
    %3071 = vmatprep.subr.mxu0 0.0
    %3072 = vmatpush1.msra.mxu0 0.0
    %3073 = vmatprep.subr.mxu0 0.0
    %3074 = vmatpush1.msra.mxu0 0.0
    %3075 = vmatprep.subr.mxu0 0.0
    %3076 = vmatpush1.msra.mxu0 0.0
    %3077 = vmatprep.subr.mxu0 0.0
    %3078 = vmatpush1.msra.mxu0 0.0
    %3079 = vmatprep.subr.mxu0 0.0
    %3080 = vmatpush1.msra.mxu0 0.0
    %3081 = vmatprep.subr.mxu0 0.0
    %3082 = vmatpush1.msra.mxu0 0.0
    %3083 = vmatprep.subr.mxu0 0.0
    %3084 = vmatpush1.msra.mxu0 0.0
    %3085 = vmatprep.subr.mxu0 0.0
    %3086 = vmatpush1.msra.mxu0 0.0
    %3087 = vmatprep.subr.mxu0 0.0
    %3088 = vmatpush1.msra.mxu0 0.0
    %3089 = vmatprep.subr.mxu0 0.0
    %3090 = vmatpush1.msra.mxu0 0.0
    %3091 = vmatprep.subr.mxu0 0.0
    %3092 = vmatpush1.msra.mxu0 0.0
    %3093 = vmatprep.subr.mxu0 0.0
    %3094 = vmatpush1.msra.mxu0 0.0
    %3095 = vmatprep.subr.mxu0 0.0
    %3096 = vmatpush1.msra.mxu0 0.0
    %3097 = vmatprep.subr.mxu0 0.0
    %3098 = vmatpush1.msra.mxu0 0.0
    %3099 = vmatprep.subr.mxu0 0.0
    %3100 = vmatpush1.msra.mxu0 0.0
    %3101 = vmatprep.subr.mxu0 0.0
    %3102 = vmatpush1.msra.mxu0 0.0
    %3103 = vmatprep.subr.mxu0 0.0
    %3104 = vmatpush1.msra.mxu0 0.0
    %3105 = vmatprep.subr.mxu0 0.0
    %3106 = vmatpush1.msra.mxu0 0.0
    %3107 = vmatprep.subr.mxu0 0.0
    %3108 = vmatpush1.msra.mxu0 0.0
    %3109 = vmatprep.subr.mxu0 0.0
    %3110 = vmatpush1.msra.mxu0 0.0
    %3111 = vmatprep.subr.mxu0 0.0
    %3112 = vmatpush1.msra.mxu0 0.0
    %3113 = vmatprep.mubr.f32.mxu0 0.0
    %3114 = vmatmul.mubr.f32.gmra.mrb[0].mxu0 %v3047
    %v3115 = vpop.f32.mrb[0].mxu0
    %v3116 = vadd.f32 %v3044, %v3115
    %v3117 = vpop.f32.mrb[0].mxu0
    %3118 = vdwg.mxu0
    %v3119 = vtanh.pop %v3116
    %v3120 = vmul.f32 %v3119, %v3119
    %v3121 = vsel %vm80, %v3120, 0.0
    %v3122 = vrot.slane %v3121, 4
    %v3123 = vadd.f32 %v3121, %v3122
    %v3124 = vrot.slane %v3123, 2
    %v3125 = vadd.f32 %v3123, %v3124
    %v3126 = vrot.slane %v3125, 1
    %v3127 = vadd.f32 %v3125, %v3126
    %v3128 = vrsqrt.pop %v3127
    %v3129 = vmul.f32 %v3127, %v3128
    %vm3130 = vcmp.eq.f32.partialorder %v3127, inf
    %v3131 = vsel %vm3130, %v3127, %v3129
    %vm3132 = vcmp.eq.f32.partialorder %v3127, 0.0
    %v3133 = vand.u32 %v3127, 2147483648
    %v3134 = vsel %vm3132, %v3133, %v3131
    %v3135 = vmax.f32 %v3134, 1.0
    %v3136 = vrcp.pop %v3135
    %v3137 = vmul.f32 %v3119, %v3136
    %3138 = vst.msk [vmem:[#allocation2] sm:$0xff] %vm80, %v3137
    // Predicated region
    $region90: #{tpu_custom_call.1} parent=1 // pred_check
      _
    $region91: #{tpu_custom_call.1} parent=1 // pred_check_branch
      %3140 = sbr.rel (0) target = $region93
    $region92: #{tpu_custom_call.1} parent=1 // pred_region
      %s3142 = ssub.s32 128, 128
      %3143 = vsyncadd [#allocation3], %s3142
      %s3145 = sshll.u32 [#allocation2], 4
      %s3146 = int_to_ptr.vmem [resolvable:$true] %s3145
      %3148 = dma.vmem_to_hbm [thread:$0]  %s3146, 128, %s22, [#allocation3]
    $region93: #{tpu_custom_call.1} parent=1 // pred_fallthru
      _
    // Predicated region
    $region94: #{tpu_custom_call.1} parent=1 // pred_check
      _
    $region95: #{tpu_custom_call.1} parent=1 // pred_check_branch
      %3150 = sbr.rel (0) target = $region97
    $region96: #{tpu_custom_call.1} parent=1 // pred_region
      %3151 = dma.done [#allocation3], 128
    $region97: #{tpu_custom_call.1} parent=1 // pred_fallthru
      _
    %3152 = vsyncpa [#allocation3], 1

</llo_original>
